<compile_context>
chip_gen: v6e
topology: v6e:2x2x1
jax: 0.10.0
libtpu: 0.0.40
codegen_flags: <defaults>
</compile_context>

<pallas_src>
import functools

import jax
import jax.numpy as jnp
from jax.experimental import pallas as pl
from jax.experimental.pallas import tpu as pltpu

LANE = 128  # lane width / padding target for the narrow (z_size) dims


def encoder3_kernel(x_ref,
                    w1_ref, b1_ref,
                    w2_ref, b2_ref,
                    w3_ref, b3_ref,
                    w4_ref, b4_ref,
                    o_ref):
    """Fused 4-layer MLP on one (TM, 128) batch tile.

    Weights arrive as bf16 (cast once in the wrapper); matmuls run bf16 x bf16
    with f32 accumulation; bias add / ReLU are f32.
    """
    x = x_ref[...].astype(jnp.bfloat16)

    h = jnp.dot(x, w1_ref[...], preferred_element_type=jnp.float32) + b1_ref[...]
    h = jnp.maximum(h, 0.0)

    h = jnp.dot(h.astype(jnp.bfloat16), w2_ref[...],
                preferred_element_type=jnp.float32) + b2_ref[...]
    h = jnp.maximum(h, 0.0)

    h = jnp.dot(h.astype(jnp.bfloat16), w3_ref[...],
                preferred_element_type=jnp.float32) + b3_ref[...]
    h = jnp.maximum(h, 0.0)

    h = jnp.dot(h.astype(jnp.bfloat16), w4_ref[...],
                preferred_element_type=jnp.float32) + b4_ref[...]
    o_ref[...] = h.astype(o_ref.dtype)


def _pad_to(x, shape):
    pads = [(0, t - s) for s, t in zip(x.shape, shape)]
    return jnp.pad(x, pads)


@functools.partial(jax.jit, static_argnames=("tm",))
def encoder3_forward(z, params, *, tm=256):
    """params = ((w1,b1),(w2,b2),(w3,b3),(w4,b4)); wi: (in,out) f32, bi: (1,out) f32."""
    (w1, b1), (w2, b2), (w3, b3), (w4, b4) = params
    batch, z_size = z.shape
    h1, h2, h3 = w1.shape[1], w2.shape[1], w3.shape[1]   # 1024, 512, 128

    # --- wrapper-side padding / casts (layout plumbing, not compute) ---------
    bp = pl.cdiv(batch, tm) * tm                       # batch padded to TM multiple
    z_p = _pad_to(z, (bp, LANE))                       # K of layer 1 -> 128 lanes
    w1_p = _pad_to(w1, (LANE, h1)).astype(jnp.bfloat16)
    w2_b = w2.astype(jnp.bfloat16)
    w3_b = w3.astype(jnp.bfloat16)
    w4_p = _pad_to(w4, (h3, LANE)).astype(jnp.bfloat16)  # lane-dense output cols
    b4_p = _pad_to(b4, (1, LANE))

    grid = (bp // tm,)
    resident = lambda i: (0, 0)   # weights/biases: same block every step -> stay in VMEM

    flops = 2 * bp * (LANE * h1 + h1 * h2 + h2 * h3 + h3 * LANE)
    bytes_accessed = (
        2 * (LANE * h1 + h1 * h2 + h2 * h3 + h3 * LANE)   # bf16 weights
        + 4 * (h1 + h2 + h3 + LANE)                       # f32 biases
        + 4 * bp * LANE * 2                               # f32 x in + out
    )

    out_p = pl.pallas_call(
        encoder3_kernel,
        out_shape=jax.ShapeDtypeStruct((bp, LANE), jnp.float32),
        grid=grid,
        in_specs=[
            pl.BlockSpec((tm, LANE), lambda i: (i, 0)),   # x tile
            pl.BlockSpec((LANE, h1), resident),           # w1
            pl.BlockSpec((1, h1), resident),              # b1
            pl.BlockSpec((h1, h2), resident),             # w2
            pl.BlockSpec((1, h2), resident),              # b2
            pl.BlockSpec((h2, h3), resident),             # w3
            pl.BlockSpec((1, h3), resident),              # b3
            pl.BlockSpec((h3, LANE), resident),           # w4 (padded cols)
            pl.BlockSpec((1, LANE), resident),            # b4 (padded cols)
        ],
        out_specs=pl.BlockSpec((tm, LANE), lambda i: (i, 0)),
        compiler_params=pltpu.CompilerParams(
            dimension_semantics=("parallel",),
            vmem_limit_bytes=32 << 20,
        ),
        cost_estimate=pl.CostEstimate(
            flops=flops, transcendentals=0, bytes_accessed=bytes_accessed),
    )(z_p, w1_p, b1, w2_b, b2, w3_b, b3, w4_p, b4_p)

    return out_p[:batch, :z_size]


def init_params(key, z_size):
    """Deterministic init mimicking nn.Linear default (uniform(-1/sqrt(fan_in), +)). """
    dims = [z_size, 1024, 512, 128, z_size]
    params = []
    for i in range(4):
        fan_in, fan_out = dims[i], dims[i + 1]
        key, kw, kb = jax.random.split(key, 3)
        bound = 1.0 / jnp.sqrt(fan_in)
        w = jax.random.uniform(kw, (fan_in, fan_out), jnp.float32, -bound, bound)
        b = jax.random.uniform(kb, (1, fan_out), jnp.float32, -bound, bound)
        params.append((w, b))
    return tuple(params)


def encoder3_ref_f32(z, params):
    h = z
    for i, (w, b) in enumerate(params):
        h = h @ w + b
        if i < 3:
            h = jnp.maximum(h, 0.0)
    return h


def encoder3_ref_bf16(z, params):
    """Same math as the kernel: bf16 matmul operands, f32 accumulate/elementwise."""
    h = z
    for i, (w, b) in enumerate(params):
        h = jnp.dot(h.astype(jnp.bfloat16), w.astype(jnp.bfloat16),
                    preferred_element_type=jnp.float32) + b
        if i < 3:
            h = jnp.maximum(h, 0.0)
    return h


if __name__ == "__main__":
    z_size = 32
    batch = 8

    key = jax.random.PRNGKey(0)
    key, kz = jax.random.split(key)
    z = jax.random.normal(kz, (batch, z_size), jnp.float32)
    params = init_params(key, z_size)

    out = encoder3_forward(z, params)
    out = jax.block_until_ready(out)
    assert out.shape == (batch, z_size), out.shape

    # Tight check vs a reference that uses identical bf16-operand math.
    ref_bf16 = encoder3_ref_bf16(z, params)
    assert jnp.allclose(out, ref_bf16, atol=1e-2, rtol=1e-2), "mismatch vs bf16 reference"

    # Loose check vs the exact f32 PyTorch-equivalent reference (bf16 operand drift).
    ref_f32 = encoder3_ref_f32(z, params)
    rel = jnp.max(jnp.abs(out - ref_f32)) / (jnp.max(jnp.abs(ref_f32)) + 1e-6)
    assert rel < 3e-2, f"relative error vs f32 reference too large: {rel}"

    print("KERNEL_OK")
</pallas_src>

<mosaic_0001>
module attributes {stable_mosaic.version = 11 : i64} {
  func.func @encoder3_kernel(%arg0: i32, %arg1: memref<256x128xf32, #tpu.memory_space<vmem>>, %arg2: memref<128x1024xbf16, #tpu.memory_space<vmem>>, %arg3: memref<1x1024xf32, #tpu.memory_space<vmem>>, %arg4: memref<1024x512xbf16, #tpu.memory_space<vmem>>, %arg5: memref<1x512xf32, #tpu.memory_space<vmem>>, %arg6: memref<512x128xbf16, #tpu.memory_space<vmem>>, %arg7: memref<1x128xf32, #tpu.memory_space<vmem>>, %arg8: memref<128x128xbf16, #tpu.memory_space<vmem>>, %arg9: memref<1x128xf32, #tpu.memory_space<vmem>>, %arg10: memref<256x128xf32, #tpu.memory_space<vmem>>) attributes {dimension_semantics = [#tpu.dimension_semantics<parallel>], iteration_bounds = array<i64: 1>, scalar_prefetch = 0 : i64, scratch_operands = 0 : i64, tpu.core_type = #tpu.core_type<tc>, window_params = [{transform_indices = @transform_0, window_bounds = array<i64: 256, 128>}, {pipeline_mode = #tpu.pipeline_mode<synchronous>, transform_indices = @transform_1, window_bounds = array<i64: 128, 1024>}, {pipeline_mode = #tpu.pipeline_mode<synchronous>, transform_indices = @transform_2, window_bounds = array<i64: 1, 1024>}, {pipeline_mode = #tpu.pipeline_mode<synchronous>, transform_indices = @transform_3, window_bounds = array<i64: 1024, 512>}, {pipeline_mode = #tpu.pipeline_mode<synchronous>, transform_indices = @transform_4, window_bounds = array<i64: 1, 512>}, {pipeline_mode = #tpu.pipeline_mode<synchronous>, transform_indices = @transform_5, window_bounds = array<i64: 512, 128>}, {pipeline_mode = #tpu.pipeline_mode<synchronous>, transform_indices = @transform_6, window_bounds = array<i64: 1, 128>}, {pipeline_mode = #tpu.pipeline_mode<synchronous>, transform_indices = @transform_7, window_bounds = array<i64: 128, 128>}, {pipeline_mode = #tpu.pipeline_mode<synchronous>, transform_indices = @transform_8, window_bounds = array<i64: 1, 128>}, {transform_indices = @transform_9, window_bounds = array<i64: 256, 128>}]} {
    %c0 = arith.constant 0 : index
    %c0_0 = arith.constant 0 : index
    %0 = vector.load %arg1[%c0, %c0_0] : memref<256x128xf32, #tpu.memory_space<vmem>>, vector<256x128xf32>
    %1 = arith.truncf %0 : vector<256x128xf32> to vector<256x128xbf16>
    %c0_1 = arith.constant 0 : index
    %c0_2 = arith.constant 0 : index
    %2 = vector.load %arg2[%c0_1, %c0_2] : memref<128x1024xbf16, #tpu.memory_space<vmem>>, vector<128x1024xbf16>
    %cst = arith.constant dense<0.000000e+00> : vector<256x1024xf32>
    %3 = tpu.matmul %1, %2, %cst {dimension_numbers = #tpu.dot_dimension_numbers<[1], [0], [0], [1], [0, 0, 1, 1], [], []>} : vector<256x128xbf16>, vector<128x1024xbf16>, vector<256x1024xf32> -> vector<256x1024xf32>
    %c0_3 = arith.constant 0 : index
    %c0_4 = arith.constant 0 : index
    %4 = vector.load %arg3[%c0_3, %c0_4] : memref<1x1024xf32, #tpu.memory_space<vmem>>, vector<1x1024xf32>
    %5 = vector.broadcast %4 : vector<1x1024xf32> to vector<256x1024xf32>
    %6 = arith.addf %3, %5 : vector<256x1024xf32>
    %cst_5 = arith.constant 0.000000e+00 : f32
    %7 = vector.broadcast %cst_5 : f32 to vector<256x1024xf32>
    %8 = arith.maximumf %6, %7 : vector<256x1024xf32>
    %9 = arith.truncf %8 : vector<256x1024xf32> to vector<256x1024xbf16>
    %c0_6 = arith.constant 0 : index
    %c0_7 = arith.constant 0 : index
    %10 = vector.load %arg4[%c0_6, %c0_7] : memref<1024x512xbf16, #tpu.memory_space<vmem>>, vector<1024x512xbf16>
    %cst_8 = arith.constant dense<0.000000e+00> : vector<256x512xf32>
    %11 = tpu.matmul %9, %10, %cst_8 {dimension_numbers = #tpu.dot_dimension_numbers<[1], [0], [0], [1], [0, 0, 1, 1], [], []>} : vector<256x1024xbf16>, vector<1024x512xbf16>, vector<256x512xf32> -> vector<256x512xf32>
    %c0_9 = arith.constant 0 : index
    %c0_10 = arith.constant 0 : index
    %12 = vector.load %arg5[%c0_9, %c0_10] : memref<1x512xf32, #tpu.memory_space<vmem>>, vector<1x512xf32>
    %13 = vector.broadcast %12 : vector<1x512xf32> to vector<256x512xf32>
    %14 = arith.addf %11, %13 : vector<256x512xf32>
    %cst_11 = arith.constant 0.000000e+00 : f32
    %15 = vector.broadcast %cst_11 : f32 to vector<256x512xf32>
    %16 = arith.maximumf %14, %15 : vector<256x512xf32>
    %17 = arith.truncf %16 : vector<256x512xf32> to vector<256x512xbf16>
    %c0_12 = arith.constant 0 : index
    %c0_13 = arith.constant 0 : index
    %18 = vector.load %arg6[%c0_12, %c0_13] : memref<512x128xbf16, #tpu.memory_space<vmem>>, vector<512x128xbf16>
    %cst_14 = arith.constant dense<0.000000e+00> : vector<256x128xf32>
    %19 = tpu.matmul %17, %18, %cst_14 {dimension_numbers = #tpu.dot_dimension_numbers<[1], [0], [0], [1], [0, 0, 1, 1], [], []>} : vector<256x512xbf16>, vector<512x128xbf16>, vector<256x128xf32> -> vector<256x128xf32>
    %c0_15 = arith.constant 0 : index
    %c0_16 = arith.constant 0 : index
    %20 = vector.load %arg7[%c0_15, %c0_16] : memref<1x128xf32, #tpu.memory_space<vmem>>, vector<1x128xf32>
    %21 = vector.broadcast %20 : vector<1x128xf32> to vector<256x128xf32>
    %22 = arith.addf %19, %21 : vector<256x128xf32>
    %cst_17 = arith.constant 0.000000e+00 : f32
    %23 = vector.broadcast %cst_17 : f32 to vector<256x128xf32>
    %24 = arith.maximumf %22, %23 : vector<256x128xf32>
    %25 = arith.truncf %24 : vector<256x128xf32> to vector<256x128xbf16>
    %c0_18 = arith.constant 0 : index
    %c0_19 = arith.constant 0 : index
    %26 = vector.load %arg8[%c0_18, %c0_19] : memref<128x128xbf16, #tpu.memory_space<vmem>>, vector<128x128xbf16>
    %cst_20 = arith.constant dense<0.000000e+00> : vector<256x128xf32>
    %27 = tpu.matmul %25, %26, %cst_20 {dimension_numbers = #tpu.dot_dimension_numbers<[1], [0], [0], [1], [0, 0, 1, 1], [], []>} : vector<256x128xbf16>, vector<128x128xbf16>, vector<256x128xf32> -> vector<256x128xf32>
    %c0_21 = arith.constant 0 : index
    %c0_22 = arith.constant 0 : index
    %28 = vector.load %arg9[%c0_21, %c0_22] : memref<1x128xf32, #tpu.memory_space<vmem>>, vector<1x128xf32>
    %29 = vector.broadcast %28 : vector<1x128xf32> to vector<256x128xf32>
    %30 = arith.addf %27, %29 : vector<256x128xf32>
    %c0_23 = arith.constant 0 : index
    %c0_24 = arith.constant 0 : index
    %31 = vector.load %arg10[%c0_23, %c0_24] : memref<256x128xf32, #tpu.memory_space<vmem>>, vector<256x128xf32>
    tpu.vector_store %arg10[%c0_23, %c0_24], %30 {strides = array<i32>} : memref<256x128xf32, #tpu.memory_space<vmem>>, vector<256x128xf32>,
    return
  }
  func.func @transform_0(%arg0: i32) -> (i32, i32) {
    %c0_i32 = arith.constant 0 : i32
    %c0_i32_0 = arith.constant 0 : i32
    return %arg0, %c0_i32 : i32, i32
  }
  func.func @transform_1(%arg0: i32) -> (i32, i32) {
    %c0_i32 = arith.constant 0 : i32
    %c0_i32_0 = arith.constant 0 : i32
    %c0_i32_1 = arith.constant 0 : i32
    return %c0_i32, %c0_i32_0 : i32, i32
  }
  func.func @transform_2(%arg0: i32) -> (i32, i32) {
    %c0_i32 = arith.constant 0 : i32
    %c0_i32_0 = arith.constant 0 : i32
    %c0_i32_1 = arith.constant 0 : i32
    return %c0_i32, %c0_i32_0 : i32, i32
  }
  func.func @transform_3(%arg0: i32) -> (i32, i32) {
    %c0_i32 = arith.constant 0 : i32
    %c0_i32_0 = arith.constant 0 : i32
    %c0_i32_1 = arith.constant 0 : i32
    return %c0_i32, %c0_i32_0 : i32, i32
  }
  func.func @transform_4(%arg0: i32) -> (i32, i32) {
    %c0_i32 = arith.constant 0 : i32
    %c0_i32_0 = arith.constant 0 : i32
    %c0_i32_1 = arith.constant 0 : i32
    return %c0_i32, %c0_i32_0 : i32, i32
  }
  func.func @transform_5(%arg0: i32) -> (i32, i32) {
    %c0_i32 = arith.constant 0 : i32
    %c0_i32_0 = arith.constant 0 : i32
    %c0_i32_1 = arith.constant 0 : i32
    return %c0_i32, %c0_i32_0 : i32, i32
  }
  func.func @transform_6(%arg0: i32) -> (i32, i32) {
    %c0_i32 = arith.constant 0 : i32
    %c0_i32_0 = arith.constant 0 : i32
    %c0_i32_1 = arith.constant 0 : i32
    return %c0_i32, %c0_i32_0 : i32, i32
  }
  func.func @transform_7(%arg0: i32) -> (i32, i32) {
    %c0_i32 = arith.constant 0 : i32
    %c0_i32_0 = arith.constant 0 : i32
    %c0_i32_1 = arith.constant 0 : i32
    return %c0_i32, %c0_i32_0 : i32, i32
  }
  func.func @transform_8(%arg0: i32) -> (i32, i32) {
    %c0_i32 = arith.constant 0 : i32
    %c0_i32_0 = arith.constant 0 : i32
    %c0_i32_1 = arith.constant 0 : i32
    return %c0_i32, %c0_i32_0 : i32, i32
  }
  func.func @transform_9(%arg0: i32) -> (i32, i32) {
    %c0_i32 = arith.constant 0 : i32
    %c0_i32_0 = arith.constant 0 : i32
    return %arg0, %c0_i32 : i32, i32
  }
}

</mosaic_0001>

<llo_original>
// kernel: encoder3_forward.1
$region0: #{encoder3_forward.1}
  #allocation0 [shape = 'u32[]', space=smem, size = 0x4, offset = 0x4, fixed_abs, tag = 'smem constant byte address 0x4 - core index']
  #allocation1 [shape = 'u32[144,128]{1,0:T(1,128)}', space=vmem, size = 0x12000, scoped, tag = 'internal scratch']
  %s0 = inlined_call_operand.vmem [shape: f32[256,128], index: 0, kind: input, shape index: {}]
  %s1 = inlined_call_operand.vmem [shape: bf16[128,1024], index: 1, kind: input, shape index: {}]
  %s2 = inlined_call_operand.vmem [shape: f32[1,1024], index: 2, kind: input, shape index: {}]
  %s3 = inlined_call_operand.vmem [shape: bf16[1024,512], index: 3, kind: input, shape index: {}]
  %s4 = inlined_call_operand.vmem [shape: f32[1,512], index: 4, kind: input, shape index: {}]
  %s5 = inlined_call_operand.vmem [shape: bf16[512,128], index: 5, kind: input, shape index: {}]
  %s6 = inlined_call_operand.vmem [shape: f32[1,128], index: 6, kind: input, shape index: {}]
  %s7 = inlined_call_operand.vmem [shape: bf16[128,128], index: 7, kind: input, shape index: {}]
  %s8 = inlined_call_operand.vmem [shape: f32[1,128], index: 8, kind: input, shape index: {}]
  %s9 = inlined_call_operand.vmem [shape: f32[256,128], index: 9, kind: output, shape index: {}]
  %s10 = sld [smem:[#allocation0]]
  $region46: #{encoder3_forward.1} parent=0
    _
  %s12 = ssub.s32 1, %s10
  %s13 = scalar_select 0, %s12, %s10
  // Predicated region
  $region2: #{encoder3_forward.1} parent=0 // pred_check
    _
  $region3: #{encoder3_forward.1} parent=0 // pred_check_branch
    %15 = sbr.rel (0) target = $region5
  $region4: #{encoder3_forward.1} parent=0 // pred_region
    _
  $region5: #{encoder3_forward.1} parent=0 // pred_fallthru
    _
  // Predicated region
  $region6: #{encoder3_forward.1} parent=0 // pred_check
    _
  $region7: #{encoder3_forward.1} parent=0 // pred_check_branch
    %17 = sbr.rel (0) target = $region9
  $region8: #{encoder3_forward.1} parent=0 // pred_region
    _
  $region9: #{encoder3_forward.1} parent=0 // pred_fallthru
    _
  // Predicated region
  $region10: #{encoder3_forward.1} parent=0 // pred_check
    _
  $region11: #{encoder3_forward.1} parent=0 // pred_check_branch
    %19 = sbr.rel (0) target = $region13
  $region12: #{encoder3_forward.1} parent=0 // pred_region
    _
  $region13: #{encoder3_forward.1} parent=0 // pred_fallthru
    _
  // Predicated region
  $region14: #{encoder3_forward.1} parent=0 // pred_check
    _
  $region15: #{encoder3_forward.1} parent=0 // pred_check_branch
    %21 = sbr.rel (0) target = $region17
  $region16: #{encoder3_forward.1} parent=0 // pred_region
    _
  $region17: #{encoder3_forward.1} parent=0 // pred_fallthru
    _
  // Predicated region
  $region18: #{encoder3_forward.1} parent=0 // pred_check
    _
  $region19: #{encoder3_forward.1} parent=0 // pred_check_branch
    %23 = sbr.rel (0) target = $region21
  $region20: #{encoder3_forward.1} parent=0 // pred_region
    _
  $region21: #{encoder3_forward.1} parent=0 // pred_fallthru
    _
  // Predicated region
  $region22: #{encoder3_forward.1} parent=0 // pred_check
    _
  $region23: #{encoder3_forward.1} parent=0 // pred_check_branch
    %25 = sbr.rel (0) target = $region25
  $region24: #{encoder3_forward.1} parent=0 // pred_region
    _
  $region25: #{encoder3_forward.1} parent=0 // pred_fallthru
    _
  // Predicated region
  $region26: #{encoder3_forward.1} parent=0 // pred_check
    _
  $region27: #{encoder3_forward.1} parent=0 // pred_check_branch
    %27 = sbr.rel (0) target = $region29
  $region28: #{encoder3_forward.1} parent=0 // pred_region
    _
  $region29: #{encoder3_forward.1} parent=0 // pred_fallthru
    _
  // Predicated region
  $region30: #{encoder3_forward.1} parent=0 // pred_check
    _
  $region31: #{encoder3_forward.1} parent=0 // pred_check_branch
    %29 = sbr.rel (0) target = $region33
  $region32: #{encoder3_forward.1} parent=0 // pred_region
    _
  $region33: #{encoder3_forward.1} parent=0 // pred_fallthru
    _
  // Predicated region
  $region34: #{encoder3_forward.1} parent=0 // pred_check
    _
  $region35: #{encoder3_forward.1} parent=0 // pred_check_branch
    %31 = sbr.rel (0) target = $region37
  $region36: #{encoder3_forward.1} parent=0 // pred_region
    _
  $region37: #{encoder3_forward.1} parent=0 // pred_fallthru
    _
  %v33 = vld [vmem:[%s0] sm:$0xff]
  %v34 = vld [vmem:[%s0 + $0x8] sm:$0xff]
  %v35 = vld [vmem:[%s0 + $0x10] sm:$0xff]
  %v36 = vld [vmem:[%s0 + $0x18] sm:$0xff]
  %v37 = vld [vmem:[%s0 + $0x20] sm:$0xff]
  %v38 = vld [vmem:[%s0 + $0x28] sm:$0xff]
  %v39 = vld [vmem:[%s0 + $0x30] sm:$0xff]
  %v40 = vld [vmem:[%s0 + $0x38] sm:$0xff]
  %v41 = vld [vmem:[%s0 + $0x40] sm:$0xff]
  %v42 = vld [vmem:[%s0 + $0x48] sm:$0xff]
  %v43 = vld [vmem:[%s0 + $0x50] sm:$0xff]
  %v44 = vld [vmem:[%s0 + $0x58] sm:$0xff]
  %v45 = vld [vmem:[%s0 + $0x60] sm:$0xff]
  %v46 = vld [vmem:[%s0 + $0x68] sm:$0xff]
  %v47 = vld [vmem:[%s0 + $0x70] sm:$0xff]
  %v48 = vld [vmem:[%s0 + $0x78] sm:$0xff]
  %v49 = vld [vmem:[%s0 + $0x80] sm:$0xff]
  %v50 = vld [vmem:[%s0 + $0x88] sm:$0xff]
  %v51 = vld [vmem:[%s0 + $0x90] sm:$0xff]
  %v52 = vld [vmem:[%s0 + $0x98] sm:$0xff]
  %v53 = vld [vmem:[%s0 + $0xa0] sm:$0xff]
  %v54 = vld [vmem:[%s0 + $0xa8] sm:$0xff]
  %v55 = vld [vmem:[%s0 + $0xb0] sm:$0xff]
  %v56 = vld [vmem:[%s0 + $0xb8] sm:$0xff]
  %v57 = vld [vmem:[%s0 + $0xc0] sm:$0xff]
  %v58 = vld [vmem:[%s0 + $0xc8] sm:$0xff]
  %v59 = vld [vmem:[%s0 + $0xd0] sm:$0xff]
  %v60 = vld [vmem:[%s0 + $0xd8] sm:$0xff]
  %v61 = vld [vmem:[%s0 + $0xe0] sm:$0xff]
  %v62 = vld [vmem:[%s0 + $0xe8] sm:$0xff]
  %v63 = vld [vmem:[%s0 + $0xf0] sm:$0xff]
  %v64 = vld [vmem:[%s0 + $0xf8] sm:$0xff]
  %v65 = vpack.c.bf16 %v34, %v33
  %v66 = vpack.c.bf16 %v36, %v35
  %v67 = vpack.c.bf16 %v38, %v37
  %v68 = vpack.c.bf16 %v40, %v39
  %v69 = vpack.c.bf16 %v42, %v41
  %v70 = vpack.c.bf16 %v44, %v43
  %v71 = vpack.c.bf16 %v46, %v45
  %v72 = vpack.c.bf16 %v48, %v47
  %v73 = vpack.c.bf16 %v50, %v49
  %v74 = vpack.c.bf16 %v52, %v51
  %v75 = vpack.c.bf16 %v54, %v53
  %v76 = vpack.c.bf16 %v56, %v55
  %v77 = vpack.c.bf16 %v58, %v57
  %v78 = vpack.c.bf16 %v60, %v59
  %v79 = vpack.c.bf16 %v62, %v61
  %v80 = vpack.c.bf16 %v64, %v63
  %v81 = vld [vmem:[%s1] sm:$0xff]
  %v82 = vld [vmem:[%s1 + $0x8] sm:$0xff]
  %v83 = vld [vmem:[%s1 + $0x10] sm:$0xff]
  %v84 = vld [vmem:[%s1 + $0x18] sm:$0xff]
  %v85 = vld [vmem:[%s1 + $0x20] sm:$0xff]
  %v86 = vld [vmem:[%s1 + $0x28] sm:$0xff]
  %v87 = vld [vmem:[%s1 + $0x30] sm:$0xff]
  %v88 = vld [vmem:[%s1 + $0x38] sm:$0xff]
  %v89 = vld [vmem:[%s1 + $0x40] sm:$0xff]
  %v90 = vld [vmem:[%s1 + $0x48] sm:$0xff]
  %v91 = vld [vmem:[%s1 + $0x50] sm:$0xff]
  %v92 = vld [vmem:[%s1 + $0x58] sm:$0xff]
  %v93 = vld [vmem:[%s1 + $0x60] sm:$0xff]
  %v94 = vld [vmem:[%s1 + $0x68] sm:$0xff]
  %v95 = vld [vmem:[%s1 + $0x70] sm:$0xff]
  %v96 = vld [vmem:[%s1 + $0x78] sm:$0xff]
  %v97 = vld [vmem:[%s1 + $0x80] sm:$0xff]
  %v98 = vld [vmem:[%s1 + $0x88] sm:$0xff]
  %v99 = vld [vmem:[%s1 + $0x90] sm:$0xff]
  %v100 = vld [vmem:[%s1 + $0x98] sm:$0xff]
  %v101 = vld [vmem:[%s1 + $0xa0] sm:$0xff]
  %v102 = vld [vmem:[%s1 + $0xa8] sm:$0xff]
  %v103 = vld [vmem:[%s1 + $0xb0] sm:$0xff]
  %v104 = vld [vmem:[%s1 + $0xb8] sm:$0xff]
  %v105 = vld [vmem:[%s1 + $0xc0] sm:$0xff]
  %v106 = vld [vmem:[%s1 + $0xc8] sm:$0xff]
  %v107 = vld [vmem:[%s1 + $0xd0] sm:$0xff]
  %v108 = vld [vmem:[%s1 + $0xd8] sm:$0xff]
  %v109 = vld [vmem:[%s1 + $0xe0] sm:$0xff]
  %v110 = vld [vmem:[%s1 + $0xe8] sm:$0xff]
  %v111 = vld [vmem:[%s1 + $0xf0] sm:$0xff]
  %v112 = vld [vmem:[%s1 + $0xf8] sm:$0xff]
  %v113 = vld [vmem:[%s1 + $0x100] sm:$0xff]
  %v114 = vld [vmem:[%s1 + $0x108] sm:$0xff]
  %v115 = vld [vmem:[%s1 + $0x110] sm:$0xff]
  %v116 = vld [vmem:[%s1 + $0x118] sm:$0xff]
  %v117 = vld [vmem:[%s1 + $0x120] sm:$0xff]
  %v118 = vld [vmem:[%s1 + $0x128] sm:$0xff]
  %v119 = vld [vmem:[%s1 + $0x130] sm:$0xff]
  %v120 = vld [vmem:[%s1 + $0x138] sm:$0xff]
  %v121 = vld [vmem:[%s1 + $0x140] sm:$0xff]
  %v122 = vld [vmem:[%s1 + $0x148] sm:$0xff]
  %v123 = vld [vmem:[%s1 + $0x150] sm:$0xff]
  %v124 = vld [vmem:[%s1 + $0x158] sm:$0xff]
  %v125 = vld [vmem:[%s1 + $0x160] sm:$0xff]
  %v126 = vld [vmem:[%s1 + $0x168] sm:$0xff]
  %v127 = vld [vmem:[%s1 + $0x170] sm:$0xff]
  %v128 = vld [vmem:[%s1 + $0x178] sm:$0xff]
  %v129 = vld [vmem:[%s1 + $0x180] sm:$0xff]
  %v130 = vld [vmem:[%s1 + $0x188] sm:$0xff]
  %v131 = vld [vmem:[%s1 + $0x190] sm:$0xff]
  %v132 = vld [vmem:[%s1 + $0x198] sm:$0xff]
  %v133 = vld [vmem:[%s1 + $0x1a0] sm:$0xff]
  %v134 = vld [vmem:[%s1 + $0x1a8] sm:$0xff]
  %v135 = vld [vmem:[%s1 + $0x1b0] sm:$0xff]
  %v136 = vld [vmem:[%s1 + $0x1b8] sm:$0xff]
  %v137 = vld [vmem:[%s1 + $0x1c0] sm:$0xff]
  %v138 = vld [vmem:[%s1 + $0x1c8] sm:$0xff]
  %v139 = vld [vmem:[%s1 + $0x1d0] sm:$0xff]
  %v140 = vld [vmem:[%s1 + $0x1d8] sm:$0xff]
  %v141 = vld [vmem:[%s1 + $0x1e0] sm:$0xff]
  %v142 = vld [vmem:[%s1 + $0x1e8] sm:$0xff]
  %v143 = vld [vmem:[%s1 + $0x1f0] sm:$0xff]
  %v144 = vld [vmem:[%s1 + $0x1f8] sm:$0xff]
  %v145 = vld [vmem:[%s2] sm:$0xff]
  %v147 = vlaneseq
  %v148 = vshrl.u32 %v147, 7
  %v149 = vsub.s32 0, %v148
  %v150 = vrot.slane %v145, %v149
  %v151 = vlaneseq
  %v152 = vshrl.u32 %v151, 7
  %v153 = vsub.s32 1, %v152
  %v154 = vrot.slane %v145, %v153
  %v155 = vlaneseq
  %v156 = vshrl.u32 %v155, 7
  %v157 = vsub.s32 2, %v156
  %v158 = vrot.slane %v145, %v157
  %v159 = vlaneseq
  %v160 = vshrl.u32 %v159, 7
  %v161 = vsub.s32 3, %v160
  %v162 = vrot.slane %v145, %v161
  %v163 = vlaneseq
  %v164 = vshrl.u32 %v163, 7
  %v165 = vsub.s32 4, %v164
  %v166 = vrot.slane %v145, %v165
  %v167 = vlaneseq
  %v168 = vshrl.u32 %v167, 7
  %v169 = vsub.s32 5, %v168
  %v170 = vrot.slane %v145, %v169
  %v171 = vlaneseq
  %v172 = vshrl.u32 %v171, 7
  %v173 = vsub.s32 6, %v172
  %v174 = vrot.slane %v145, %v173
  %v175 = vlaneseq
  %v176 = vshrl.u32 %v175, 7
  %v177 = vsub.s32 7, %v176
  %v178 = vrot.slane %v145, %v177
  %v251 = vunpack.c.l.b16 %v81
  %v252 = vunpack.c.h.b16 %v81
  %v253 = vunpack.c.l.b16 %v82
  %v254 = vunpack.c.h.b16 %v82
  %v255 = vunpack.c.l.b16 %v83
  %v256 = vunpack.c.h.b16 %v83
  %v257 = vunpack.c.l.b16 %v84
  %v258 = vunpack.c.h.b16 %v84
  %v259 = vunpack.c.l.b16 %v85
  %v260 = vunpack.c.h.b16 %v85
  %v261 = vunpack.c.l.b16 %v86
  %v262 = vunpack.c.h.b16 %v86
  %v263 = vunpack.c.l.b16 %v87
  %v264 = vunpack.c.h.b16 %v87
  %v265 = vunpack.c.l.b16 %v88
  %v266 = vunpack.c.h.b16 %v88
  %v267 = vunpack.c.l.b16 %v89
  %v268 = vunpack.c.h.b16 %v89
  %v269 = vunpack.c.l.b16 %v90
  %v270 = vunpack.c.h.b16 %v90
  %v271 = vunpack.c.l.b16 %v91
  %v272 = vunpack.c.h.b16 %v91
  %v273 = vunpack.c.l.b16 %v92
  %v274 = vunpack.c.h.b16 %v92
  %v275 = vunpack.c.l.b16 %v93
  %v276 = vunpack.c.h.b16 %v93
  %v277 = vunpack.c.l.b16 %v94
  %v278 = vunpack.c.h.b16 %v94
  %v279 = vunpack.c.l.b16 %v95
  %v280 = vunpack.c.h.b16 %v95
  %v281 = vunpack.c.l.b16 %v96
  %v282 = vunpack.c.h.b16 %v96
  %v283 = vunpack.c.l.b16 %v97
  %v284 = vunpack.c.h.b16 %v97
  %v285 = vunpack.c.l.b16 %v98
  %v286 = vunpack.c.h.b16 %v98
  %v287 = vunpack.c.l.b16 %v99
  %v288 = vunpack.c.h.b16 %v99
  %v289 = vunpack.c.l.b16 %v100
  %v290 = vunpack.c.h.b16 %v100
  %v291 = vunpack.c.l.b16 %v101
  %v292 = vunpack.c.h.b16 %v101
  %v293 = vunpack.c.l.b16 %v102
  %v294 = vunpack.c.h.b16 %v102
  %v295 = vunpack.c.l.b16 %v103
  %v296 = vunpack.c.h.b16 %v103
  %v297 = vunpack.c.l.b16 %v104
  %v298 = vunpack.c.h.b16 %v104
  %v299 = vunpack.c.l.b16 %v105
  %v300 = vunpack.c.h.b16 %v105
  %v301 = vunpack.c.l.b16 %v106
  %v302 = vunpack.c.h.b16 %v106
  %v303 = vunpack.c.l.b16 %v107
  %v304 = vunpack.c.h.b16 %v107
  %v305 = vunpack.c.l.b16 %v108
  %v306 = vunpack.c.h.b16 %v108
  %v307 = vunpack.c.l.b16 %v109
  %v308 = vunpack.c.h.b16 %v109
  %v309 = vunpack.c.l.b16 %v110
  %v310 = vunpack.c.h.b16 %v110
  %v311 = vunpack.c.l.b16 %v111
  %v312 = vunpack.c.h.b16 %v111
  %v313 = vunpack.c.l.b16 %v112
  %v314 = vunpack.c.h.b16 %v112
  %v315 = vunpack.c.l.b16 %v113
  %v316 = vunpack.c.h.b16 %v113
  %v317 = vunpack.c.l.b16 %v114
  %v318 = vunpack.c.h.b16 %v114
  %v319 = vunpack.c.l.b16 %v115
  %v320 = vunpack.c.h.b16 %v115
  %v321 = vunpack.c.l.b16 %v116
  %v322 = vunpack.c.h.b16 %v116
  %v323 = vunpack.c.l.b16 %v117
  %v324 = vunpack.c.h.b16 %v117
  %v325 = vunpack.c.l.b16 %v118
  %v326 = vunpack.c.h.b16 %v118
  %v327 = vunpack.c.l.b16 %v119
  %v328 = vunpack.c.h.b16 %v119
  %v329 = vunpack.c.l.b16 %v120
  %v330 = vunpack.c.h.b16 %v120
  %v331 = vunpack.c.l.b16 %v121
  %v332 = vunpack.c.h.b16 %v121
  %v333 = vunpack.c.l.b16 %v122
  %v334 = vunpack.c.h.b16 %v122
  %v335 = vunpack.c.l.b16 %v123
  %v336 = vunpack.c.h.b16 %v123
  %v337 = vunpack.c.l.b16 %v124
  %v338 = vunpack.c.h.b16 %v124
  %v339 = vunpack.c.l.b16 %v125
  %v340 = vunpack.c.h.b16 %v125
  %v341 = vunpack.c.l.b16 %v126
  %v342 = vunpack.c.h.b16 %v126
  %v343 = vunpack.c.l.b16 %v127
  %v344 = vunpack.c.h.b16 %v127
  %v345 = vunpack.c.l.b16 %v128
  %v346 = vunpack.c.h.b16 %v128
  %v347 = vunpack.c.l.b16 %v129
  %v348 = vunpack.c.h.b16 %v129
  %v349 = vunpack.c.l.b16 %v130
  %v350 = vunpack.c.h.b16 %v130
  %v351 = vunpack.c.l.b16 %v131
  %v352 = vunpack.c.h.b16 %v131
  %v353 = vunpack.c.l.b16 %v132
  %v354 = vunpack.c.h.b16 %v132
  %v355 = vunpack.c.l.b16 %v133
  %v356 = vunpack.c.h.b16 %v133
  %v357 = vunpack.c.l.b16 %v134
  %v358 = vunpack.c.h.b16 %v134
  %v359 = vunpack.c.l.b16 %v135
  %v360 = vunpack.c.h.b16 %v135
  %v361 = vunpack.c.l.b16 %v136
  %v362 = vunpack.c.h.b16 %v136
  %v363 = vunpack.c.l.b16 %v137
  %v364 = vunpack.c.h.b16 %v137
  %v365 = vunpack.c.l.b16 %v138
  %v366 = vunpack.c.h.b16 %v138
  %v367 = vunpack.c.l.b16 %v139
  %v368 = vunpack.c.h.b16 %v139
  %v369 = vunpack.c.l.b16 %v140
  %v370 = vunpack.c.h.b16 %v140
  %v371 = vunpack.c.l.b16 %v141
  %v372 = vunpack.c.h.b16 %v141
  %v373 = vunpack.c.l.b16 %v142
  %v374 = vunpack.c.h.b16 %v142
  %v375 = vunpack.c.l.b16 %v143
  %v376 = vunpack.c.h.b16 %v143
  %v377 = vunpack.c.l.b16 %v144
  %v378 = vunpack.c.h.b16 %v144
  %v379 = vpack.c.b16 %v259, %v251
  %v380 = vpack.c.b16 %v260, %v252
  %v381 = vpack.c.b16 %v261, %v253
  %v382 = vpack.c.b16 %v262, %v254
  %v383 = vpack.c.b16 %v263, %v255
  %v384 = vpack.c.b16 %v264, %v256
  %v385 = vpack.c.b16 %v265, %v257
  %v386 = vpack.c.b16 %v266, %v258
  %v387 = vpack.c.b16 %v275, %v267
  %v388 = vpack.c.b16 %v276, %v268
  %v389 = vpack.c.b16 %v277, %v269
  %v390 = vpack.c.b16 %v278, %v270
  %v391 = vpack.c.b16 %v279, %v271
  %v392 = vpack.c.b16 %v280, %v272
  %v393 = vpack.c.b16 %v281, %v273
  %v394 = vpack.c.b16 %v282, %v274
  %v395 = vpack.c.b16 %v291, %v283
  %v396 = vpack.c.b16 %v292, %v284
  %v397 = vpack.c.b16 %v293, %v285
  %v398 = vpack.c.b16 %v294, %v286
  %v399 = vpack.c.b16 %v295, %v287
  %v400 = vpack.c.b16 %v296, %v288
  %v401 = vpack.c.b16 %v297, %v289
  %v402 = vpack.c.b16 %v298, %v290
  %v403 = vpack.c.b16 %v307, %v299
  %v404 = vpack.c.b16 %v308, %v300
  %v405 = vpack.c.b16 %v309, %v301
  %v406 = vpack.c.b16 %v310, %v302
  %v407 = vpack.c.b16 %v311, %v303
  %v408 = vpack.c.b16 %v312, %v304
  %v409 = vpack.c.b16 %v313, %v305
  %v410 = vpack.c.b16 %v314, %v306
  %v411 = vpack.c.b16 %v323, %v315
  %v412 = vpack.c.b16 %v324, %v316
  %v413 = vpack.c.b16 %v325, %v317
  %v414 = vpack.c.b16 %v326, %v318
  %v415 = vpack.c.b16 %v327, %v319
  %v416 = vpack.c.b16 %v328, %v320
  %v417 = vpack.c.b16 %v329, %v321
  %v418 = vpack.c.b16 %v330, %v322
  %v419 = vpack.c.b16 %v339, %v331
  %v420 = vpack.c.b16 %v340, %v332
  %v421 = vpack.c.b16 %v341, %v333
  %v422 = vpack.c.b16 %v342, %v334
  %v423 = vpack.c.b16 %v343, %v335
  %v424 = vpack.c.b16 %v344, %v336
  %v425 = vpack.c.b16 %v345, %v337
  %v426 = vpack.c.b16 %v346, %v338
  %v427 = vpack.c.b16 %v355, %v347
  %v428 = vpack.c.b16 %v356, %v348
  %v429 = vpack.c.b16 %v357, %v349
  %v430 = vpack.c.b16 %v358, %v350
  %v431 = vpack.c.b16 %v359, %v351
  %v432 = vpack.c.b16 %v360, %v352
  %v433 = vpack.c.b16 %v361, %v353
  %v434 = vpack.c.b16 %v362, %v354
  %v435 = vpack.c.b16 %v371, %v363
  %v436 = vpack.c.b16 %v372, %v364
  %v437 = vpack.c.b16 %v373, %v365
  %v438 = vpack.c.b16 %v374, %v366
  %v439 = vpack.c.b16 %v375, %v367
  %v440 = vpack.c.b16 %v376, %v368
  %v441 = vpack.c.b16 %v377, %v369
  %v442 = vpack.c.b16 %v378, %v370
  %507 = vmatprep.subr.bf16.mxu0 %v436
  %508 = vmatpush1.bf16.msra.mxu0 %v435
  %509 = vmatprep.subr.bf16.mxu0 %v428
  %510 = vmatpush1.bf16.msra.mxu0 %v427
  %511 = vmatprep.subr.bf16.mxu0 %v420
  %512 = vmatpush1.bf16.msra.mxu0 %v419
  %513 = vmatprep.subr.bf16.mxu0 %v412
  %514 = vmatpush1.bf16.msra.mxu0 %v411
  %515 = vmatprep.subr.bf16.mxu0 %v404
  %516 = vmatpush1.bf16.msra.mxu0 %v403
  %517 = vmatprep.subr.bf16.mxu0 %v396
  %518 = vmatpush1.bf16.msra.mxu0 %v395
  %519 = vmatprep.subr.bf16.mxu0 %v388
  %520 = vmatpush1.bf16.msra.mxu0 %v387
  %521 = vmatprep.subr.bf16.mxu0 %v380
  %522 = vmatpush1.bf16.msra.mxu0 %v379
  %523 = vmatprep.subr.bf16.mxu0 0
  %524 = vmatpush2.bf16.msra.mxu0 0
  %525 = vmatprep.subr.bf16.mxu0 0
  %526 = vmatpush2.bf16.msra.mxu0 0
  %527 = vmatprep.subr.bf16.mxu0 0
  %528 = vmatpush2.bf16.msra.mxu0 0
  %529 = vmatprep.subr.bf16.mxu0 0
  %530 = vmatpush2.bf16.msra.mxu0 0
  %531 = vmatprep.subr.bf16.mxu0 0
  %532 = vmatpush2.bf16.msra.mxu0 0
  %533 = vmatprep.subr.bf16.mxu0 0
  %534 = vmatpush2.bf16.msra.mxu0 0
  %535 = vmatprep.subr.bf16.mxu0 0
  %536 = vmatpush2.bf16.msra.mxu0 0
  %537 = vmatprep.subr.bf16.mxu0 0
  %538 = vmatpush2.bf16.msra.mxu0 0
  %539 = vmatprep.mubr.bf16.mxu0 0
  %540 = vmatmul.mubr.bf16.gmra.mxu0 %v65
  %v541 = vpop.f32.mrf.mxu0
  %v542 = vadd.f32 %v150, %v541
  %v543 = vpop.f32.mrf.mxu0
  %v544 = vadd.f32 %v154, %v543
  %v545 = vpop.f32.mrf.mxu0
  %v546 = vadd.f32 %v150, %v545
  %v547 = vpop.f32.mrf.mxu0
  %v548 = vadd.f32 %v154, %v547
  %549 = vmatprep.mubr.bf16.mxu0 0
  %550 = vmatmul.mubr.bf16.gmra.mxu0 %v66
  %v551 = vpop.f32.mrf.mxu0
  %v552 = vadd.f32 %v150, %v551
  %v553 = vpop.f32.mrf.mxu0
  %v554 = vadd.f32 %v154, %v553
  %v555 = vpop.f32.mrf.mxu0
  %v556 = vadd.f32 %v150, %v555
  %v557 = vpop.f32.mrf.mxu0
  %v558 = vadd.f32 %v154, %v557
  %559 = vmatprep.mubr.bf16.mxu0 0
  %560 = vmatmul.mubr.bf16.gmra.mxu0 %v67
  %v561 = vpop.f32.mrf.mxu0
  %v562 = vadd.f32 %v150, %v561
  %v563 = vpop.f32.mrf.mxu0
  %v564 = vadd.f32 %v154, %v563
  %v565 = vpop.f32.mrf.mxu0
  %v566 = vadd.f32 %v150, %v565
  %v567 = vpop.f32.mrf.mxu0
  %v568 = vadd.f32 %v154, %v567
  %569 = vmatprep.mubr.bf16.mxu0 0
  %570 = vmatmul.mubr.bf16.gmra.mxu0 %v68
  %v571 = vpop.f32.mrf.mxu0
  %v572 = vadd.f32 %v150, %v571
  %v573 = vpop.f32.mrf.mxu0
  %v574 = vadd.f32 %v154, %v573
  %v575 = vpop.f32.mrf.mxu0
  %v576 = vadd.f32 %v150, %v575
  %v577 = vpop.f32.mrf.mxu0
  %v578 = vadd.f32 %v154, %v577
  %579 = vmatprep.mubr.bf16.mxu0 0
  %580 = vmatmul.mubr.bf16.gmra.mxu0 %v69
  %v581 = vpop.f32.mrf.mxu0
  %v582 = vadd.f32 %v150, %v581
  %v583 = vpop.f32.mrf.mxu0
  %v584 = vadd.f32 %v154, %v583
  %v585 = vpop.f32.mrf.mxu0
  %v586 = vadd.f32 %v150, %v585
  %v587 = vpop.f32.mrf.mxu0
  %v588 = vadd.f32 %v154, %v587
  %589 = vmatprep.mubr.bf16.mxu0 0
  %590 = vmatmul.mubr.bf16.gmra.mxu0 %v70
  %v591 = vpop.f32.mrf.mxu0
  %v592 = vadd.f32 %v150, %v591
  %v593 = vpop.f32.mrf.mxu0
  %v594 = vadd.f32 %v154, %v593
  %v595 = vpop.f32.mrf.mxu0
  %v596 = vadd.f32 %v150, %v595
  %v597 = vpop.f32.mrf.mxu0
  %v598 = vadd.f32 %v154, %v597
  %599 = vmatprep.mubr.bf16.mxu0 0
  %600 = vmatmul.mubr.bf16.gmra.mxu0 %v71
  %v601 = vpop.f32.mrf.mxu0
  %v602 = vadd.f32 %v150, %v601
  %v603 = vpop.f32.mrf.mxu0
  %v604 = vadd.f32 %v154, %v603
  %v605 = vpop.f32.mrf.mxu0
  %v606 = vadd.f32 %v150, %v605
  %v607 = vpop.f32.mrf.mxu0
  %v608 = vadd.f32 %v154, %v607
  %609 = vmatprep.mubr.bf16.mxu0 0
  %610 = vmatmul.mubr.bf16.gmra.mxu0 %v72
  %v611 = vpop.f32.mrf.mxu0
  %v612 = vadd.f32 %v150, %v611
  %v613 = vpop.f32.mrf.mxu0
  %v614 = vadd.f32 %v154, %v613
  %v615 = vpop.f32.mrf.mxu0
  %v616 = vadd.f32 %v150, %v615
  %v617 = vpop.f32.mrf.mxu0
  %v618 = vadd.f32 %v154, %v617
  %619 = vmatprep.mubr.bf16.mxu0 0
  %620 = vmatmul.mubr.bf16.gmra.mxu0 %v73
  %v621 = vpop.f32.mrf.mxu0
  %v622 = vadd.f32 %v150, %v621
  %v623 = vpop.f32.mrf.mxu0
  %v624 = vadd.f32 %v154, %v623
  %v625 = vpop.f32.mrf.mxu0
  %v626 = vadd.f32 %v150, %v625
  %v627 = vpop.f32.mrf.mxu0
  %v628 = vadd.f32 %v154, %v627
  %629 = vmatprep.mubr.bf16.mxu0 0
  %630 = vmatmul.mubr.bf16.gmra.mxu0 %v74
  %v631 = vpop.f32.mrf.mxu0
  %v632 = vadd.f32 %v150, %v631
  %v633 = vpop.f32.mrf.mxu0
  %v634 = vadd.f32 %v154, %v633
  %v635 = vpop.f32.mrf.mxu0
  %v636 = vadd.f32 %v150, %v635
  %v637 = vpop.f32.mrf.mxu0
  %v638 = vadd.f32 %v154, %v637
  %639 = vmatprep.mubr.bf16.mxu0 0
  %640 = vmatmul.mubr.bf16.gmra.mxu0 %v75
  %v641 = vpop.f32.mrf.mxu0
  %v642 = vadd.f32 %v150, %v641
  %v643 = vpop.f32.mrf.mxu0
  %v644 = vadd.f32 %v154, %v643
  %v645 = vpop.f32.mrf.mxu0
  %v646 = vadd.f32 %v150, %v645
  %v647 = vpop.f32.mrf.mxu0
  %v648 = vadd.f32 %v154, %v647
  %649 = vmatprep.mubr.bf16.mxu0 0
  %650 = vmatmul.mubr.bf16.gmra.mxu0 %v76
  %v651 = vpop.f32.mrf.mxu0
  %v652 = vadd.f32 %v150, %v651
  %v653 = vpop.f32.mrf.mxu0
  %v654 = vadd.f32 %v154, %v653
  %v655 = vpop.f32.mrf.mxu0
  %v656 = vadd.f32 %v150, %v655
  %v657 = vpop.f32.mrf.mxu0
  %v658 = vadd.f32 %v154, %v657
  %659 = vmatprep.mubr.bf16.mxu0 0
  %660 = vmatmul.mubr.bf16.gmra.mxu0 %v77
  %v661 = vpop.f32.mrf.mxu0
  %v662 = vadd.f32 %v150, %v661
  %v663 = vpop.f32.mrf.mxu0
  %v664 = vadd.f32 %v154, %v663
  %v665 = vpop.f32.mrf.mxu0
  %v666 = vadd.f32 %v150, %v665
  %v667 = vpop.f32.mrf.mxu0
  %v668 = vadd.f32 %v154, %v667
  %669 = vmatprep.mubr.bf16.mxu0 0
  %670 = vmatmul.mubr.bf16.gmra.mxu0 %v78
  %v671 = vpop.f32.mrf.mxu0
  %v672 = vadd.f32 %v150, %v671
  %v673 = vpop.f32.mrf.mxu0
  %v674 = vadd.f32 %v154, %v673
  %v675 = vpop.f32.mrf.mxu0
  %v676 = vadd.f32 %v150, %v675
  %v677 = vpop.f32.mrf.mxu0
  %v678 = vadd.f32 %v154, %v677
  %679 = vmatprep.mubr.bf16.mxu0 0
  %680 = vmatmul.mubr.bf16.gmra.mxu0 %v79
  %v681 = vpop.f32.mrf.mxu0
  %v682 = vadd.f32 %v150, %v681
  %v683 = vpop.f32.mrf.mxu0
  %v684 = vadd.f32 %v154, %v683
  %v685 = vpop.f32.mrf.mxu0
  %v686 = vadd.f32 %v150, %v685
  %v687 = vpop.f32.mrf.mxu0
  %v688 = vadd.f32 %v154, %v687
  %689 = vmatprep.mubr.bf16.mxu0 0
  %690 = vmatmul.mubr.bf16.gmra.mxu0 %v80
  %v691 = vpop.f32.mrf.mxu0
  %v692 = vadd.f32 %v150, %v691
  %v693 = vpop.f32.mrf.mxu0
  %v694 = vadd.f32 %v154, %v693
  %v695 = vpop.f32.mrf.mxu0
  %v696 = vadd.f32 %v150, %v695
  %v697 = vpop.f32.mrf.mxu0
  %v698 = vadd.f32 %v154, %v697
  %699 = vdwg.mxu0
  %700 = vmatprep.subr.bf16.mxu0 %v438
  %701 = vmatpush1.bf16.msra.mxu0 %v437
  %702 = vmatprep.subr.bf16.mxu0 %v430
  %703 = vmatpush1.bf16.msra.mxu0 %v429
  %704 = vmatprep.subr.bf16.mxu0 %v422
  %705 = vmatpush1.bf16.msra.mxu0 %v421
  %706 = vmatprep.subr.bf16.mxu0 %v414
  %707 = vmatpush1.bf16.msra.mxu0 %v413
  %708 = vmatprep.subr.bf16.mxu0 %v406
  %709 = vmatpush1.bf16.msra.mxu0 %v405
  %710 = vmatprep.subr.bf16.mxu0 %v398
  %711 = vmatpush1.bf16.msra.mxu0 %v397
  %712 = vmatprep.subr.bf16.mxu0 %v390
  %713 = vmatpush1.bf16.msra.mxu0 %v389
  %714 = vmatprep.subr.bf16.mxu0 %v382
  %715 = vmatpush1.bf16.msra.mxu0 %v381
  %716 = vmatprep.subr.bf16.mxu0 0
  %717 = vmatpush2.bf16.msra.mxu0 0
  %718 = vmatprep.subr.bf16.mxu0 0
  %719 = vmatpush2.bf16.msra.mxu0 0
  %720 = vmatprep.subr.bf16.mxu0 0
  %721 = vmatpush2.bf16.msra.mxu0 0
  %722 = vmatprep.subr.bf16.mxu0 0
  %723 = vmatpush2.bf16.msra.mxu0 0
  %724 = vmatprep.subr.bf16.mxu0 0
  %725 = vmatpush2.bf16.msra.mxu0 0
  %726 = vmatprep.subr.bf16.mxu0 0
  %727 = vmatpush2.bf16.msra.mxu0 0
  %728 = vmatprep.subr.bf16.mxu0 0
  %729 = vmatpush2.bf16.msra.mxu0 0
  %730 = vmatprep.subr.bf16.mxu0 0
  %731 = vmatpush2.bf16.msra.mxu0 0
  %732 = vmatprep.mubr.bf16.mxu0 0
  %733 = vmatmul.mubr.bf16.gmra.mxu0 %v65
  %v734 = vpop.f32.mrf.mxu0
  %v735 = vadd.f32 %v158, %v734
  %v736 = vpop.f32.mrf.mxu0
  %v737 = vadd.f32 %v162, %v736
  %v738 = vpop.f32.mrf.mxu0
  %v739 = vadd.f32 %v158, %v738
  %v740 = vpop.f32.mrf.mxu0
  %v741 = vadd.f32 %v162, %v740
  %742 = vmatprep.mubr.bf16.mxu0 0
  %743 = vmatmul.mubr.bf16.gmra.mxu0 %v66
  %v744 = vpop.f32.mrf.mxu0
  %v745 = vadd.f32 %v158, %v744
  %v746 = vpop.f32.mrf.mxu0
  %v747 = vadd.f32 %v162, %v746
  %v748 = vpop.f32.mrf.mxu0
  %v749 = vadd.f32 %v158, %v748
  %v750 = vpop.f32.mrf.mxu0
  %v751 = vadd.f32 %v162, %v750
  %752 = vmatprep.mubr.bf16.mxu0 0
  %753 = vmatmul.mubr.bf16.gmra.mxu0 %v67
  %v754 = vpop.f32.mrf.mxu0
  %v755 = vadd.f32 %v158, %v754
  %v756 = vpop.f32.mrf.mxu0
  %v757 = vadd.f32 %v162, %v756
  %v758 = vpop.f32.mrf.mxu0
  %v759 = vadd.f32 %v158, %v758
  %v760 = vpop.f32.mrf.mxu0
  %v761 = vadd.f32 %v162, %v760
  %762 = vmatprep.mubr.bf16.mxu0 0
  %763 = vmatmul.mubr.bf16.gmra.mxu0 %v68
  %v764 = vpop.f32.mrf.mxu0
  %v765 = vadd.f32 %v158, %v764
  %v766 = vpop.f32.mrf.mxu0
  %v767 = vadd.f32 %v162, %v766
  %v768 = vpop.f32.mrf.mxu0
  %v769 = vadd.f32 %v158, %v768
  %v770 = vpop.f32.mrf.mxu0
  %v771 = vadd.f32 %v162, %v770
  %772 = vmatprep.mubr.bf16.mxu0 0
  %773 = vmatmul.mubr.bf16.gmra.mxu0 %v69
  %v774 = vpop.f32.mrf.mxu0
  %v775 = vadd.f32 %v158, %v774
  %v776 = vpop.f32.mrf.mxu0
  %v777 = vadd.f32 %v162, %v776
  %v778 = vpop.f32.mrf.mxu0
  %v779 = vadd.f32 %v158, %v778
  %v780 = vpop.f32.mrf.mxu0
  %v781 = vadd.f32 %v162, %v780
  %782 = vmatprep.mubr.bf16.mxu0 0
  %783 = vmatmul.mubr.bf16.gmra.mxu0 %v70
  %v784 = vpop.f32.mrf.mxu0
  %v785 = vadd.f32 %v158, %v784
  %v786 = vpop.f32.mrf.mxu0
  %v787 = vadd.f32 %v162, %v786
  %v788 = vpop.f32.mrf.mxu0
  %v789 = vadd.f32 %v158, %v788
  %v790 = vpop.f32.mrf.mxu0
  %v791 = vadd.f32 %v162, %v790
  %792 = vmatprep.mubr.bf16.mxu0 0
  %793 = vmatmul.mubr.bf16.gmra.mxu0 %v71
  %v794 = vpop.f32.mrf.mxu0
  %v795 = vadd.f32 %v158, %v794
  %v796 = vpop.f32.mrf.mxu0
  %v797 = vadd.f32 %v162, %v796
  %v798 = vpop.f32.mrf.mxu0
  %v799 = vadd.f32 %v158, %v798
  %v800 = vpop.f32.mrf.mxu0
  %v801 = vadd.f32 %v162, %v800
  %802 = vmatprep.mubr.bf16.mxu0 0
  %803 = vmatmul.mubr.bf16.gmra.mxu0 %v72
  %v804 = vpop.f32.mrf.mxu0
  %v805 = vadd.f32 %v158, %v804
  %v806 = vpop.f32.mrf.mxu0
  %v807 = vadd.f32 %v162, %v806
  %v808 = vpop.f32.mrf.mxu0
  %v809 = vadd.f32 %v158, %v808
  %v810 = vpop.f32.mrf.mxu0
  %v811 = vadd.f32 %v162, %v810
  %812 = vmatprep.mubr.bf16.mxu0 0
  %813 = vmatmul.mubr.bf16.gmra.mxu0 %v73
  %v814 = vpop.f32.mrf.mxu0
  %v815 = vadd.f32 %v158, %v814
  %v816 = vpop.f32.mrf.mxu0
  %v817 = vadd.f32 %v162, %v816
  %v818 = vpop.f32.mrf.mxu0
  %v819 = vadd.f32 %v158, %v818
  %v820 = vpop.f32.mrf.mxu0
  %v821 = vadd.f32 %v162, %v820
  %822 = vmatprep.mubr.bf16.mxu0 0
  %823 = vmatmul.mubr.bf16.gmra.mxu0 %v74
  %v824 = vpop.f32.mrf.mxu0
  %v825 = vadd.f32 %v158, %v824
  %v826 = vpop.f32.mrf.mxu0
  %v827 = vadd.f32 %v162, %v826
  %v828 = vpop.f32.mrf.mxu0
  %v829 = vadd.f32 %v158, %v828
  %v830 = vpop.f32.mrf.mxu0
  %v831 = vadd.f32 %v162, %v830
  %832 = vmatprep.mubr.bf16.mxu0 0
  %833 = vmatmul.mubr.bf16.gmra.mxu0 %v75
  %v834 = vpop.f32.mrf.mxu0
  %v835 = vadd.f32 %v158, %v834
  %v836 = vpop.f32.mrf.mxu0
  %v837 = vadd.f32 %v162, %v836
  %v838 = vpop.f32.mrf.mxu0
  %v839 = vadd.f32 %v158, %v838
  %v840 = vpop.f32.mrf.mxu0
  %v841 = vadd.f32 %v162, %v840
  %842 = vmatprep.mubr.bf16.mxu0 0
  %843 = vmatmul.mubr.bf16.gmra.mxu0 %v76
  %v844 = vpop.f32.mrf.mxu0
  %v845 = vadd.f32 %v158, %v844
  %v846 = vpop.f32.mrf.mxu0
  %v847 = vadd.f32 %v162, %v846
  %v848 = vpop.f32.mrf.mxu0
  %v849 = vadd.f32 %v158, %v848
  %v850 = vpop.f32.mrf.mxu0
  %v851 = vadd.f32 %v162, %v850
  %852 = vmatprep.mubr.bf16.mxu0 0
  %853 = vmatmul.mubr.bf16.gmra.mxu0 %v77
  %v854 = vpop.f32.mrf.mxu0
  %v855 = vadd.f32 %v158, %v854
  %v856 = vpop.f32.mrf.mxu0
  %v857 = vadd.f32 %v162, %v856
  %v858 = vpop.f32.mrf.mxu0
  %v859 = vadd.f32 %v158, %v858
  %v860 = vpop.f32.mrf.mxu0
  %v861 = vadd.f32 %v162, %v860
  %862 = vmatprep.mubr.bf16.mxu0 0
  %863 = vmatmul.mubr.bf16.gmra.mxu0 %v78
  %v864 = vpop.f32.mrf.mxu0
  %v865 = vadd.f32 %v158, %v864
  %v866 = vpop.f32.mrf.mxu0
  %v867 = vadd.f32 %v162, %v866
  %v868 = vpop.f32.mrf.mxu0
  %v869 = vadd.f32 %v158, %v868
  %v870 = vpop.f32.mrf.mxu0
  %v871 = vadd.f32 %v162, %v870
  %872 = vmatprep.mubr.bf16.mxu0 0
  %873 = vmatmul.mubr.bf16.gmra.mxu0 %v79
  %v874 = vpop.f32.mrf.mxu0
  %v875 = vadd.f32 %v158, %v874
  %v876 = vpop.f32.mrf.mxu0
  %v877 = vadd.f32 %v162, %v876
  %v878 = vpop.f32.mrf.mxu0
  %v879 = vadd.f32 %v158, %v878
  %v880 = vpop.f32.mrf.mxu0
  %v881 = vadd.f32 %v162, %v880
  %882 = vmatprep.mubr.bf16.mxu0 0
  %883 = vmatmul.mubr.bf16.gmra.mxu0 %v80
  %v884 = vpop.f32.mrf.mxu0
  %v885 = vadd.f32 %v158, %v884
  %v886 = vpop.f32.mrf.mxu0
  %v887 = vadd.f32 %v162, %v886
  %v888 = vpop.f32.mrf.mxu0
  %v889 = vadd.f32 %v158, %v888
  %v890 = vpop.f32.mrf.mxu0
  %v891 = vadd.f32 %v162, %v890
  %892 = vdwg.mxu0
  %893 = vmatprep.subr.bf16.mxu0 %v440
  %894 = vmatpush1.bf16.msra.mxu0 %v439
  %895 = vmatprep.subr.bf16.mxu0 %v432
  %896 = vmatpush1.bf16.msra.mxu0 %v431
  %897 = vmatprep.subr.bf16.mxu0 %v424
  %898 = vmatpush1.bf16.msra.mxu0 %v423
  %899 = vmatprep.subr.bf16.mxu0 %v416
  %900 = vmatpush1.bf16.msra.mxu0 %v415
  %901 = vmatprep.subr.bf16.mxu0 %v408
  %902 = vmatpush1.bf16.msra.mxu0 %v407
  %903 = vmatprep.subr.bf16.mxu0 %v400
  %904 = vmatpush1.bf16.msra.mxu0 %v399
  %905 = vmatprep.subr.bf16.mxu0 %v392
  %906 = vmatpush1.bf16.msra.mxu0 %v391
  %907 = vmatprep.subr.bf16.mxu0 %v384
  %908 = vmatpush1.bf16.msra.mxu0 %v383
  %909 = vmatprep.subr.bf16.mxu0 0
  %910 = vmatpush2.bf16.msra.mxu0 0
  %911 = vmatprep.subr.bf16.mxu0 0
  %912 = vmatpush2.bf16.msra.mxu0 0
  %913 = vmatprep.subr.bf16.mxu0 0
  %914 = vmatpush2.bf16.msra.mxu0 0
  %915 = vmatprep.subr.bf16.mxu0 0
  %916 = vmatpush2.bf16.msra.mxu0 0
  %917 = vmatprep.subr.bf16.mxu0 0
  %918 = vmatpush2.bf16.msra.mxu0 0
  %919 = vmatprep.subr.bf16.mxu0 0
  %920 = vmatpush2.bf16.msra.mxu0 0
  %921 = vmatprep.subr.bf16.mxu0 0
  %922 = vmatpush2.bf16.msra.mxu0 0
  %923 = vmatprep.subr.bf16.mxu0 0
  %924 = vmatpush2.bf16.msra.mxu0 0
  %925 = vmatprep.mubr.bf16.mxu0 0
  %926 = vmatmul.mubr.bf16.gmra.mxu0 %v65
  %v927 = vpop.f32.mrf.mxu0
  %v928 = vadd.f32 %v166, %v927
  %v929 = vpop.f32.mrf.mxu0
  %v930 = vadd.f32 %v170, %v929
  %v931 = vpop.f32.mrf.mxu0
  %v932 = vadd.f32 %v166, %v931
  %v933 = vpop.f32.mrf.mxu0
  %v934 = vadd.f32 %v170, %v933
  %935 = vmatprep.mubr.bf16.mxu0 0
  %936 = vmatmul.mubr.bf16.gmra.mxu0 %v66
  %v937 = vpop.f32.mrf.mxu0
  %v938 = vadd.f32 %v166, %v937
  %v939 = vpop.f32.mrf.mxu0
  %v940 = vadd.f32 %v170, %v939
  %v941 = vpop.f32.mrf.mxu0
  %v942 = vadd.f32 %v166, %v941
  %v943 = vpop.f32.mrf.mxu0
  %v944 = vadd.f32 %v170, %v943
  %945 = vmatprep.mubr.bf16.mxu0 0
  %946 = vmatmul.mubr.bf16.gmra.mxu0 %v67
  %v947 = vpop.f32.mrf.mxu0
  %v948 = vadd.f32 %v166, %v947
  %v949 = vpop.f32.mrf.mxu0
  %v950 = vadd.f32 %v170, %v949
  %v951 = vpop.f32.mrf.mxu0
  %v952 = vadd.f32 %v166, %v951
  %v953 = vpop.f32.mrf.mxu0
  %v954 = vadd.f32 %v170, %v953
  %955 = vmatprep.mubr.bf16.mxu0 0
  %956 = vmatmul.mubr.bf16.gmra.mxu0 %v68
  %v957 = vpop.f32.mrf.mxu0
  %v958 = vadd.f32 %v166, %v957
  %v959 = vpop.f32.mrf.mxu0
  %v960 = vadd.f32 %v170, %v959
  %v961 = vpop.f32.mrf.mxu0
  %v962 = vadd.f32 %v166, %v961
  %v963 = vpop.f32.mrf.mxu0
  %v964 = vadd.f32 %v170, %v963
  %965 = vmatprep.mubr.bf16.mxu0 0
  %966 = vmatmul.mubr.bf16.gmra.mxu0 %v69
  %v967 = vpop.f32.mrf.mxu0
  %v968 = vadd.f32 %v166, %v967
  %v969 = vpop.f32.mrf.mxu0
  %v970 = vadd.f32 %v170, %v969
  %v971 = vpop.f32.mrf.mxu0
  %v972 = vadd.f32 %v166, %v971
  %v973 = vpop.f32.mrf.mxu0
  %v974 = vadd.f32 %v170, %v973
  %975 = vmatprep.mubr.bf16.mxu0 0
  %976 = vmatmul.mubr.bf16.gmra.mxu0 %v70
  %v977 = vpop.f32.mrf.mxu0
  %v978 = vadd.f32 %v166, %v977
  %v979 = vpop.f32.mrf.mxu0
  %v980 = vadd.f32 %v170, %v979
  %v981 = vpop.f32.mrf.mxu0
  %v982 = vadd.f32 %v166, %v981
  %v983 = vpop.f32.mrf.mxu0
  %v984 = vadd.f32 %v170, %v983
  %985 = vmatprep.mubr.bf16.mxu0 0
  %986 = vmatmul.mubr.bf16.gmra.mxu0 %v71
  %v987 = vpop.f32.mrf.mxu0
  %v988 = vadd.f32 %v166, %v987
  %v989 = vpop.f32.mrf.mxu0
  %v990 = vadd.f32 %v170, %v989
  %v991 = vpop.f32.mrf.mxu0
  %v992 = vadd.f32 %v166, %v991
  %v993 = vpop.f32.mrf.mxu0
  %v994 = vadd.f32 %v170, %v993
  %995 = vmatprep.mubr.bf16.mxu0 0
  %996 = vmatmul.mubr.bf16.gmra.mxu0 %v72
  %v997 = vpop.f32.mrf.mxu0
  %v998 = vadd.f32 %v166, %v997
  %v999 = vpop.f32.mrf.mxu0
  %v1000 = vadd.f32 %v170, %v999
  %v1001 = vpop.f32.mrf.mxu0
  %v1002 = vadd.f32 %v166, %v1001
  %v1003 = vpop.f32.mrf.mxu0
  %v1004 = vadd.f32 %v170, %v1003
  %1005 = vmatprep.mubr.bf16.mxu0 0
  %1006 = vmatmul.mubr.bf16.gmra.mxu0 %v73
  %v1007 = vpop.f32.mrf.mxu0
  %v1008 = vadd.f32 %v166, %v1007
  %v1009 = vpop.f32.mrf.mxu0
  %v1010 = vadd.f32 %v170, %v1009
  %v1011 = vpop.f32.mrf.mxu0
  %v1012 = vadd.f32 %v166, %v1011
  %v1013 = vpop.f32.mrf.mxu0
  %v1014 = vadd.f32 %v170, %v1013
  %1015 = vmatprep.mubr.bf16.mxu0 0
  %1016 = vmatmul.mubr.bf16.gmra.mxu0 %v74
  %v1017 = vpop.f32.mrf.mxu0
  %v1018 = vadd.f32 %v166, %v1017
  %v1019 = vpop.f32.mrf.mxu0
  %v1020 = vadd.f32 %v170, %v1019
  %v1021 = vpop.f32.mrf.mxu0
  %v1022 = vadd.f32 %v166, %v1021
  %v1023 = vpop.f32.mrf.mxu0
  %v1024 = vadd.f32 %v170, %v1023
  %1025 = vmatprep.mubr.bf16.mxu0 0
  %1026 = vmatmul.mubr.bf16.gmra.mxu0 %v75
  %v1027 = vpop.f32.mrf.mxu0
  %v1028 = vadd.f32 %v166, %v1027
  %v1029 = vpop.f32.mrf.mxu0
  %v1030 = vadd.f32 %v170, %v1029
  %v1031 = vpop.f32.mrf.mxu0
  %v1032 = vadd.f32 %v166, %v1031
  %v1033 = vpop.f32.mrf.mxu0
  %v1034 = vadd.f32 %v170, %v1033
  %1035 = vmatprep.mubr.bf16.mxu0 0
  %1036 = vmatmul.mubr.bf16.gmra.mxu0 %v76
  %v1037 = vpop.f32.mrf.mxu0
  %v1038 = vadd.f32 %v166, %v1037
  %v1039 = vpop.f32.mrf.mxu0
  %v1040 = vadd.f32 %v170, %v1039
  %v1041 = vpop.f32.mrf.mxu0
  %v1042 = vadd.f32 %v166, %v1041
  %v1043 = vpop.f32.mrf.mxu0
  %v1044 = vadd.f32 %v170, %v1043
  %1045 = vmatprep.mubr.bf16.mxu0 0
  %1046 = vmatmul.mubr.bf16.gmra.mxu0 %v77
  %v1047 = vpop.f32.mrf.mxu0
  %v1048 = vadd.f32 %v166, %v1047
  %v1049 = vpop.f32.mrf.mxu0
  %v1050 = vadd.f32 %v170, %v1049
  %v1051 = vpop.f32.mrf.mxu0
  %v1052 = vadd.f32 %v166, %v1051
  %v1053 = vpop.f32.mrf.mxu0
  %v1054 = vadd.f32 %v170, %v1053
  %1055 = vmatprep.mubr.bf16.mxu0 0
  %1056 = vmatmul.mubr.bf16.gmra.mxu0 %v78
  %v1057 = vpop.f32.mrf.mxu0
  %v1058 = vadd.f32 %v166, %v1057
  %v1059 = vpop.f32.mrf.mxu0
  %v1060 = vadd.f32 %v170, %v1059
  %v1061 = vpop.f32.mrf.mxu0
  %v1062 = vadd.f32 %v166, %v1061
  %v1063 = vpop.f32.mrf.mxu0
  %v1064 = vadd.f32 %v170, %v1063
  %1065 = vmatprep.mubr.bf16.mxu0 0
  %1066 = vmatmul.mubr.bf16.gmra.mxu0 %v79
  %v1067 = vpop.f32.mrf.mxu0
  %v1068 = vadd.f32 %v166, %v1067
  %v1069 = vpop.f32.mrf.mxu0
  %v1070 = vadd.f32 %v170, %v1069
  %v1071 = vpop.f32.mrf.mxu0
  %v1072 = vadd.f32 %v166, %v1071
  %v1073 = vpop.f32.mrf.mxu0
  %v1074 = vadd.f32 %v170, %v1073
  %1075 = vmatprep.mubr.bf16.mxu0 0
  %1076 = vmatmul.mubr.bf16.gmra.mxu0 %v80
  %v1077 = vpop.f32.mrf.mxu0
  %v1078 = vadd.f32 %v166, %v1077
  %v1079 = vpop.f32.mrf.mxu0
  %v1080 = vadd.f32 %v170, %v1079
  %v1081 = vpop.f32.mrf.mxu0
  %v1082 = vadd.f32 %v166, %v1081
  %v1083 = vpop.f32.mrf.mxu0
  %v1084 = vadd.f32 %v170, %v1083
  %1085 = vdwg.mxu0
  %1086 = vmatprep.subr.bf16.mxu0 %v442
  %1087 = vmatpush1.bf16.msra.mxu0 %v441
  %1088 = vmatprep.subr.bf16.mxu0 %v434
  %1089 = vmatpush1.bf16.msra.mxu0 %v433
  %1090 = vmatprep.subr.bf16.mxu0 %v426
  %1091 = vmatpush1.bf16.msra.mxu0 %v425
  %1092 = vmatprep.subr.bf16.mxu0 %v418
  %1093 = vmatpush1.bf16.msra.mxu0 %v417
  %1094 = vmatprep.subr.bf16.mxu0 %v410
  %1095 = vmatpush1.bf16.msra.mxu0 %v409
  %1096 = vmatprep.subr.bf16.mxu0 %v402
  %1097 = vmatpush1.bf16.msra.mxu0 %v401
  %1098 = vmatprep.subr.bf16.mxu0 %v394
  %1099 = vmatpush1.bf16.msra.mxu0 %v393
  %1100 = vmatprep.subr.bf16.mxu0 %v386
  %1101 = vmatpush1.bf16.msra.mxu0 %v385
  %1102 = vmatprep.subr.bf16.mxu0 0
  %1103 = vmatpush2.bf16.msra.mxu0 0
  %1104 = vmatprep.subr.bf16.mxu0 0
  %1105 = vmatpush2.bf16.msra.mxu0 0
  %1106 = vmatprep.subr.bf16.mxu0 0
  %1107 = vmatpush2.bf16.msra.mxu0 0
  %1108 = vmatprep.subr.bf16.mxu0 0
  %1109 = vmatpush2.bf16.msra.mxu0 0
  %1110 = vmatprep.subr.bf16.mxu0 0
  %1111 = vmatpush2.bf16.msra.mxu0 0
  %1112 = vmatprep.subr.bf16.mxu0 0
  %1113 = vmatpush2.bf16.msra.mxu0 0
  %1114 = vmatprep.subr.bf16.mxu0 0
  %1115 = vmatpush2.bf16.msra.mxu0 0
  %1116 = vmatprep.subr.bf16.mxu0 0
  %1117 = vmatpush2.bf16.msra.mxu0 0
  %1118 = vmatprep.mubr.bf16.mxu0 0
  %1119 = vmatmul.mubr.bf16.gmra.mxu0 %v65
  %v1120 = vpop.f32.mrf.mxu0
  %v1121 = vadd.f32 %v174, %v1120
  %v1122 = vpop.f32.mrf.mxu0
  %v1123 = vadd.f32 %v178, %v1122
  %v1124 = vpop.f32.mrf.mxu0
  %v1125 = vadd.f32 %v174, %v1124
  %v1126 = vpop.f32.mrf.mxu0
  %v1127 = vadd.f32 %v178, %v1126
  %1128 = vmatprep.mubr.bf16.mxu0 0
  %1129 = vmatmul.mubr.bf16.gmra.mxu0 %v66
  %v1130 = vpop.f32.mrf.mxu0
  %v1131 = vadd.f32 %v174, %v1130
  %v1132 = vpop.f32.mrf.mxu0
  %v1133 = vadd.f32 %v178, %v1132
  %v1134 = vpop.f32.mrf.mxu0
  %v1135 = vadd.f32 %v174, %v1134
  %v1136 = vpop.f32.mrf.mxu0
  %v1137 = vadd.f32 %v178, %v1136
  %1138 = vmatprep.mubr.bf16.mxu0 0
  %1139 = vmatmul.mubr.bf16.gmra.mxu0 %v67
  %v1140 = vpop.f32.mrf.mxu0
  %v1141 = vadd.f32 %v174, %v1140
  %v1142 = vpop.f32.mrf.mxu0
  %v1143 = vadd.f32 %v178, %v1142
  %v1144 = vpop.f32.mrf.mxu0
  %v1145 = vadd.f32 %v174, %v1144
  %v1146 = vpop.f32.mrf.mxu0
  %v1147 = vadd.f32 %v178, %v1146
  %1148 = vmatprep.mubr.bf16.mxu0 0
  %1149 = vmatmul.mubr.bf16.gmra.mxu0 %v68
  %v1150 = vpop.f32.mrf.mxu0
  %v1151 = vadd.f32 %v174, %v1150
  %v1152 = vpop.f32.mrf.mxu0
  %v1153 = vadd.f32 %v178, %v1152
  %v1154 = vpop.f32.mrf.mxu0
  %v1155 = vadd.f32 %v174, %v1154
  %v1156 = vpop.f32.mrf.mxu0
  %v1157 = vadd.f32 %v178, %v1156
  %1158 = vmatprep.mubr.bf16.mxu0 0
  %1159 = vmatmul.mubr.bf16.gmra.mxu0 %v69
  %v1160 = vpop.f32.mrf.mxu0
  %v1161 = vadd.f32 %v174, %v1160
  %v1162 = vpop.f32.mrf.mxu0
  %v1163 = vadd.f32 %v178, %v1162
  %v1164 = vpop.f32.mrf.mxu0
  %v1165 = vadd.f32 %v174, %v1164
  %v1166 = vpop.f32.mrf.mxu0
  %v1167 = vadd.f32 %v178, %v1166
  %1168 = vmatprep.mubr.bf16.mxu0 0
  %1169 = vmatmul.mubr.bf16.gmra.mxu0 %v70
  %v1170 = vpop.f32.mrf.mxu0
  %v1171 = vadd.f32 %v174, %v1170
  %v1172 = vpop.f32.mrf.mxu0
  %v1173 = vadd.f32 %v178, %v1172
  %v1174 = vpop.f32.mrf.mxu0
  %v1175 = vadd.f32 %v174, %v1174
  %v1176 = vpop.f32.mrf.mxu0
  %v1177 = vadd.f32 %v178, %v1176
  %1178 = vmatprep.mubr.bf16.mxu0 0
  %1179 = vmatmul.mubr.bf16.gmra.mxu0 %v71
  %v1180 = vpop.f32.mrf.mxu0
  %v1181 = vadd.f32 %v174, %v1180
  %v1182 = vpop.f32.mrf.mxu0
  %v1183 = vadd.f32 %v178, %v1182
  %v1184 = vpop.f32.mrf.mxu0
  %v1185 = vadd.f32 %v174, %v1184
  %v1186 = vpop.f32.mrf.mxu0
  %v1187 = vadd.f32 %v178, %v1186
  %1188 = vmatprep.mubr.bf16.mxu0 0
  %1189 = vmatmul.mubr.bf16.gmra.mxu0 %v72
  %v1190 = vpop.f32.mrf.mxu0
  %v1191 = vadd.f32 %v174, %v1190
  %v1192 = vpop.f32.mrf.mxu0
  %v1193 = vadd.f32 %v178, %v1192
  %v1194 = vpop.f32.mrf.mxu0
  %v1195 = vadd.f32 %v174, %v1194
  %v1196 = vpop.f32.mrf.mxu0
  %v1197 = vadd.f32 %v178, %v1196
  %1198 = vmatprep.mubr.bf16.mxu0 0
  %1199 = vmatmul.mubr.bf16.gmra.mxu0 %v73
  %v1200 = vpop.f32.mrf.mxu0
  %v1201 = vadd.f32 %v174, %v1200
  %v1202 = vpop.f32.mrf.mxu0
  %v1203 = vadd.f32 %v178, %v1202
  %v1204 = vpop.f32.mrf.mxu0
  %v1205 = vadd.f32 %v174, %v1204
  %v1206 = vpop.f32.mrf.mxu0
  %v1207 = vadd.f32 %v178, %v1206
  %1208 = vmatprep.mubr.bf16.mxu0 0
  %1209 = vmatmul.mubr.bf16.gmra.mxu0 %v74
  %v1210 = vpop.f32.mrf.mxu0
  %v1211 = vadd.f32 %v174, %v1210
  %v1212 = vpop.f32.mrf.mxu0
  %v1213 = vadd.f32 %v178, %v1212
  %v1214 = vpop.f32.mrf.mxu0
  %v1215 = vadd.f32 %v174, %v1214
  %v1216 = vpop.f32.mrf.mxu0
  %v1217 = vadd.f32 %v178, %v1216
  %1218 = vmatprep.mubr.bf16.mxu0 0
  %1219 = vmatmul.mubr.bf16.gmra.mxu0 %v75
  %v1220 = vpop.f32.mrf.mxu0
  %v1221 = vadd.f32 %v174, %v1220
  %v1222 = vpop.f32.mrf.mxu0
  %v1223 = vadd.f32 %v178, %v1222
  %v1224 = vpop.f32.mrf.mxu0
  %v1225 = vadd.f32 %v174, %v1224
  %v1226 = vpop.f32.mrf.mxu0
  %v1227 = vadd.f32 %v178, %v1226
  %1228 = vmatprep.mubr.bf16.mxu0 0
  %1229 = vmatmul.mubr.bf16.gmra.mxu0 %v76
  %v1230 = vpop.f32.mrf.mxu0
  %v1231 = vadd.f32 %v174, %v1230
  %v1232 = vpop.f32.mrf.mxu0
  %v1233 = vadd.f32 %v178, %v1232
  %v1234 = vpop.f32.mrf.mxu0
  %v1235 = vadd.f32 %v174, %v1234
  %v1236 = vpop.f32.mrf.mxu0
  %v1237 = vadd.f32 %v178, %v1236
  %1238 = vmatprep.mubr.bf16.mxu0 0
  %1239 = vmatmul.mubr.bf16.gmra.mxu0 %v77
  %v1240 = vpop.f32.mrf.mxu0
  %v1241 = vadd.f32 %v174, %v1240
  %v1242 = vpop.f32.mrf.mxu0
  %v1243 = vadd.f32 %v178, %v1242
  %v1244 = vpop.f32.mrf.mxu0
  %v1245 = vadd.f32 %v174, %v1244
  %v1246 = vpop.f32.mrf.mxu0
  %v1247 = vadd.f32 %v178, %v1246
  %1248 = vmatprep.mubr.bf16.mxu0 0
  %1249 = vmatmul.mubr.bf16.gmra.mxu0 %v78
  %v1250 = vpop.f32.mrf.mxu0
  %v1251 = vadd.f32 %v174, %v1250
  %v1252 = vpop.f32.mrf.mxu0
  %v1253 = vadd.f32 %v178, %v1252
  %v1254 = vpop.f32.mrf.mxu0
  %v1255 = vadd.f32 %v174, %v1254
  %v1256 = vpop.f32.mrf.mxu0
  %v1257 = vadd.f32 %v178, %v1256
  %1258 = vmatprep.mubr.bf16.mxu0 0
  %1259 = vmatmul.mubr.bf16.gmra.mxu0 %v79
  %v1260 = vpop.f32.mrf.mxu0
  %v1261 = vadd.f32 %v174, %v1260
  %v1262 = vpop.f32.mrf.mxu0
  %v1263 = vadd.f32 %v178, %v1262
  %v1264 = vpop.f32.mrf.mxu0
  %v1265 = vadd.f32 %v174, %v1264
  %v1266 = vpop.f32.mrf.mxu0
  %v1267 = vadd.f32 %v178, %v1266
  %1268 = vmatprep.mubr.bf16.mxu0 0
  %1269 = vmatmul.mubr.bf16.gmra.mxu0 %v80
  %v1270 = vpop.f32.mrf.mxu0
  %v1271 = vadd.f32 %v174, %v1270
  %v1272 = vpop.f32.mrf.mxu0
  %v1273 = vadd.f32 %v178, %v1272
  %v1274 = vpop.f32.mrf.mxu0
  %v1275 = vadd.f32 %v174, %v1274
  %v1276 = vpop.f32.mrf.mxu0
  %v1277 = vadd.f32 %v178, %v1276
  %1278 = vdwg.mxu0
  %v1279 = vmax.f32 %v542, 0.0
  %v1280 = vmax.f32 %v544, 0.0
  %v1281 = vmax.f32 %v735, 0.0
  %v1282 = vmax.f32 %v737, 0.0
  %v1283 = vmax.f32 %v928, 0.0
  %v1284 = vmax.f32 %v930, 0.0
  %v1285 = vmax.f32 %v1121, 0.0
  %v1286 = vmax.f32 %v1123, 0.0
  %v1287 = vmax.f32 %v546, 0.0
  %v1288 = vmax.f32 %v548, 0.0
  %v1289 = vmax.f32 %v739, 0.0
  %v1290 = vmax.f32 %v741, 0.0
  %v1291 = vmax.f32 %v932, 0.0
  %v1292 = vmax.f32 %v934, 0.0
  %v1293 = vmax.f32 %v1125, 0.0
  %v1294 = vmax.f32 %v1127, 0.0
  %v1295 = vmax.f32 %v552, 0.0
  %v1296 = vmax.f32 %v554, 0.0
  %v1297 = vmax.f32 %v745, 0.0
  %v1298 = vmax.f32 %v747, 0.0
  %v1299 = vmax.f32 %v938, 0.0
  %v1300 = vmax.f32 %v940, 0.0
  %v1301 = vmax.f32 %v1131, 0.0
  %v1302 = vmax.f32 %v1133, 0.0
  %v1303 = vmax.f32 %v556, 0.0
  %v1304 = vmax.f32 %v558, 0.0
  %v1305 = vmax.f32 %v749, 0.0
  %v1306 = vmax.f32 %v751, 0.0
  %v1307 = vmax.f32 %v942, 0.0
  %v1308 = vmax.f32 %v944, 0.0
  %v1309 = vmax.f32 %v1135, 0.0
  %v1310 = vmax.f32 %v1137, 0.0
  %v1311 = vmax.f32 %v562, 0.0
  %v1312 = vmax.f32 %v564, 0.0
  %v1313 = vmax.f32 %v755, 0.0
  %v1314 = vmax.f32 %v757, 0.0
  %v1315 = vmax.f32 %v948, 0.0
  %v1316 = vmax.f32 %v950, 0.0
  %v1317 = vmax.f32 %v1141, 0.0
  %v1318 = vmax.f32 %v1143, 0.0
  %v1319 = vmax.f32 %v566, 0.0
  %v1320 = vmax.f32 %v568, 0.0
  %v1321 = vmax.f32 %v759, 0.0
  %v1322 = vmax.f32 %v761, 0.0
  %v1323 = vmax.f32 %v952, 0.0
  %v1324 = vmax.f32 %v954, 0.0
  %v1325 = vmax.f32 %v1145, 0.0
  %v1326 = vmax.f32 %v1147, 0.0
  %v1327 = vmax.f32 %v572, 0.0
  %v1328 = vmax.f32 %v574, 0.0
  %v1329 = vmax.f32 %v765, 0.0
  %v1330 = vmax.f32 %v767, 0.0
  %v1331 = vmax.f32 %v958, 0.0
  %v1332 = vmax.f32 %v960, 0.0
  %v1333 = vmax.f32 %v1151, 0.0
  %v1334 = vmax.f32 %v1153, 0.0
  %v1335 = vmax.f32 %v576, 0.0
  %v1336 = vmax.f32 %v578, 0.0
  %v1337 = vmax.f32 %v769, 0.0
  %v1338 = vmax.f32 %v771, 0.0
  %v1339 = vmax.f32 %v962, 0.0
  %v1340 = vmax.f32 %v964, 0.0
  %v1341 = vmax.f32 %v1155, 0.0
  %v1342 = vmax.f32 %v1157, 0.0
  %v1343 = vmax.f32 %v582, 0.0
  %v1344 = vmax.f32 %v584, 0.0
  %v1345 = vmax.f32 %v775, 0.0
  %v1346 = vmax.f32 %v777, 0.0
  %v1347 = vmax.f32 %v968, 0.0
  %v1348 = vmax.f32 %v970, 0.0
  %v1349 = vmax.f32 %v1161, 0.0
  %v1350 = vmax.f32 %v1163, 0.0
  %v1351 = vmax.f32 %v586, 0.0
  %v1352 = vmax.f32 %v588, 0.0
  %v1353 = vmax.f32 %v779, 0.0
  %v1354 = vmax.f32 %v781, 0.0
  %v1355 = vmax.f32 %v972, 0.0
  %v1356 = vmax.f32 %v974, 0.0
  %v1357 = vmax.f32 %v1165, 0.0
  %v1358 = vmax.f32 %v1167, 0.0
  %v1359 = vmax.f32 %v592, 0.0
  %v1360 = vmax.f32 %v594, 0.0
  %v1361 = vmax.f32 %v785, 0.0
  %v1362 = vmax.f32 %v787, 0.0
  %v1363 = vmax.f32 %v978, 0.0
  %v1364 = vmax.f32 %v980, 0.0
  %v1365 = vmax.f32 %v1171, 0.0
  %v1366 = vmax.f32 %v1173, 0.0
  %v1367 = vmax.f32 %v596, 0.0
  %v1368 = vmax.f32 %v598, 0.0
  %v1369 = vmax.f32 %v789, 0.0
  %v1370 = vmax.f32 %v791, 0.0
  %v1371 = vmax.f32 %v982, 0.0
  %v1372 = vmax.f32 %v984, 0.0
  %v1373 = vmax.f32 %v1175, 0.0
  %v1374 = vmax.f32 %v1177, 0.0
  %v1375 = vmax.f32 %v602, 0.0
  %v1376 = vmax.f32 %v604, 0.0
  %v1377 = vmax.f32 %v795, 0.0
  %v1378 = vmax.f32 %v797, 0.0
  %v1379 = vmax.f32 %v988, 0.0
  %v1380 = vmax.f32 %v990, 0.0
  %v1381 = vmax.f32 %v1181, 0.0
  %v1382 = vmax.f32 %v1183, 0.0
  %v1383 = vmax.f32 %v606, 0.0
  %v1384 = vmax.f32 %v608, 0.0
  %v1385 = vmax.f32 %v799, 0.0
  %v1386 = vmax.f32 %v801, 0.0
  %v1387 = vmax.f32 %v992, 0.0
  %v1388 = vmax.f32 %v994, 0.0
  %v1389 = vmax.f32 %v1185, 0.0
  %v1390 = vmax.f32 %v1187, 0.0
  %v1391 = vmax.f32 %v612, 0.0
  %v1392 = vmax.f32 %v614, 0.0
  %v1393 = vmax.f32 %v805, 0.0
  %v1394 = vmax.f32 %v807, 0.0
  %v1395 = vmax.f32 %v998, 0.0
  %v1396 = vmax.f32 %v1000, 0.0
  %v1397 = vmax.f32 %v1191, 0.0
  %v1398 = vmax.f32 %v1193, 0.0
  %v1399 = vmax.f32 %v616, 0.0
  %v1400 = vmax.f32 %v618, 0.0
  %v1401 = vmax.f32 %v809, 0.0
  %v1402 = vmax.f32 %v811, 0.0
  %v1403 = vmax.f32 %v1002, 0.0
  %v1404 = vmax.f32 %v1004, 0.0
  %v1405 = vmax.f32 %v1195, 0.0
  %v1406 = vmax.f32 %v1197, 0.0
  %v1407 = vmax.f32 %v622, 0.0
  %v1408 = vmax.f32 %v624, 0.0
  %v1409 = vmax.f32 %v815, 0.0
  %v1410 = vmax.f32 %v817, 0.0
  %v1411 = vmax.f32 %v1008, 0.0
  %v1412 = vmax.f32 %v1010, 0.0
  %v1413 = vmax.f32 %v1201, 0.0
  %v1414 = vmax.f32 %v1203, 0.0
  %v1415 = vmax.f32 %v626, 0.0
  %v1416 = vmax.f32 %v628, 0.0
  %v1417 = vmax.f32 %v819, 0.0
  %v1418 = vmax.f32 %v821, 0.0
  %v1419 = vmax.f32 %v1012, 0.0
  %v1420 = vmax.f32 %v1014, 0.0
  %v1421 = vmax.f32 %v1205, 0.0
  %v1422 = vmax.f32 %v1207, 0.0
  %v1423 = vmax.f32 %v632, 0.0
  %v1424 = vmax.f32 %v634, 0.0
  %v1425 = vmax.f32 %v825, 0.0
  %v1426 = vmax.f32 %v827, 0.0
  %v1427 = vmax.f32 %v1018, 0.0
  %v1428 = vmax.f32 %v1020, 0.0
  %v1429 = vmax.f32 %v1211, 0.0
  %v1430 = vmax.f32 %v1213, 0.0
  %v1431 = vmax.f32 %v636, 0.0
  %v1432 = vmax.f32 %v638, 0.0
  %v1433 = vmax.f32 %v829, 0.0
  %v1434 = vmax.f32 %v831, 0.0
  %v1435 = vmax.f32 %v1022, 0.0
  %v1436 = vmax.f32 %v1024, 0.0
  %v1437 = vmax.f32 %v1215, 0.0
  %v1438 = vmax.f32 %v1217, 0.0
  %v1439 = vmax.f32 %v642, 0.0
  %v1440 = vmax.f32 %v644, 0.0
  %v1441 = vmax.f32 %v835, 0.0
  %v1442 = vmax.f32 %v837, 0.0
  %v1443 = vmax.f32 %v1028, 0.0
  %v1444 = vmax.f32 %v1030, 0.0
  %v1445 = vmax.f32 %v1221, 0.0
  %v1446 = vmax.f32 %v1223, 0.0
  %v1447 = vmax.f32 %v646, 0.0
  %v1448 = vmax.f32 %v648, 0.0
  %v1449 = vmax.f32 %v839, 0.0
  %v1450 = vmax.f32 %v841, 0.0
  %v1451 = vmax.f32 %v1032, 0.0
  %v1452 = vmax.f32 %v1034, 0.0
  %v1453 = vmax.f32 %v1225, 0.0
  %v1454 = vmax.f32 %v1227, 0.0
  %v1455 = vmax.f32 %v652, 0.0
  %v1456 = vmax.f32 %v654, 0.0
  %v1457 = vmax.f32 %v845, 0.0
  %v1458 = vmax.f32 %v847, 0.0
  %v1459 = vmax.f32 %v1038, 0.0
  %v1460 = vmax.f32 %v1040, 0.0
  %v1461 = vmax.f32 %v1231, 0.0
  %v1462 = vmax.f32 %v1233, 0.0
  %v1463 = vmax.f32 %v656, 0.0
  %v1464 = vmax.f32 %v658, 0.0
  %v1465 = vmax.f32 %v849, 0.0
  %v1466 = vmax.f32 %v851, 0.0
  %v1467 = vmax.f32 %v1042, 0.0
  %v1468 = vmax.f32 %v1044, 0.0
  %v1469 = vmax.f32 %v1235, 0.0
  %v1470 = vmax.f32 %v1237, 0.0
  %v1471 = vmax.f32 %v662, 0.0
  %v1472 = vmax.f32 %v664, 0.0
  %v1473 = vmax.f32 %v855, 0.0
  %v1474 = vmax.f32 %v857, 0.0
  %v1475 = vmax.f32 %v1048, 0.0
  %v1476 = vmax.f32 %v1050, 0.0
  %v1477 = vmax.f32 %v1241, 0.0
  %v1478 = vmax.f32 %v1243, 0.0
  %v1479 = vmax.f32 %v666, 0.0
  %v1480 = vmax.f32 %v668, 0.0
  %v1481 = vmax.f32 %v859, 0.0
  %v1482 = vmax.f32 %v861, 0.0
  %v1483 = vmax.f32 %v1052, 0.0
  %v1484 = vmax.f32 %v1054, 0.0
  %v1485 = vmax.f32 %v1245, 0.0
  %v1486 = vmax.f32 %v1247, 0.0
  %v1487 = vmax.f32 %v672, 0.0
  %v1488 = vmax.f32 %v674, 0.0
  %v1489 = vmax.f32 %v865, 0.0
  %v1490 = vmax.f32 %v867, 0.0
  %v1491 = vmax.f32 %v1058, 0.0
  %v1492 = vmax.f32 %v1060, 0.0
  %v1493 = vmax.f32 %v1251, 0.0
  %v1494 = vmax.f32 %v1253, 0.0
  %v1495 = vmax.f32 %v676, 0.0
  %v1496 = vmax.f32 %v678, 0.0
  %v1497 = vmax.f32 %v869, 0.0
  %v1498 = vmax.f32 %v871, 0.0
  %v1499 = vmax.f32 %v1062, 0.0
  %v1500 = vmax.f32 %v1064, 0.0
  %v1501 = vmax.f32 %v1255, 0.0
  %v1502 = vmax.f32 %v1257, 0.0
  %v1503 = vmax.f32 %v682, 0.0
  %v1504 = vmax.f32 %v684, 0.0
  %v1505 = vmax.f32 %v875, 0.0
  %v1506 = vmax.f32 %v877, 0.0
  %v1507 = vmax.f32 %v1068, 0.0
  %v1508 = vmax.f32 %v1070, 0.0
  %v1509 = vmax.f32 %v1261, 0.0
  %v1510 = vmax.f32 %v1263, 0.0
  %v1511 = vmax.f32 %v686, 0.0
  %v1512 = vmax.f32 %v688, 0.0
  %v1513 = vmax.f32 %v879, 0.0
  %v1514 = vmax.f32 %v881, 0.0
  %v1515 = vmax.f32 %v1072, 0.0
  %v1516 = vmax.f32 %v1074, 0.0
  %v1517 = vmax.f32 %v1265, 0.0
  %v1518 = vmax.f32 %v1267, 0.0
  %v1519 = vmax.f32 %v692, 0.0
  %v1520 = vmax.f32 %v694, 0.0
  %v1521 = vmax.f32 %v885, 0.0
  %v1522 = vmax.f32 %v887, 0.0
  %v1523 = vmax.f32 %v1078, 0.0
  %v1524 = vmax.f32 %v1080, 0.0
  %v1525 = vmax.f32 %v1271, 0.0
  %v1526 = vmax.f32 %v1273, 0.0
  %v1527 = vmax.f32 %v696, 0.0
  %v1528 = vmax.f32 %v698, 0.0
  %v1529 = vmax.f32 %v889, 0.0
  %v1530 = vmax.f32 %v891, 0.0
  %v1531 = vmax.f32 %v1082, 0.0
  %v1532 = vmax.f32 %v1084, 0.0
  %v1533 = vmax.f32 %v1275, 0.0
  %v1534 = vmax.f32 %v1277, 0.0
  %v1535 = vpack.c.bf16 %v1287, %v1279
  %v1536 = vpack.c.bf16 %v1288, %v1280
  %v1537 = vpack.c.bf16 %v1289, %v1281
  %v1538 = vpack.c.bf16 %v1290, %v1282
  %v1539 = vpack.c.bf16 %v1291, %v1283
  %v1540 = vpack.c.bf16 %v1292, %v1284
  %v1541 = vpack.c.bf16 %v1293, %v1285
  %v1542 = vpack.c.bf16 %v1294, %v1286
  %v1543 = vpack.c.bf16 %v1303, %v1295
  %v1544 = vpack.c.bf16 %v1304, %v1296
  %v1545 = vpack.c.bf16 %v1305, %v1297
  %v1546 = vpack.c.bf16 %v1306, %v1298
  %v1547 = vpack.c.bf16 %v1307, %v1299
  %v1548 = vpack.c.bf16 %v1308, %v1300
  %v1549 = vpack.c.bf16 %v1309, %v1301
  %v1550 = vpack.c.bf16 %v1310, %v1302
  %v1551 = vpack.c.bf16 %v1319, %v1311
  %v1552 = vpack.c.bf16 %v1320, %v1312
  %v1553 = vpack.c.bf16 %v1321, %v1313
  %v1554 = vpack.c.bf16 %v1322, %v1314
  %v1555 = vpack.c.bf16 %v1323, %v1315
  %v1556 = vpack.c.bf16 %v1324, %v1316
  %v1557 = vpack.c.bf16 %v1325, %v1317
  %v1558 = vpack.c.bf16 %v1326, %v1318
  %v1559 = vpack.c.bf16 %v1335, %v1327
  %v1560 = vpack.c.bf16 %v1336, %v1328
  %v1561 = vpack.c.bf16 %v1337, %v1329
  %v1562 = vpack.c.bf16 %v1338, %v1330
  %v1563 = vpack.c.bf16 %v1339, %v1331
  %v1564 = vpack.c.bf16 %v1340, %v1332
  %v1565 = vpack.c.bf16 %v1341, %v1333
  %v1566 = vpack.c.bf16 %v1342, %v1334
  %v1567 = vpack.c.bf16 %v1351, %v1343
  %v1568 = vpack.c.bf16 %v1352, %v1344
  %v1569 = vpack.c.bf16 %v1353, %v1345
  %v1570 = vpack.c.bf16 %v1354, %v1346
  %v1571 = vpack.c.bf16 %v1355, %v1347
  %v1572 = vpack.c.bf16 %v1356, %v1348
  %v1573 = vpack.c.bf16 %v1357, %v1349
  %v1574 = vpack.c.bf16 %v1358, %v1350
  %v1575 = vpack.c.bf16 %v1367, %v1359
  %v1576 = vpack.c.bf16 %v1368, %v1360
  %v1577 = vpack.c.bf16 %v1369, %v1361
  %v1578 = vpack.c.bf16 %v1370, %v1362
  %v1579 = vpack.c.bf16 %v1371, %v1363
  %v1580 = vpack.c.bf16 %v1372, %v1364
  %v1581 = vpack.c.bf16 %v1373, %v1365
  %v1582 = vpack.c.bf16 %v1374, %v1366
  %v1583 = vpack.c.bf16 %v1383, %v1375
  %v1584 = vpack.c.bf16 %v1384, %v1376
  %v1585 = vpack.c.bf16 %v1385, %v1377
  %v1586 = vpack.c.bf16 %v1386, %v1378
  %v1587 = vpack.c.bf16 %v1387, %v1379
  %v1588 = vpack.c.bf16 %v1388, %v1380
  %v1589 = vpack.c.bf16 %v1389, %v1381
  %v1590 = vpack.c.bf16 %v1390, %v1382
  %v1591 = vpack.c.bf16 %v1399, %v1391
  %v1592 = vpack.c.bf16 %v1400, %v1392
  %v1593 = vpack.c.bf16 %v1401, %v1393
  %v1594 = vpack.c.bf16 %v1402, %v1394
  %v1595 = vpack.c.bf16 %v1403, %v1395
  %v1596 = vpack.c.bf16 %v1404, %v1396
  %v1597 = vpack.c.bf16 %v1405, %v1397
  %v1598 = vpack.c.bf16 %v1406, %v1398
  %v1599 = vpack.c.bf16 %v1415, %v1407
  %v1600 = vpack.c.bf16 %v1416, %v1408
  %v1601 = vpack.c.bf16 %v1417, %v1409
  %v1602 = vpack.c.bf16 %v1418, %v1410
  %v1603 = vpack.c.bf16 %v1419, %v1411
  %v1604 = vpack.c.bf16 %v1420, %v1412
  %v1605 = vpack.c.bf16 %v1421, %v1413
  %v1606 = vpack.c.bf16 %v1422, %v1414
  %v1607 = vpack.c.bf16 %v1431, %v1423
  %v1608 = vpack.c.bf16 %v1432, %v1424
  %v1609 = vpack.c.bf16 %v1433, %v1425
  %v1610 = vpack.c.bf16 %v1434, %v1426
  %v1611 = vpack.c.bf16 %v1435, %v1427
  %v1612 = vpack.c.bf16 %v1436, %v1428
  %v1613 = vpack.c.bf16 %v1437, %v1429
  %v1614 = vpack.c.bf16 %v1438, %v1430
  %v1615 = vpack.c.bf16 %v1447, %v1439
  %v1616 = vpack.c.bf16 %v1448, %v1440
  %v1617 = vpack.c.bf16 %v1449, %v1441
  %v1618 = vpack.c.bf16 %v1450, %v1442
  %v1619 = vpack.c.bf16 %v1451, %v1443
  %v1620 = vpack.c.bf16 %v1452, %v1444
  %v1621 = vpack.c.bf16 %v1453, %v1445
  %v1622 = vpack.c.bf16 %v1454, %v1446
  %v1623 = vpack.c.bf16 %v1463, %v1455
  %v1624 = vpack.c.bf16 %v1464, %v1456
  %v1625 = vpack.c.bf16 %v1465, %v1457
  %v1626 = vpack.c.bf16 %v1466, %v1458
  %v1627 = vpack.c.bf16 %v1467, %v1459
  %v1628 = vpack.c.bf16 %v1468, %v1460
  %v1629 = vpack.c.bf16 %v1469, %v1461
  %v1630 = vpack.c.bf16 %v1470, %v1462
  %v1631 = vpack.c.bf16 %v1479, %v1471
  %v1632 = vpack.c.bf16 %v1480, %v1472
  %v1633 = vpack.c.bf16 %v1481, %v1473
  %v1634 = vpack.c.bf16 %v1482, %v1474
  %v1635 = vpack.c.bf16 %v1483, %v1475
  %v1636 = vpack.c.bf16 %v1484, %v1476
  %v1637 = vpack.c.bf16 %v1485, %v1477
  %v1638 = vpack.c.bf16 %v1486, %v1478
  %v1639 = vpack.c.bf16 %v1495, %v1487
  %v1640 = vpack.c.bf16 %v1496, %v1488
  %v1641 = vpack.c.bf16 %v1497, %v1489
  %v1642 = vpack.c.bf16 %v1498, %v1490
  %v1643 = vpack.c.bf16 %v1499, %v1491
  %v1644 = vpack.c.bf16 %v1500, %v1492
  %v1645 = vpack.c.bf16 %v1501, %v1493
  %v1646 = vpack.c.bf16 %v1502, %v1494
  %v1647 = vpack.c.bf16 %v1511, %v1503
  %v1648 = vpack.c.bf16 %v1512, %v1504
  %v1649 = vpack.c.bf16 %v1513, %v1505
  %v1650 = vpack.c.bf16 %v1514, %v1506
  %v1651 = vpack.c.bf16 %v1515, %v1507
  %v1652 = vpack.c.bf16 %v1516, %v1508
  %v1653 = vpack.c.bf16 %v1517, %v1509
  %v1654 = vpack.c.bf16 %v1518, %v1510
  %v1655 = vpack.c.bf16 %v1527, %v1519
  %v1656 = vpack.c.bf16 %v1528, %v1520
  %v1657 = vpack.c.bf16 %v1529, %v1521
  %v1658 = vpack.c.bf16 %v1530, %v1522
  %v1659 = vpack.c.bf16 %v1531, %v1523
  %v1660 = vpack.c.bf16 %v1532, %v1524
  %v1661 = vpack.c.bf16 %v1533, %v1525
  %v1662 = vpack.c.bf16 %v1534, %v1526
  %v1663 = vld [vmem:[%s3] sm:$0xff]
  %v1664 = vld [vmem:[%s3 + $0x8] sm:$0xff]
  %v1665 = vld [vmem:[%s3 + $0x10] sm:$0xff]
  %v1666 = vld [vmem:[%s3 + $0x18] sm:$0xff]
  %v1667 = vld [vmem:[%s3 + $0x20] sm:$0xff]
  %v1668 = vld [vmem:[%s3 + $0x28] sm:$0xff]
  %v1669 = vld [vmem:[%s3 + $0x30] sm:$0xff]
  %v1670 = vld [vmem:[%s3 + $0x38] sm:$0xff]
  %v1671 = vld [vmem:[%s3 + $0x40] sm:$0xff]
  %v1672 = vld [vmem:[%s3 + $0x48] sm:$0xff]
  %v1673 = vld [vmem:[%s3 + $0x50] sm:$0xff]
  %v1674 = vld [vmem:[%s3 + $0x58] sm:$0xff]
  %v1675 = vld [vmem:[%s3 + $0x60] sm:$0xff]
  %v1676 = vld [vmem:[%s3 + $0x68] sm:$0xff]
  %v1677 = vld [vmem:[%s3 + $0x70] sm:$0xff]
  %v1678 = vld [vmem:[%s3 + $0x78] sm:$0xff]
  %v1679 = vld [vmem:[%s3 + $0x80] sm:$0xff]
  %v1680 = vld [vmem:[%s3 + $0x88] sm:$0xff]
  %v1681 = vld [vmem:[%s3 + $0x90] sm:$0xff]
  %v1682 = vld [vmem:[%s3 + $0x98] sm:$0xff]
  %v1683 = vld [vmem:[%s3 + $0xa0] sm:$0xff]
  %v1684 = vld [vmem:[%s3 + $0xa8] sm:$0xff]
  %v1685 = vld [vmem:[%s3 + $0xb0] sm:$0xff]
  %v1686 = vld [vmem:[%s3 + $0xb8] sm:$0xff]
  %v1687 = vld [vmem:[%s3 + $0xc0] sm:$0xff]
  %v1688 = vld [vmem:[%s3 + $0xc8] sm:$0xff]
  %v1689 = vld [vmem:[%s3 + $0xd0] sm:$0xff]
  %v1690 = vld [vmem:[%s3 + $0xd8] sm:$0xff]
  %v1691 = vld [vmem:[%s3 + $0xe0] sm:$0xff]
  %v1692 = vld [vmem:[%s3 + $0xe8] sm:$0xff]
  %v1693 = vld [vmem:[%s3 + $0xf0] sm:$0xff]
  %v1694 = vld [vmem:[%s3 + $0xf8] sm:$0xff]
  %v1695 = vld [vmem:[%s3 + $0x100] sm:$0xff]
  %v1696 = vld [vmem:[%s3 + $0x108] sm:$0xff]
  %v1697 = vld [vmem:[%s3 + $0x110] sm:$0xff]
  %v1698 = vld [vmem:[%s3 + $0x118] sm:$0xff]
  %v1699 = vld [vmem:[%s3 + $0x120] sm:$0xff]
  %v1700 = vld [vmem:[%s3 + $0x128] sm:$0xff]
  %v1701 = vld [vmem:[%s3 + $0x130] sm:$0xff]
  %v1702 = vld [vmem:[%s3 + $0x138] sm:$0xff]
  %v1703 = vld [vmem:[%s3 + $0x140] sm:$0xff]
  %v1704 = vld [vmem:[%s3 + $0x148] sm:$0xff]
  %v1705 = vld [vmem:[%s3 + $0x150] sm:$0xff]
  %v1706 = vld [vmem:[%s3 + $0x158] sm:$0xff]
  %v1707 = vld [vmem:[%s3 + $0x160] sm:$0xff]
  %v1708 = vld [vmem:[%s3 + $0x168] sm:$0xff]
  %v1709 = vld [vmem:[%s3 + $0x170] sm:$0xff]
  %v1710 = vld [vmem:[%s3 + $0x178] sm:$0xff]
  %v1711 = vld [vmem:[%s3 + $0x180] sm:$0xff]
  %v1712 = vld [vmem:[%s3 + $0x188] sm:$0xff]
  %v1713 = vld [vmem:[%s3 + $0x190] sm:$0xff]
  %v1714 = vld [vmem:[%s3 + $0x198] sm:$0xff]
  %v1715 = vld [vmem:[%s3 + $0x1a0] sm:$0xff]
  %v1716 = vld [vmem:[%s3 + $0x1a8] sm:$0xff]
  %v1717 = vld [vmem:[%s3 + $0x1b0] sm:$0xff]
  %v1718 = vld [vmem:[%s3 + $0x1b8] sm:$0xff]
  %v1719 = vld [vmem:[%s3 + $0x1c0] sm:$0xff]
  %v1720 = vld [vmem:[%s3 + $0x1c8] sm:$0xff]
  %v1721 = vld [vmem:[%s3 + $0x1d0] sm:$0xff]
  %v1722 = vld [vmem:[%s3 + $0x1d8] sm:$0xff]
  %v1723 = vld [vmem:[%s3 + $0x1e0] sm:$0xff]
  %v1724 = vld [vmem:[%s3 + $0x1e8] sm:$0xff]
  %v1725 = vld [vmem:[%s3 + $0x1f0] sm:$0xff]
  %v1726 = vld [vmem:[%s3 + $0x1f8] sm:$0xff]
  %v1727 = vld [vmem:[%s3 + $0x200] sm:$0xff]
  %v1728 = vld [vmem:[%s3 + $0x208] sm:$0xff]
  %v1729 = vld [vmem:[%s3 + $0x210] sm:$0xff]
  %v1730 = vld [vmem:[%s3 + $0x218] sm:$0xff]
  %v1731 = vld [vmem:[%s3 + $0x220] sm:$0xff]
  %v1732 = vld [vmem:[%s3 + $0x228] sm:$0xff]
  %v1733 = vld [vmem:[%s3 + $0x230] sm:$0xff]
  %v1734 = vld [vmem:[%s3 + $0x238] sm:$0xff]
  %v1735 = vld [vmem:[%s3 + $0x240] sm:$0xff]
  %v1736 = vld [vmem:[%s3 + $0x248] sm:$0xff]
  %v1737 = vld [vmem:[%s3 + $0x250] sm:$0xff]
  %v1738 = vld [vmem:[%s3 + $0x258] sm:$0xff]
  %v1739 = vld [vmem:[%s3 + $0x260] sm:$0xff]
  %v1740 = vld [vmem:[%s3 + $0x268] sm:$0xff]
  %v1741 = vld [vmem:[%s3 + $0x270] sm:$0xff]
  %v1742 = vld [vmem:[%s3 + $0x278] sm:$0xff]
  %v1743 = vld [vmem:[%s3 + $0x280] sm:$0xff]
  %v1744 = vld [vmem:[%s3 + $0x288] sm:$0xff]
  %v1745 = vld [vmem:[%s3 + $0x290] sm:$0xff]
  %v1746 = vld [vmem:[%s3 + $0x298] sm:$0xff]
  %v1747 = vld [vmem:[%s3 + $0x2a0] sm:$0xff]
  %v1748 = vld [vmem:[%s3 + $0x2a8] sm:$0xff]
  %v1749 = vld [vmem:[%s3 + $0x2b0] sm:$0xff]
  %v1750 = vld [vmem:[%s3 + $0x2b8] sm:$0xff]
  %v1751 = vld [vmem:[%s3 + $0x2c0] sm:$0xff]
  %v1752 = vld [vmem:[%s3 + $0x2c8] sm:$0xff]
  %v1753 = vld [vmem:[%s3 + $0x2d0] sm:$0xff]
  %v1754 = vld [vmem:[%s3 + $0x2d8] sm:$0xff]
  %v1755 = vld [vmem:[%s3 + $0x2e0] sm:$0xff]
  %v1756 = vld [vmem:[%s3 + $0x2e8] sm:$0xff]
  %v1757 = vld [vmem:[%s3 + $0x2f0] sm:$0xff]
  %v1758 = vld [vmem:[%s3 + $0x2f8] sm:$0xff]
  %v1759 = vld [vmem:[%s3 + $0x300] sm:$0xff]
  %v1760 = vld [vmem:[%s3 + $0x308] sm:$0xff]
  %v1761 = vld [vmem:[%s3 + $0x310] sm:$0xff]
  %v1762 = vld [vmem:[%s3 + $0x318] sm:$0xff]
  %v1763 = vld [vmem:[%s3 + $0x320] sm:$0xff]
  %v1764 = vld [vmem:[%s3 + $0x328] sm:$0xff]
  %v1765 = vld [vmem:[%s3 + $0x330] sm:$0xff]
  %v1766 = vld [vmem:[%s3 + $0x338] sm:$0xff]
  %v1767 = vld [vmem:[%s3 + $0x340] sm:$0xff]
  %v1768 = vld [vmem:[%s3 + $0x348] sm:$0xff]
  %v1769 = vld [vmem:[%s3 + $0x350] sm:$0xff]
  %v1770 = vld [vmem:[%s3 + $0x358] sm:$0xff]
  %v1771 = vld [vmem:[%s3 + $0x360] sm:$0xff]
  %v1772 = vld [vmem:[%s3 + $0x368] sm:$0xff]
  %v1773 = vld [vmem:[%s3 + $0x370] sm:$0xff]
  %v1774 = vld [vmem:[%s3 + $0x378] sm:$0xff]
  %v1775 = vld [vmem:[%s3 + $0x380] sm:$0xff]
  %v1776 = vld [vmem:[%s3 + $0x388] sm:$0xff]
  %v1777 = vld [vmem:[%s3 + $0x390] sm:$0xff]
  %v1778 = vld [vmem:[%s3 + $0x398] sm:$0xff]
  %v1779 = vld [vmem:[%s3 + $0x3a0] sm:$0xff]
  %v1780 = vld [vmem:[%s3 + $0x3a8] sm:$0xff]
  %v1781 = vld [vmem:[%s3 + $0x3b0] sm:$0xff]
  %v1782 = vld [vmem:[%s3 + $0x3b8] sm:$0xff]
  %v1783 = vld [vmem:[%s3 + $0x3c0] sm:$0xff]
  %v1784 = vld [vmem:[%s3 + $0x3c8] sm:$0xff]
  %v1785 = vld [vmem:[%s3 + $0x3d0] sm:$0xff]
  %v1786 = vld [vmem:[%s3 + $0x3d8] sm:$0xff]
  %v1787 = vld [vmem:[%s3 + $0x3e0] sm:$0xff]
  %v1788 = vld [vmem:[%s3 + $0x3e8] sm:$0xff]
  %v1789 = vld [vmem:[%s3 + $0x3f0] sm:$0xff]
  %v1790 = vld [vmem:[%s3 + $0x3f8] sm:$0xff]
  %v1791 = vld [vmem:[%s3 + $0x400] sm:$0xff]
  %v1792 = vld [vmem:[%s3 + $0x408] sm:$0xff]
  %v1793 = vld [vmem:[%s3 + $0x410] sm:$0xff]
  %v1794 = vld [vmem:[%s3 + $0x418] sm:$0xff]
  %v1795 = vld [vmem:[%s3 + $0x420] sm:$0xff]
  %v1796 = vld [vmem:[%s3 + $0x428] sm:$0xff]
  %v1797 = vld [vmem:[%s3 + $0x430] sm:$0xff]
  %v1798 = vld [vmem:[%s3 + $0x438] sm:$0xff]
  %v1799 = vld [vmem:[%s3 + $0x440] sm:$0xff]
  %v1800 = vld [vmem:[%s3 + $0x448] sm:$0xff]
  %v1801 = vld [vmem:[%s3 + $0x450] sm:$0xff]
  %v1802 = vld [vmem:[%s3 + $0x458] sm:$0xff]
  %v1803 = vld [vmem:[%s3 + $0x460] sm:$0xff]
  %v1804 = vld [vmem:[%s3 + $0x468] sm:$0xff]
  %v1805 = vld [vmem:[%s3 + $0x470] sm:$0xff]
  %v1806 = vld [vmem:[%s3 + $0x478] sm:$0xff]
  %v1807 = vld [vmem:[%s3 + $0x480] sm:$0xff]
  %v1808 = vld [vmem:[%s3 + $0x488] sm:$0xff]
  %v1809 = vld [vmem:[%s3 + $0x490] sm:$0xff]
  %v1810 = vld [vmem:[%s3 + $0x498] sm:$0xff]
  %v1811 = vld [vmem:[%s3 + $0x4a0] sm:$0xff]
  %v1812 = vld [vmem:[%s3 + $0x4a8] sm:$0xff]
  %v1813 = vld [vmem:[%s3 + $0x4b0] sm:$0xff]
  %v1814 = vld [vmem:[%s3 + $0x4b8] sm:$0xff]
  %v1815 = vld [vmem:[%s3 + $0x4c0] sm:$0xff]
  %v1816 = vld [vmem:[%s3 + $0x4c8] sm:$0xff]
  %v1817 = vld [vmem:[%s3 + $0x4d0] sm:$0xff]
  %v1818 = vld [vmem:[%s3 + $0x4d8] sm:$0xff]
  %v1819 = vld [vmem:[%s3 + $0x4e0] sm:$0xff]
  %v1820 = vld [vmem:[%s3 + $0x4e8] sm:$0xff]
  %v1821 = vld [vmem:[%s3 + $0x4f0] sm:$0xff]
  %v1822 = vld [vmem:[%s3 + $0x4f8] sm:$0xff]
  %v1823 = vld [vmem:[%s3 + $0x500] sm:$0xff]
  %v1824 = vld [vmem:[%s3 + $0x508] sm:$0xff]
  %v1825 = vld [vmem:[%s3 + $0x510] sm:$0xff]
  %v1826 = vld [vmem:[%s3 + $0x518] sm:$0xff]
  %v1827 = vld [vmem:[%s3 + $0x520] sm:$0xff]
  %v1828 = vld [vmem:[%s3 + $0x528] sm:$0xff]
  %v1829 = vld [vmem:[%s3 + $0x530] sm:$0xff]
  %v1830 = vld [vmem:[%s3 + $0x538] sm:$0xff]
  %v1831 = vld [vmem:[%s3 + $0x540] sm:$0xff]
  %v1832 = vld [vmem:[%s3 + $0x548] sm:$0xff]
  %v1833 = vld [vmem:[%s3 + $0x550] sm:$0xff]
  %v1834 = vld [vmem:[%s3 + $0x558] sm:$0xff]
  %v1835 = vld [vmem:[%s3 + $0x560] sm:$0xff]
  %v1836 = vld [vmem:[%s3 + $0x568] sm:$0xff]
  %v1837 = vld [vmem:[%s3 + $0x570] sm:$0xff]
  %v1838 = vld [vmem:[%s3 + $0x578] sm:$0xff]
  %v1839 = vld [vmem:[%s3 + $0x580] sm:$0xff]
  %v1840 = vld [vmem:[%s3 + $0x588] sm:$0xff]
  %v1841 = vld [vmem:[%s3 + $0x590] sm:$0xff]
  %v1842 = vld [vmem:[%s3 + $0x598] sm:$0xff]
  %v1843 = vld [vmem:[%s3 + $0x5a0] sm:$0xff]
  %v1844 = vld [vmem:[%s3 + $0x5a8] sm:$0xff]
  %v1845 = vld [vmem:[%s3 + $0x5b0] sm:$0xff]
  %v1846 = vld [vmem:[%s3 + $0x5b8] sm:$0xff]
  %v1847 = vld [vmem:[%s3 + $0x5c0] sm:$0xff]
  %v1848 = vld [vmem:[%s3 + $0x5c8] sm:$0xff]
  %v1849 = vld [vmem:[%s3 + $0x5d0] sm:$0xff]
  %v1850 = vld [vmem:[%s3 + $0x5d8] sm:$0xff]
  %v1851 = vld [vmem:[%s3 + $0x5e0] sm:$0xff]
  %v1852 = vld [vmem:[%s3 + $0x5e8] sm:$0xff]
  %v1853 = vld [vmem:[%s3 + $0x5f0] sm:$0xff]
  %v1854 = vld [vmem:[%s3 + $0x5f8] sm:$0xff]
  %v1855 = vld [vmem:[%s3 + $0x600] sm:$0xff]
  %v1856 = vld [vmem:[%s3 + $0x608] sm:$0xff]
  %v1857 = vld [vmem:[%s3 + $0x610] sm:$0xff]
  %v1858 = vld [vmem:[%s3 + $0x618] sm:$0xff]
  %v1859 = vld [vmem:[%s3 + $0x620] sm:$0xff]
  %v1860 = vld [vmem:[%s3 + $0x628] sm:$0xff]
  %v1861 = vld [vmem:[%s3 + $0x630] sm:$0xff]
  %v1862 = vld [vmem:[%s3 + $0x638] sm:$0xff]
  %v1863 = vld [vmem:[%s3 + $0x640] sm:$0xff]
  %v1864 = vld [vmem:[%s3 + $0x648] sm:$0xff]
  %v1865 = vld [vmem:[%s3 + $0x650] sm:$0xff]
  %v1866 = vld [vmem:[%s3 + $0x658] sm:$0xff]
  %v1867 = vld [vmem:[%s3 + $0x660] sm:$0xff]
  %v1868 = vld [vmem:[%s3 + $0x668] sm:$0xff]
  %v1869 = vld [vmem:[%s3 + $0x670] sm:$0xff]
  %v1870 = vld [vmem:[%s3 + $0x678] sm:$0xff]
  %v1871 = vld [vmem:[%s3 + $0x680] sm:$0xff]
  %v1872 = vld [vmem:[%s3 + $0x688] sm:$0xff]
  %v1873 = vld [vmem:[%s3 + $0x690] sm:$0xff]
  %v1874 = vld [vmem:[%s3 + $0x698] sm:$0xff]
  %v1875 = vld [vmem:[%s3 + $0x6a0] sm:$0xff]
  %v1876 = vld [vmem:[%s3 + $0x6a8] sm:$0xff]
  %v1877 = vld [vmem:[%s3 + $0x6b0] sm:$0xff]
  %v1878 = vld [vmem:[%s3 + $0x6b8] sm:$0xff]
  %v1879 = vld [vmem:[%s3 + $0x6c0] sm:$0xff]
  %v1880 = vld [vmem:[%s3 + $0x6c8] sm:$0xff]
  %v1881 = vld [vmem:[%s3 + $0x6d0] sm:$0xff]
  %v1882 = vld [vmem:[%s3 + $0x6d8] sm:$0xff]
  %v1883 = vld [vmem:[%s3 + $0x6e0] sm:$0xff]
  %v1884 = vld [vmem:[%s3 + $0x6e8] sm:$0xff]
  %v1885 = vld [vmem:[%s3 + $0x6f0] sm:$0xff]
  %v1886 = vld [vmem:[%s3 + $0x6f8] sm:$0xff]
  %v1887 = vld [vmem:[%s3 + $0x700] sm:$0xff]
  %v1888 = vld [vmem:[%s3 + $0x708] sm:$0xff]
  %v1889 = vld [vmem:[%s3 + $0x710] sm:$0xff]
  %v1890 = vld [vmem:[%s3 + $0x718] sm:$0xff]
  %v1891 = vld [vmem:[%s3 + $0x720] sm:$0xff]
  %v1892 = vld [vmem:[%s3 + $0x728] sm:$0xff]
  %v1893 = vld [vmem:[%s3 + $0x730] sm:$0xff]
  %v1894 = vld [vmem:[%s3 + $0x738] sm:$0xff]
  %v1895 = vld [vmem:[%s3 + $0x740] sm:$0xff]
  %v1896 = vld [vmem:[%s3 + $0x748] sm:$0xff]
  %v1897 = vld [vmem:[%s3 + $0x750] sm:$0xff]
  %v1898 = vld [vmem:[%s3 + $0x758] sm:$0xff]
  %v1899 = vld [vmem:[%s3 + $0x760] sm:$0xff]
  %v1900 = vld [vmem:[%s3 + $0x768] sm:$0xff]
  %v1901 = vld [vmem:[%s3 + $0x770] sm:$0xff]
  %v1902 = vld [vmem:[%s3 + $0x778] sm:$0xff]
  %v1903 = vld [vmem:[%s3 + $0x780] sm:$0xff]
  %v1904 = vld [vmem:[%s3 + $0x788] sm:$0xff]
  %v1905 = vld [vmem:[%s3 + $0x790] sm:$0xff]
  %v1906 = vld [vmem:[%s3 + $0x798] sm:$0xff]
  %v1907 = vld [vmem:[%s3 + $0x7a0] sm:$0xff]
  %v1908 = vld [vmem:[%s3 + $0x7a8] sm:$0xff]
  %v1909 = vld [vmem:[%s3 + $0x7b0] sm:$0xff]
  %v1910 = vld [vmem:[%s3 + $0x7b8] sm:$0xff]
  %v1911 = vld [vmem:[%s3 + $0x7c0] sm:$0xff]
  %v1912 = vld [vmem:[%s3 + $0x7c8] sm:$0xff]
  %v1913 = vld [vmem:[%s3 + $0x7d0] sm:$0xff]
  %v1914 = vld [vmem:[%s3 + $0x7d8] sm:$0xff]
  %v1915 = vld [vmem:[%s3 + $0x7e0] sm:$0xff]
  %v1916 = vld [vmem:[%s3 + $0x7e8] sm:$0xff]
  %v1917 = vld [vmem:[%s3 + $0x7f0] sm:$0xff]
  %v1918 = vld [vmem:[%s3 + $0x7f8] sm:$0xff]
  %v1919 = vld [vmem:[%s4] sm:$0xf]
  %v1921 = vlaneseq
  %v1922 = vshrl.u32 %v1921, 7
  %v1923 = vsub.s32 0, %v1922
  %v1924 = vrot.slane %v1919, %v1923
  %v1925 = vlaneseq
  %v1926 = vshrl.u32 %v1925, 7
  %v1927 = vsub.s32 1, %v1926
  %v1928 = vrot.slane %v1919, %v1927
  %v1929 = vlaneseq
  %v1930 = vshrl.u32 %v1929, 7
  %v1931 = vsub.s32 2, %v1930
  %v1932 = vrot.slane %v1919, %v1931
  %v1933 = vlaneseq
  %v1934 = vshrl.u32 %v1933, 7
  %v1935 = vsub.s32 3, %v1934
  %v1936 = vrot.slane %v1919, %v1935
  %v2197 = vunpack.c.l.b16 %v1663
  %v2198 = vunpack.c.h.b16 %v1663
  %v2199 = vunpack.c.l.b16 %v1664
  %v2200 = vunpack.c.h.b16 %v1664
  %v2201 = vunpack.c.l.b16 %v1665
  %v2202 = vunpack.c.h.b16 %v1665
  %v2203 = vunpack.c.l.b16 %v1666
  %v2204 = vunpack.c.h.b16 %v1666
  %v2205 = vunpack.c.l.b16 %v1667
  %v2206 = vunpack.c.h.b16 %v1667
  %v2207 = vunpack.c.l.b16 %v1668
  %v2208 = vunpack.c.h.b16 %v1668
  %v2209 = vunpack.c.l.b16 %v1669
  %v2210 = vunpack.c.h.b16 %v1669
  %v2211 = vunpack.c.l.b16 %v1670
  %v2212 = vunpack.c.h.b16 %v1670
  %v2213 = vunpack.c.l.b16 %v1671
  %v2214 = vunpack.c.h.b16 %v1671
  %v2215 = vunpack.c.l.b16 %v1672
  %v2216 = vunpack.c.h.b16 %v1672
  %v2217 = vunpack.c.l.b16 %v1673
  %v2218 = vunpack.c.h.b16 %v1673
  %v2219 = vunpack.c.l.b16 %v1674
  %v2220 = vunpack.c.h.b16 %v1674
  %v2221 = vunpack.c.l.b16 %v1675
  %v2222 = vunpack.c.h.b16 %v1675
  %v2223 = vunpack.c.l.b16 %v1676
  %v2224 = vunpack.c.h.b16 %v1676
  %v2225 = vunpack.c.l.b16 %v1677
  %v2226 = vunpack.c.h.b16 %v1677
  %v2227 = vunpack.c.l.b16 %v1678
  %v2228 = vunpack.c.h.b16 %v1678
  %v2229 = vunpack.c.l.b16 %v1679
  %v2230 = vunpack.c.h.b16 %v1679
  %v2231 = vunpack.c.l.b16 %v1680
  %v2232 = vunpack.c.h.b16 %v1680
  %v2233 = vunpack.c.l.b16 %v1681
  %v2234 = vunpack.c.h.b16 %v1681
  %v2235 = vunpack.c.l.b16 %v1682
  %v2236 = vunpack.c.h.b16 %v1682
  %v2237 = vunpack.c.l.b16 %v1683
  %v2238 = vunpack.c.h.b16 %v1683
  %v2239 = vunpack.c.l.b16 %v1684
  %v2240 = vunpack.c.h.b16 %v1684
  %v2241 = vunpack.c.l.b16 %v1685
  %v2242 = vunpack.c.h.b16 %v1685
  %v2243 = vunpack.c.l.b16 %v1686
  %v2244 = vunpack.c.h.b16 %v1686
  %v2245 = vunpack.c.l.b16 %v1687
  %v2246 = vunpack.c.h.b16 %v1687
  %v2247 = vunpack.c.l.b16 %v1688
  %v2248 = vunpack.c.h.b16 %v1688
  %v2249 = vunpack.c.l.b16 %v1689
  %v2250 = vunpack.c.h.b16 %v1689
  %v2251 = vunpack.c.l.b16 %v1690
  %v2252 = vunpack.c.h.b16 %v1690
  %v2253 = vunpack.c.l.b16 %v1691
  %v2254 = vunpack.c.h.b16 %v1691
  %v2255 = vunpack.c.l.b16 %v1692
  %v2256 = vunpack.c.h.b16 %v1692
  %v2257 = vunpack.c.l.b16 %v1693
  %v2258 = vunpack.c.h.b16 %v1693
  %v2259 = vunpack.c.l.b16 %v1694
  %v2260 = vunpack.c.h.b16 %v1694
  %v2261 = vunpack.c.l.b16 %v1695
  %v2262 = vunpack.c.h.b16 %v1695
  %v2263 = vunpack.c.l.b16 %v1696
  %v2264 = vunpack.c.h.b16 %v1696
  %v2265 = vunpack.c.l.b16 %v1697
  %v2266 = vunpack.c.h.b16 %v1697
  %v2267 = vunpack.c.l.b16 %v1698
  %v2268 = vunpack.c.h.b16 %v1698
  %v2269 = vunpack.c.l.b16 %v1699
  %v2270 = vunpack.c.h.b16 %v1699
  %v2271 = vunpack.c.l.b16 %v1700
  %v2272 = vunpack.c.h.b16 %v1700
  %v2273 = vunpack.c.l.b16 %v1701
  %v2274 = vunpack.c.h.b16 %v1701
  %v2275 = vunpack.c.l.b16 %v1702
  %v2276 = vunpack.c.h.b16 %v1702
  %v2277 = vunpack.c.l.b16 %v1703
  %v2278 = vunpack.c.h.b16 %v1703
  %v2279 = vunpack.c.l.b16 %v1704
  %v2280 = vunpack.c.h.b16 %v1704
  %v2281 = vunpack.c.l.b16 %v1705
  %v2282 = vunpack.c.h.b16 %v1705
  %v2283 = vunpack.c.l.b16 %v1706
  %v2284 = vunpack.c.h.b16 %v1706
  %v2285 = vunpack.c.l.b16 %v1707
  %v2286 = vunpack.c.h.b16 %v1707
  %v2287 = vunpack.c.l.b16 %v1708
  %v2288 = vunpack.c.h.b16 %v1708
  %v2289 = vunpack.c.l.b16 %v1709
  %v2290 = vunpack.c.h.b16 %v1709
  %v2291 = vunpack.c.l.b16 %v1710
  %v2292 = vunpack.c.h.b16 %v1710
  %v2293 = vunpack.c.l.b16 %v1711
  %v2294 = vunpack.c.h.b16 %v1711
  %v2295 = vunpack.c.l.b16 %v1712
  %v2296 = vunpack.c.h.b16 %v1712
  %v2297 = vunpack.c.l.b16 %v1713
  %v2298 = vunpack.c.h.b16 %v1713
  %v2299 = vunpack.c.l.b16 %v1714
  %v2300 = vunpack.c.h.b16 %v1714
  %v2301 = vunpack.c.l.b16 %v1715
  %v2302 = vunpack.c.h.b16 %v1715
  %v2303 = vunpack.c.l.b16 %v1716
  %v2304 = vunpack.c.h.b16 %v1716
  %v2305 = vunpack.c.l.b16 %v1717
  %v2306 = vunpack.c.h.b16 %v1717
  %v2307 = vunpack.c.l.b16 %v1718
  %v2308 = vunpack.c.h.b16 %v1718
  %v2309 = vunpack.c.l.b16 %v1719
  %v2310 = vunpack.c.h.b16 %v1719
  %v2311 = vunpack.c.l.b16 %v1720
  %v2312 = vunpack.c.h.b16 %v1720
  %v2313 = vunpack.c.l.b16 %v1721
  %v2314 = vunpack.c.h.b16 %v1721
  %v2315 = vunpack.c.l.b16 %v1722
  %v2316 = vunpack.c.h.b16 %v1722
  %v2317 = vunpack.c.l.b16 %v1723
  %v2318 = vunpack.c.h.b16 %v1723
  %v2319 = vunpack.c.l.b16 %v1724
  %v2320 = vunpack.c.h.b16 %v1724
  %v2321 = vunpack.c.l.b16 %v1725
  %v2322 = vunpack.c.h.b16 %v1725
  %v2323 = vunpack.c.l.b16 %v1726
  %v2324 = vunpack.c.h.b16 %v1726
  %v2325 = vunpack.c.l.b16 %v1727
  %v2326 = vunpack.c.h.b16 %v1727
  %v2327 = vunpack.c.l.b16 %v1728
  %v2328 = vunpack.c.h.b16 %v1728
  %v2329 = vunpack.c.l.b16 %v1729
  %v2330 = vunpack.c.h.b16 %v1729
  %v2331 = vunpack.c.l.b16 %v1730
  %v2332 = vunpack.c.h.b16 %v1730
  %v2333 = vunpack.c.l.b16 %v1731
  %v2334 = vunpack.c.h.b16 %v1731
  %v2335 = vunpack.c.l.b16 %v1732
  %v2336 = vunpack.c.h.b16 %v1732
  %v2337 = vunpack.c.l.b16 %v1733
  %v2338 = vunpack.c.h.b16 %v1733
  %v2339 = vunpack.c.l.b16 %v1734
  %v2340 = vunpack.c.h.b16 %v1734
  %v2341 = vunpack.c.l.b16 %v1735
  %v2342 = vunpack.c.h.b16 %v1735
  %v2343 = vunpack.c.l.b16 %v1736
  %v2344 = vunpack.c.h.b16 %v1736
  %v2345 = vunpack.c.l.b16 %v1737
  %v2346 = vunpack.c.h.b16 %v1737
  %v2347 = vunpack.c.l.b16 %v1738
  %v2348 = vunpack.c.h.b16 %v1738
  %v2349 = vunpack.c.l.b16 %v1739
  %v2350 = vunpack.c.h.b16 %v1739
  %v2351 = vunpack.c.l.b16 %v1740
  %v2352 = vunpack.c.h.b16 %v1740
  %v2353 = vunpack.c.l.b16 %v1741
  %v2354 = vunpack.c.h.b16 %v1741
  %v2355 = vunpack.c.l.b16 %v1742
  %v2356 = vunpack.c.h.b16 %v1742
  %v2357 = vunpack.c.l.b16 %v1743
  %v2358 = vunpack.c.h.b16 %v1743
  %v2359 = vunpack.c.l.b16 %v1744
  %v2360 = vunpack.c.h.b16 %v1744
  %v2361 = vunpack.c.l.b16 %v1745
  %v2362 = vunpack.c.h.b16 %v1745
  %v2363 = vunpack.c.l.b16 %v1746
  %v2364 = vunpack.c.h.b16 %v1746
  %v2365 = vunpack.c.l.b16 %v1747
  %v2366 = vunpack.c.h.b16 %v1747
  %v2367 = vunpack.c.l.b16 %v1748
  %v2368 = vunpack.c.h.b16 %v1748
  %v2369 = vunpack.c.l.b16 %v1749
  %v2370 = vunpack.c.h.b16 %v1749
  %v2371 = vunpack.c.l.b16 %v1750
  %v2372 = vunpack.c.h.b16 %v1750
  %v2373 = vunpack.c.l.b16 %v1751
  %v2374 = vunpack.c.h.b16 %v1751
  %v2375 = vunpack.c.l.b16 %v1752
  %v2376 = vunpack.c.h.b16 %v1752
  %v2377 = vunpack.c.l.b16 %v1753
  %v2378 = vunpack.c.h.b16 %v1753
  %v2379 = vunpack.c.l.b16 %v1754
  %v2380 = vunpack.c.h.b16 %v1754
  %v2381 = vunpack.c.l.b16 %v1755
  %v2382 = vunpack.c.h.b16 %v1755
  %v2383 = vunpack.c.l.b16 %v1756
  %v2384 = vunpack.c.h.b16 %v1756
  %v2385 = vunpack.c.l.b16 %v1757
  %v2386 = vunpack.c.h.b16 %v1757
  %v2387 = vunpack.c.l.b16 %v1758
  %v2388 = vunpack.c.h.b16 %v1758
  %v2389 = vunpack.c.l.b16 %v1759
  %v2390 = vunpack.c.h.b16 %v1759
  %v2391 = vunpack.c.l.b16 %v1760
  %v2392 = vunpack.c.h.b16 %v1760
  %v2393 = vunpack.c.l.b16 %v1761
  %v2394 = vunpack.c.h.b16 %v1761
  %v2395 = vunpack.c.l.b16 %v1762
  %v2396 = vunpack.c.h.b16 %v1762
  %v2397 = vunpack.c.l.b16 %v1763
  %v2398 = vunpack.c.h.b16 %v1763
  %v2399 = vunpack.c.l.b16 %v1764
  %v2400 = vunpack.c.h.b16 %v1764
  %v2401 = vunpack.c.l.b16 %v1765
  %v2402 = vunpack.c.h.b16 %v1765
  %v2403 = vunpack.c.l.b16 %v1766
  %v2404 = vunpack.c.h.b16 %v1766
  %v2405 = vunpack.c.l.b16 %v1767
  %v2406 = vunpack.c.h.b16 %v1767
  %v2407 = vunpack.c.l.b16 %v1768
  %v2408 = vunpack.c.h.b16 %v1768
  %v2409 = vunpack.c.l.b16 %v1769
  %v2410 = vunpack.c.h.b16 %v1769
  %v2411 = vunpack.c.l.b16 %v1770
  %v2412 = vunpack.c.h.b16 %v1770
  %v2413 = vunpack.c.l.b16 %v1771
  %v2414 = vunpack.c.h.b16 %v1771
  %v2415 = vunpack.c.l.b16 %v1772
  %v2416 = vunpack.c.h.b16 %v1772
  %v2417 = vunpack.c.l.b16 %v1773
  %v2418 = vunpack.c.h.b16 %v1773
  %v2419 = vunpack.c.l.b16 %v1774
  %v2420 = vunpack.c.h.b16 %v1774
  %v2421 = vunpack.c.l.b16 %v1775
  %v2422 = vunpack.c.h.b16 %v1775
  %v2423 = vunpack.c.l.b16 %v1776
  %v2424 = vunpack.c.h.b16 %v1776
  %v2425 = vunpack.c.l.b16 %v1777
  %v2426 = vunpack.c.h.b16 %v1777
  %v2427 = vunpack.c.l.b16 %v1778
  %v2428 = vunpack.c.h.b16 %v1778
  %v2429 = vunpack.c.l.b16 %v1779
  %v2430 = vunpack.c.h.b16 %v1779
  %v2431 = vunpack.c.l.b16 %v1780
  %v2432 = vunpack.c.h.b16 %v1780
  %v2433 = vunpack.c.l.b16 %v1781
  %v2434 = vunpack.c.h.b16 %v1781
  %v2435 = vunpack.c.l.b16 %v1782
  %v2436 = vunpack.c.h.b16 %v1782
  %v2437 = vunpack.c.l.b16 %v1783
  %v2438 = vunpack.c.h.b16 %v1783
  %v2439 = vunpack.c.l.b16 %v1784
  %v2440 = vunpack.c.h.b16 %v1784
  %v2441 = vunpack.c.l.b16 %v1785
  %v2442 = vunpack.c.h.b16 %v1785
  %v2443 = vunpack.c.l.b16 %v1786
  %v2444 = vunpack.c.h.b16 %v1786
  %v2445 = vunpack.c.l.b16 %v1787
  %v2446 = vunpack.c.h.b16 %v1787
  %v2447 = vunpack.c.l.b16 %v1788
  %v2448 = vunpack.c.h.b16 %v1788
  %v2449 = vunpack.c.l.b16 %v1789
  %v2450 = vunpack.c.h.b16 %v1789
  %v2451 = vunpack.c.l.b16 %v1790
  %v2452 = vunpack.c.h.b16 %v1790
  %v2453 = vunpack.c.l.b16 %v1791
  %v2454 = vunpack.c.h.b16 %v1791
  %v2455 = vunpack.c.l.b16 %v1792
  %v2456 = vunpack.c.h.b16 %v1792
  %v2457 = vunpack.c.l.b16 %v1793
  %v2458 = vunpack.c.h.b16 %v1793
  %v2459 = vunpack.c.l.b16 %v1794
  %v2460 = vunpack.c.h.b16 %v1794
  %v2461 = vunpack.c.l.b16 %v1795
  %v2462 = vunpack.c.h.b16 %v1795
  %v2463 = vunpack.c.l.b16 %v1796
  %v2464 = vunpack.c.h.b16 %v1796
  %v2465 = vunpack.c.l.b16 %v1797
  %v2466 = vunpack.c.h.b16 %v1797
  %v2467 = vunpack.c.l.b16 %v1798
  %v2468 = vunpack.c.h.b16 %v1798
  %v2469 = vunpack.c.l.b16 %v1799
  %v2470 = vunpack.c.h.b16 %v1799
  %v2471 = vunpack.c.l.b16 %v1800
  %v2472 = vunpack.c.h.b16 %v1800
  %v2473 = vunpack.c.l.b16 %v1801
  %v2474 = vunpack.c.h.b16 %v1801
  %v2475 = vunpack.c.l.b16 %v1802
  %v2476 = vunpack.c.h.b16 %v1802
  %v2477 = vunpack.c.l.b16 %v1803
  %v2478 = vunpack.c.h.b16 %v1803
  %v2479 = vunpack.c.l.b16 %v1804
  %v2480 = vunpack.c.h.b16 %v1804
  %v2481 = vunpack.c.l.b16 %v1805
  %v2482 = vunpack.c.h.b16 %v1805
  %v2483 = vunpack.c.l.b16 %v1806
  %v2484 = vunpack.c.h.b16 %v1806
  %v2485 = vunpack.c.l.b16 %v1807
  %v2486 = vunpack.c.h.b16 %v1807
  %v2487 = vunpack.c.l.b16 %v1808
  %v2488 = vunpack.c.h.b16 %v1808
  %v2489 = vunpack.c.l.b16 %v1809
  %v2490 = vunpack.c.h.b16 %v1809
  %v2491 = vunpack.c.l.b16 %v1810
  %v2492 = vunpack.c.h.b16 %v1810
  %v2493 = vunpack.c.l.b16 %v1811
  %v2494 = vunpack.c.h.b16 %v1811
  %v2495 = vunpack.c.l.b16 %v1812
  %v2496 = vunpack.c.h.b16 %v1812
  %v2497 = vunpack.c.l.b16 %v1813
  %v2498 = vunpack.c.h.b16 %v1813
  %v2499 = vunpack.c.l.b16 %v1814
  %v2500 = vunpack.c.h.b16 %v1814
  %v2501 = vunpack.c.l.b16 %v1815
  %v2502 = vunpack.c.h.b16 %v1815
  %v2503 = vunpack.c.l.b16 %v1816
  %v2504 = vunpack.c.h.b16 %v1816
  %v2505 = vunpack.c.l.b16 %v1817
  %v2506 = vunpack.c.h.b16 %v1817
  %v2507 = vunpack.c.l.b16 %v1818
  %v2508 = vunpack.c.h.b16 %v1818
  %v2509 = vunpack.c.l.b16 %v1819
  %v2510 = vunpack.c.h.b16 %v1819
  %v2511 = vunpack.c.l.b16 %v1820
  %v2512 = vunpack.c.h.b16 %v1820
  %v2513 = vunpack.c.l.b16 %v1821
  %v2514 = vunpack.c.h.b16 %v1821
  %v2515 = vunpack.c.l.b16 %v1822
  %v2516 = vunpack.c.h.b16 %v1822
  %v2517 = vunpack.c.l.b16 %v1823
  %v2518 = vunpack.c.h.b16 %v1823
  %v2519 = vunpack.c.l.b16 %v1824
  %v2520 = vunpack.c.h.b16 %v1824
  %v2521 = vunpack.c.l.b16 %v1825
  %v2522 = vunpack.c.h.b16 %v1825
  %v2523 = vunpack.c.l.b16 %v1826
  %v2524 = vunpack.c.h.b16 %v1826
  %v2525 = vunpack.c.l.b16 %v1827
  %v2526 = vunpack.c.h.b16 %v1827
  %v2527 = vunpack.c.l.b16 %v1828
  %v2528 = vunpack.c.h.b16 %v1828
  %v2529 = vunpack.c.l.b16 %v1829
  %v2530 = vunpack.c.h.b16 %v1829
  %v2531 = vunpack.c.l.b16 %v1830
  %v2532 = vunpack.c.h.b16 %v1830
  %v2533 = vunpack.c.l.b16 %v1831
  %v2534 = vunpack.c.h.b16 %v1831
  %v2535 = vunpack.c.l.b16 %v1832
  %v2536 = vunpack.c.h.b16 %v1832
  %v2537 = vunpack.c.l.b16 %v1833
  %v2538 = vunpack.c.h.b16 %v1833
  %v2539 = vunpack.c.l.b16 %v1834
  %v2540 = vunpack.c.h.b16 %v1834
  %v2541 = vunpack.c.l.b16 %v1835
  %v2542 = vunpack.c.h.b16 %v1835
  %v2543 = vunpack.c.l.b16 %v1836
  %v2544 = vunpack.c.h.b16 %v1836
  %v2545 = vunpack.c.l.b16 %v1837
  %v2546 = vunpack.c.h.b16 %v1837
  %v2547 = vunpack.c.l.b16 %v1838
  %v2548 = vunpack.c.h.b16 %v1838
  %v2549 = vunpack.c.l.b16 %v1839
  %v2550 = vunpack.c.h.b16 %v1839
  %v2551 = vunpack.c.l.b16 %v1840
  %v2552 = vunpack.c.h.b16 %v1840
  %v2553 = vunpack.c.l.b16 %v1841
  %v2554 = vunpack.c.h.b16 %v1841
  %v2555 = vunpack.c.l.b16 %v1842
  %v2556 = vunpack.c.h.b16 %v1842
  %v2557 = vunpack.c.l.b16 %v1843
  %v2558 = vunpack.c.h.b16 %v1843
  %v2559 = vunpack.c.l.b16 %v1844
  %v2560 = vunpack.c.h.b16 %v1844
  %v2561 = vunpack.c.l.b16 %v1845
  %v2562 = vunpack.c.h.b16 %v1845
  %v2563 = vunpack.c.l.b16 %v1846
  %v2564 = vunpack.c.h.b16 %v1846
  %v2565 = vunpack.c.l.b16 %v1847
  %v2566 = vunpack.c.h.b16 %v1847
  %v2567 = vunpack.c.l.b16 %v1848
  %v2568 = vunpack.c.h.b16 %v1848
  %v2569 = vunpack.c.l.b16 %v1849
  %v2570 = vunpack.c.h.b16 %v1849
  %v2571 = vunpack.c.l.b16 %v1850
  %v2572 = vunpack.c.h.b16 %v1850
  %v2573 = vunpack.c.l.b16 %v1851
  %v2574 = vunpack.c.h.b16 %v1851
  %v2575 = vunpack.c.l.b16 %v1852
  %v2576 = vunpack.c.h.b16 %v1852
  %v2577 = vunpack.c.l.b16 %v1853
  %v2578 = vunpack.c.h.b16 %v1853
  %v2579 = vunpack.c.l.b16 %v1854
  %v2580 = vunpack.c.h.b16 %v1854
  %v2581 = vunpack.c.l.b16 %v1855
  %v2582 = vunpack.c.h.b16 %v1855
  %v2583 = vunpack.c.l.b16 %v1856
  %v2584 = vunpack.c.h.b16 %v1856
  %v2585 = vunpack.c.l.b16 %v1857
  %v2586 = vunpack.c.h.b16 %v1857
  %v2587 = vunpack.c.l.b16 %v1858
  %v2588 = vunpack.c.h.b16 %v1858
  %v2589 = vunpack.c.l.b16 %v1859
  %v2590 = vunpack.c.h.b16 %v1859
  %v2591 = vunpack.c.l.b16 %v1860
  %v2592 = vunpack.c.h.b16 %v1860
  %v2593 = vunpack.c.l.b16 %v1861
  %v2594 = vunpack.c.h.b16 %v1861
  %v2595 = vunpack.c.l.b16 %v1862
  %v2596 = vunpack.c.h.b16 %v1862
  %v2597 = vunpack.c.l.b16 %v1863
  %v2598 = vunpack.c.h.b16 %v1863
  %v2599 = vunpack.c.l.b16 %v1864
  %v2600 = vunpack.c.h.b16 %v1864
  %v2601 = vunpack.c.l.b16 %v1865
  %v2602 = vunpack.c.h.b16 %v1865
  %v2603 = vunpack.c.l.b16 %v1866
  %v2604 = vunpack.c.h.b16 %v1866
  %v2605 = vunpack.c.l.b16 %v1867
  %v2606 = vunpack.c.h.b16 %v1867
  %v2607 = vunpack.c.l.b16 %v1868
  %v2608 = vunpack.c.h.b16 %v1868
  %v2609 = vunpack.c.l.b16 %v1869
  %v2610 = vunpack.c.h.b16 %v1869
  %v2611 = vunpack.c.l.b16 %v1870
  %v2612 = vunpack.c.h.b16 %v1870
  %v2613 = vunpack.c.l.b16 %v1871
  %v2614 = vunpack.c.h.b16 %v1871
  %v2615 = vunpack.c.l.b16 %v1872
  %v2616 = vunpack.c.h.b16 %v1872
  %v2617 = vunpack.c.l.b16 %v1873
  %v2618 = vunpack.c.h.b16 %v1873
  %v2619 = vunpack.c.l.b16 %v1874
  %v2620 = vunpack.c.h.b16 %v1874
  %v2621 = vunpack.c.l.b16 %v1875
  %v2622 = vunpack.c.h.b16 %v1875
  %v2623 = vunpack.c.l.b16 %v1876
  %v2624 = vunpack.c.h.b16 %v1876
  %v2625 = vunpack.c.l.b16 %v1877
  %v2626 = vunpack.c.h.b16 %v1877
  %v2627 = vunpack.c.l.b16 %v1878
  %v2628 = vunpack.c.h.b16 %v1878
  %v2629 = vunpack.c.l.b16 %v1879
  %v2630 = vunpack.c.h.b16 %v1879
  %v2631 = vunpack.c.l.b16 %v1880
  %v2632 = vunpack.c.h.b16 %v1880
  %v2633 = vunpack.c.l.b16 %v1881
  %v2634 = vunpack.c.h.b16 %v1881
  %v2635 = vunpack.c.l.b16 %v1882
  %v2636 = vunpack.c.h.b16 %v1882
  %v2637 = vunpack.c.l.b16 %v1883
  %v2638 = vunpack.c.h.b16 %v1883
  %v2639 = vunpack.c.l.b16 %v1884
  %v2640 = vunpack.c.h.b16 %v1884
  %v2641 = vunpack.c.l.b16 %v1885
  %v2642 = vunpack.c.h.b16 %v1885
  %v2643 = vunpack.c.l.b16 %v1886
  %v2644 = vunpack.c.h.b16 %v1886
  %v2645 = vunpack.c.l.b16 %v1887
  %v2646 = vunpack.c.h.b16 %v1887
  %v2647 = vunpack.c.l.b16 %v1888
  %v2648 = vunpack.c.h.b16 %v1888
  %v2649 = vunpack.c.l.b16 %v1889
  %v2650 = vunpack.c.h.b16 %v1889
  %v2651 = vunpack.c.l.b16 %v1890
  %v2652 = vunpack.c.h.b16 %v1890
  %v2653 = vunpack.c.l.b16 %v1891
  %v2654 = vunpack.c.h.b16 %v1891
  %v2655 = vunpack.c.l.b16 %v1892
  %v2656 = vunpack.c.h.b16 %v1892
  %v2657 = vunpack.c.l.b16 %v1893
  %v2658 = vunpack.c.h.b16 %v1893
  %v2659 = vunpack.c.l.b16 %v1894
  %v2660 = vunpack.c.h.b16 %v1894
  %v2661 = vunpack.c.l.b16 %v1895
  %v2662 = vunpack.c.h.b16 %v1895
  %v2663 = vunpack.c.l.b16 %v1896
  %v2664 = vunpack.c.h.b16 %v1896
  %v2665 = vunpack.c.l.b16 %v1897
  %v2666 = vunpack.c.h.b16 %v1897
  %v2667 = vunpack.c.l.b16 %v1898
  %v2668 = vunpack.c.h.b16 %v1898
  %v2669 = vunpack.c.l.b16 %v1899
  %v2670 = vunpack.c.h.b16 %v1899
  %v2671 = vunpack.c.l.b16 %v1900
  %v2672 = vunpack.c.h.b16 %v1900
  %v2673 = vunpack.c.l.b16 %v1901
  %v2674 = vunpack.c.h.b16 %v1901
  %v2675 = vunpack.c.l.b16 %v1902
  %v2676 = vunpack.c.h.b16 %v1902
  %v2677 = vunpack.c.l.b16 %v1903
  %v2678 = vunpack.c.h.b16 %v1903
  %v2679 = vunpack.c.l.b16 %v1904
  %v2680 = vunpack.c.h.b16 %v1904
  %v2681 = vunpack.c.l.b16 %v1905
  %v2682 = vunpack.c.h.b16 %v1905
  %v2683 = vunpack.c.l.b16 %v1906
  %v2684 = vunpack.c.h.b16 %v1906
  %v2685 = vunpack.c.l.b16 %v1907
  %v2686 = vunpack.c.h.b16 %v1907
  %v2687 = vunpack.c.l.b16 %v1908
  %v2688 = vunpack.c.h.b16 %v1908
  %v2689 = vunpack.c.l.b16 %v1909
  %v2690 = vunpack.c.h.b16 %v1909
  %v2691 = vunpack.c.l.b16 %v1910
  %v2692 = vunpack.c.h.b16 %v1910
  %v2693 = vunpack.c.l.b16 %v1911
  %v2694 = vunpack.c.h.b16 %v1911
  %v2695 = vunpack.c.l.b16 %v1912
  %v2696 = vunpack.c.h.b16 %v1912
  %v2697 = vunpack.c.l.b16 %v1913
  %v2698 = vunpack.c.h.b16 %v1913
  %v2699 = vunpack.c.l.b16 %v1914
  %v2700 = vunpack.c.h.b16 %v1914
  %v2701 = vunpack.c.l.b16 %v1915
  %v2702 = vunpack.c.h.b16 %v1915
  %v2703 = vunpack.c.l.b16 %v1916
  %v2704 = vunpack.c.h.b16 %v1916
  %v2705 = vunpack.c.l.b16 %v1917
  %v2706 = vunpack.c.h.b16 %v1917
  %v2707 = vunpack.c.l.b16 %v1918
  %v2708 = vunpack.c.h.b16 %v1918
  %v2709 = vpack.c.b16 %v2201, %v2197
  %v2710 = vpack.c.b16 %v2202, %v2198
  %v2711 = vpack.c.b16 %v2203, %v2199
  %v2712 = vpack.c.b16 %v2204, %v2200
  %v2713 = vpack.c.b16 %v2209, %v2205
  %v2714 = vpack.c.b16 %v2210, %v2206
  %v2715 = vpack.c.b16 %v2211, %v2207
  %v2716 = vpack.c.b16 %v2212, %v2208
  %v2717 = vpack.c.b16 %v2217, %v2213
  %v2718 = vpack.c.b16 %v2218, %v2214
  %v2719 = vpack.c.b16 %v2219, %v2215
  %v2720 = vpack.c.b16 %v2220, %v2216
  %v2721 = vpack.c.b16 %v2225, %v2221
  %v2722 = vpack.c.b16 %v2226, %v2222
  %v2723 = vpack.c.b16 %v2227, %v2223
  %v2724 = vpack.c.b16 %v2228, %v2224
  %v2725 = vpack.c.b16 %v2233, %v2229
  %v2726 = vpack.c.b16 %v2234, %v2230
  %v2727 = vpack.c.b16 %v2235, %v2231
  %v2728 = vpack.c.b16 %v2236, %v2232
  %v2729 = vpack.c.b16 %v2241, %v2237
  %v2730 = vpack.c.b16 %v2242, %v2238
  %v2731 = vpack.c.b16 %v2243, %v2239
  %v2732 = vpack.c.b16 %v2244, %v2240
  %v2733 = vpack.c.b16 %v2249, %v2245
  %v2734 = vpack.c.b16 %v2250, %v2246
  %v2735 = vpack.c.b16 %v2251, %v2247
  %v2736 = vpack.c.b16 %v2252, %v2248
  %v2737 = vpack.c.b16 %v2257, %v2253
  %v2738 = vpack.c.b16 %v2258, %v2254
  %v2739 = vpack.c.b16 %v2259, %v2255
  %v2740 = vpack.c.b16 %v2260, %v2256
  %v2741 = vpack.c.b16 %v2265, %v2261
  %v2742 = vpack.c.b16 %v2266, %v2262
  %v2743 = vpack.c.b16 %v2267, %v2263
  %v2744 = vpack.c.b16 %v2268, %v2264
  %v2745 = vpack.c.b16 %v2273, %v2269
  %v2746 = vpack.c.b16 %v2274, %v2270
  %v2747 = vpack.c.b16 %v2275, %v2271
  %v2748 = vpack.c.b16 %v2276, %v2272
  %v2749 = vpack.c.b16 %v2281, %v2277
  %v2750 = vpack.c.b16 %v2282, %v2278
  %v2751 = vpack.c.b16 %v2283, %v2279
  %v2752 = vpack.c.b16 %v2284, %v2280
  %v2753 = vpack.c.b16 %v2289, %v2285
  %v2754 = vpack.c.b16 %v2290, %v2286
  %v2755 = vpack.c.b16 %v2291, %v2287
  %v2756 = vpack.c.b16 %v2292, %v2288
  %v2757 = vpack.c.b16 %v2297, %v2293
  %v2758 = vpack.c.b16 %v2298, %v2294
  %v2759 = vpack.c.b16 %v2299, %v2295
  %v2760 = vpack.c.b16 %v2300, %v2296
  %v2761 = vpack.c.b16 %v2305, %v2301
  %v2762 = vpack.c.b16 %v2306, %v2302
  %v2763 = vpack.c.b16 %v2307, %v2303
  %v2764 = vpack.c.b16 %v2308, %v2304
  %v2765 = vpack.c.b16 %v2313, %v2309
  %v2766 = vpack.c.b16 %v2314, %v2310
  %v2767 = vpack.c.b16 %v2315, %v2311
  %v2768 = vpack.c.b16 %v2316, %v2312
  %v2769 = vpack.c.b16 %v2321, %v2317
  %v2770 = vpack.c.b16 %v2322, %v2318
  %v2771 = vpack.c.b16 %v2323, %v2319
  %v2772 = vpack.c.b16 %v2324, %v2320
  %v2773 = vpack.c.b16 %v2329, %v2325
  %v2774 = vpack.c.b16 %v2330, %v2326
  %v2775 = vpack.c.b16 %v2331, %v2327
  %v2776 = vpack.c.b16 %v2332, %v2328
  %v2777 = vpack.c.b16 %v2337, %v2333
  %v2778 = vpack.c.b16 %v2338, %v2334
  %v2779 = vpack.c.b16 %v2339, %v2335
  %v2780 = vpack.c.b16 %v2340, %v2336
  %v2781 = vpack.c.b16 %v2345, %v2341
  %v2782 = vpack.c.b16 %v2346, %v2342
  %v2783 = vpack.c.b16 %v2347, %v2343
  %v2784 = vpack.c.b16 %v2348, %v2344
  %v2785 = vpack.c.b16 %v2353, %v2349
  %v2786 = vpack.c.b16 %v2354, %v2350
  %v2787 = vpack.c.b16 %v2355, %v2351
  %v2788 = vpack.c.b16 %v2356, %v2352
  %v2789 = vpack.c.b16 %v2361, %v2357
  %v2790 = vpack.c.b16 %v2362, %v2358
  %v2791 = vpack.c.b16 %v2363, %v2359
  %v2792 = vpack.c.b16 %v2364, %v2360
  %v2793 = vpack.c.b16 %v2369, %v2365
  %v2794 = vpack.c.b16 %v2370, %v2366
  %v2795 = vpack.c.b16 %v2371, %v2367
  %v2796 = vpack.c.b16 %v2372, %v2368
  %v2797 = vpack.c.b16 %v2377, %v2373
  %v2798 = vpack.c.b16 %v2378, %v2374
  %v2799 = vpack.c.b16 %v2379, %v2375
  %v2800 = vpack.c.b16 %v2380, %v2376
  %v2801 = vpack.c.b16 %v2385, %v2381
  %v2802 = vpack.c.b16 %v2386, %v2382
  %v2803 = vpack.c.b16 %v2387, %v2383
  %v2804 = vpack.c.b16 %v2388, %v2384
  %v2805 = vpack.c.b16 %v2393, %v2389
  %v2806 = vpack.c.b16 %v2394, %v2390
  %v2807 = vpack.c.b16 %v2395, %v2391
  %v2808 = vpack.c.b16 %v2396, %v2392
  %v2809 = vpack.c.b16 %v2401, %v2397
  %v2810 = vpack.c.b16 %v2402, %v2398
  %v2811 = vpack.c.b16 %v2403, %v2399
  %v2812 = vpack.c.b16 %v2404, %v2400
  %v2813 = vpack.c.b16 %v2409, %v2405
  %v2814 = vpack.c.b16 %v2410, %v2406
  %v2815 = vpack.c.b16 %v2411, %v2407
  %v2816 = vpack.c.b16 %v2412, %v2408
  %v2817 = vpack.c.b16 %v2417, %v2413
  %v2818 = vpack.c.b16 %v2418, %v2414
  %v2819 = vpack.c.b16 %v2419, %v2415
  %v2820 = vpack.c.b16 %v2420, %v2416
  %v2821 = vpack.c.b16 %v2425, %v2421
  %v2822 = vpack.c.b16 %v2426, %v2422
  %v2823 = vpack.c.b16 %v2427, %v2423
  %v2824 = vpack.c.b16 %v2428, %v2424
  %v2825 = vpack.c.b16 %v2433, %v2429
  %v2826 = vpack.c.b16 %v2434, %v2430
  %v2827 = vpack.c.b16 %v2435, %v2431
  %v2828 = vpack.c.b16 %v2436, %v2432
  %v2829 = vpack.c.b16 %v2441, %v2437
  %v2830 = vpack.c.b16 %v2442, %v2438
  %v2831 = vpack.c.b16 %v2443, %v2439
  %v2832 = vpack.c.b16 %v2444, %v2440
  %v2833 = vpack.c.b16 %v2449, %v2445
  %v2834 = vpack.c.b16 %v2450, %v2446
  %v2835 = vpack.c.b16 %v2451, %v2447
  %v2836 = vpack.c.b16 %v2452, %v2448
  %v2837 = vpack.c.b16 %v2457, %v2453
  %v2838 = vpack.c.b16 %v2458, %v2454
  %v2839 = vpack.c.b16 %v2459, %v2455
  %v2840 = vpack.c.b16 %v2460, %v2456
  %v2841 = vpack.c.b16 %v2465, %v2461
  %v2842 = vpack.c.b16 %v2466, %v2462
  %v2843 = vpack.c.b16 %v2467, %v2463
  %v2844 = vpack.c.b16 %v2468, %v2464
  %v2845 = vpack.c.b16 %v2473, %v2469
  %v2846 = vpack.c.b16 %v2474, %v2470
  %v2847 = vpack.c.b16 %v2475, %v2471
  %v2848 = vpack.c.b16 %v2476, %v2472
  %v2849 = vpack.c.b16 %v2481, %v2477
  %v2850 = vpack.c.b16 %v2482, %v2478
  %v2851 = vpack.c.b16 %v2483, %v2479
  %v2852 = vpack.c.b16 %v2484, %v2480
  %v2853 = vpack.c.b16 %v2489, %v2485
  %v2854 = vpack.c.b16 %v2490, %v2486
  %v2855 = vpack.c.b16 %v2491, %v2487
  %v2856 = vpack.c.b16 %v2492, %v2488
  %v2857 = vpack.c.b16 %v2497, %v2493
  %v2858 = vpack.c.b16 %v2498, %v2494
  %v2859 = vpack.c.b16 %v2499, %v2495
  %v2860 = vpack.c.b16 %v2500, %v2496
  %v2861 = vpack.c.b16 %v2505, %v2501
  %v2862 = vpack.c.b16 %v2506, %v2502
  %v2863 = vpack.c.b16 %v2507, %v2503
  %v2864 = vpack.c.b16 %v2508, %v2504
  %v2865 = vpack.c.b16 %v2513, %v2509
  %v2866 = vpack.c.b16 %v2514, %v2510
  %v2867 = vpack.c.b16 %v2515, %v2511
  %v2868 = vpack.c.b16 %v2516, %v2512
  %v2869 = vpack.c.b16 %v2521, %v2517
  %v2870 = vpack.c.b16 %v2522, %v2518
  %v2871 = vpack.c.b16 %v2523, %v2519
  %v2872 = vpack.c.b16 %v2524, %v2520
  %v2873 = vpack.c.b16 %v2529, %v2525
  %v2874 = vpack.c.b16 %v2530, %v2526
  %v2875 = vpack.c.b16 %v2531, %v2527
  %v2876 = vpack.c.b16 %v2532, %v2528
  %v2877 = vpack.c.b16 %v2537, %v2533
  %v2878 = vpack.c.b16 %v2538, %v2534
  %v2879 = vpack.c.b16 %v2539, %v2535
  %v2880 = vpack.c.b16 %v2540, %v2536
  %v2881 = vpack.c.b16 %v2545, %v2541
  %v2882 = vpack.c.b16 %v2546, %v2542
  %v2883 = vpack.c.b16 %v2547, %v2543
  %v2884 = vpack.c.b16 %v2548, %v2544
  %v2885 = vpack.c.b16 %v2553, %v2549
  %v2886 = vpack.c.b16 %v2554, %v2550
  %v2887 = vpack.c.b16 %v2555, %v2551
  %v2888 = vpack.c.b16 %v2556, %v2552
  %v2889 = vpack.c.b16 %v2561, %v2557
  %v2890 = vpack.c.b16 %v2562, %v2558
  %v2891 = vpack.c.b16 %v2563, %v2559
  %v2892 = vpack.c.b16 %v2564, %v2560
  %v2893 = vpack.c.b16 %v2569, %v2565
  %v2894 = vpack.c.b16 %v2570, %v2566
  %v2895 = vpack.c.b16 %v2571, %v2567
  %v2896 = vpack.c.b16 %v2572, %v2568
  %v2897 = vpack.c.b16 %v2577, %v2573
  %v2898 = vpack.c.b16 %v2578, %v2574
  %v2899 = vpack.c.b16 %v2579, %v2575
  %v2900 = vpack.c.b16 %v2580, %v2576
  %v2901 = vpack.c.b16 %v2585, %v2581
  %v2902 = vpack.c.b16 %v2586, %v2582
  %v2903 = vpack.c.b16 %v2587, %v2583
  %v2904 = vpack.c.b16 %v2588, %v2584
  %v2905 = vpack.c.b16 %v2593, %v2589
  %v2906 = vpack.c.b16 %v2594, %v2590
  %v2907 = vpack.c.b16 %v2595, %v2591
  %v2908 = vpack.c.b16 %v2596, %v2592
  %v2909 = vpack.c.b16 %v2601, %v2597
  %v2910 = vpack.c.b16 %v2602, %v2598
  %v2911 = vpack.c.b16 %v2603, %v2599
  %v2912 = vpack.c.b16 %v2604, %v2600
  %v2913 = vpack.c.b16 %v2609, %v2605
  %v2914 = vpack.c.b16 %v2610, %v2606
  %v2915 = vpack.c.b16 %v2611, %v2607
  %v2916 = vpack.c.b16 %v2612, %v2608
  %v2917 = vpack.c.b16 %v2617, %v2613
  %v2918 = vpack.c.b16 %v2618, %v2614
  %v2919 = vpack.c.b16 %v2619, %v2615
  %v2920 = vpack.c.b16 %v2620, %v2616
  %v2921 = vpack.c.b16 %v2625, %v2621
  %v2922 = vpack.c.b16 %v2626, %v2622
  %v2923 = vpack.c.b16 %v2627, %v2623
  %v2924 = vpack.c.b16 %v2628, %v2624
  %v2925 = vpack.c.b16 %v2633, %v2629
  %v2926 = vpack.c.b16 %v2634, %v2630
  %v2927 = vpack.c.b16 %v2635, %v2631
  %v2928 = vpack.c.b16 %v2636, %v2632
  %v2929 = vpack.c.b16 %v2641, %v2637
  %v2930 = vpack.c.b16 %v2642, %v2638
  %v2931 = vpack.c.b16 %v2643, %v2639
  %v2932 = vpack.c.b16 %v2644, %v2640
  %v2933 = vpack.c.b16 %v2649, %v2645
  %v2934 = vpack.c.b16 %v2650, %v2646
  %v2935 = vpack.c.b16 %v2651, %v2647
  %v2936 = vpack.c.b16 %v2652, %v2648
  %v2937 = vpack.c.b16 %v2657, %v2653
  %v2938 = vpack.c.b16 %v2658, %v2654
  %v2939 = vpack.c.b16 %v2659, %v2655
  %v2940 = vpack.c.b16 %v2660, %v2656
  %v2941 = vpack.c.b16 %v2665, %v2661
  %v2942 = vpack.c.b16 %v2666, %v2662
  %v2943 = vpack.c.b16 %v2667, %v2663
  %v2944 = vpack.c.b16 %v2668, %v2664
  %v2945 = vpack.c.b16 %v2673, %v2669
  %v2946 = vpack.c.b16 %v2674, %v2670
  %v2947 = vpack.c.b16 %v2675, %v2671
  %v2948 = vpack.c.b16 %v2676, %v2672
  %v2949 = vpack.c.b16 %v2681, %v2677
  %v2950 = vpack.c.b16 %v2682, %v2678
  %v2951 = vpack.c.b16 %v2683, %v2679
  %v2952 = vpack.c.b16 %v2684, %v2680
  %v2953 = vpack.c.b16 %v2689, %v2685
  %v2954 = vpack.c.b16 %v2690, %v2686
  %v2955 = vpack.c.b16 %v2691, %v2687
  %v2956 = vpack.c.b16 %v2692, %v2688
  %v2957 = vpack.c.b16 %v2697, %v2693
  %v2958 = vpack.c.b16 %v2698, %v2694
  %v2959 = vpack.c.b16 %v2699, %v2695
  %v2960 = vpack.c.b16 %v2700, %v2696
  %v2961 = vpack.c.b16 %v2705, %v2701
  %v2962 = vpack.c.b16 %v2706, %v2702
  %v2963 = vpack.c.b16 %v2707, %v2703
  %v2964 = vpack.c.b16 %v2708, %v2704
  %3221 = vmatprep.subr.bf16.mxu0 %v2738
  %3222 = vmatpush1.bf16.msra.mxu0 %v2737
  %3223 = vmatprep.subr.bf16.mxu0 %v2734
  %3224 = vmatpush1.bf16.msra.mxu0 %v2733
  %3225 = vmatprep.subr.bf16.mxu0 %v2730
  %3226 = vmatpush1.bf16.msra.mxu0 %v2729
  %3227 = vmatprep.subr.bf16.mxu0 %v2726
  %3228 = vmatpush1.bf16.msra.mxu0 %v2725
  %3229 = vmatprep.subr.bf16.mxu0 %v2722
  %3230 = vmatpush1.bf16.msra.mxu0 %v2721
  %3231 = vmatprep.subr.bf16.mxu0 %v2718
  %3232 = vmatpush1.bf16.msra.mxu0 %v2717
  %3233 = vmatprep.subr.bf16.mxu0 %v2714
  %3234 = vmatpush1.bf16.msra.mxu0 %v2713
  %3235 = vmatprep.subr.bf16.mxu0 %v2710
  %3236 = vmatpush1.bf16.msra.mxu0 %v2709
  %3237 = vmatprep.subr.bf16.mxu0 %v2770
  %3238 = vmatpush2.bf16.msra.mxu0 %v2769
  %3239 = vmatprep.subr.bf16.mxu0 %v2766
  %3240 = vmatpush2.bf16.msra.mxu0 %v2765
  %3241 = vmatprep.subr.bf16.mxu0 %v2762
  %3242 = vmatpush2.bf16.msra.mxu0 %v2761
  %3243 = vmatprep.subr.bf16.mxu0 %v2758
  %3244 = vmatpush2.bf16.msra.mxu0 %v2757
  %3245 = vmatprep.subr.bf16.mxu0 %v2754
  %3246 = vmatpush2.bf16.msra.mxu0 %v2753
  %3247 = vmatprep.subr.bf16.mxu0 %v2750
  %3248 = vmatpush2.bf16.msra.mxu0 %v2749
  %3249 = vmatprep.subr.bf16.mxu0 %v2746
  %3250 = vmatpush2.bf16.msra.mxu0 %v2745
  %3251 = vmatprep.subr.bf16.mxu0 %v2742
  %3252 = vmatpush2.bf16.msra.mxu0 %v2741
  %3253 = vmatprep.mubr.bf16.mxu0 %v1536
  %3254 = vmatmul.mubr.bf16.gmra.mxu0 %v1535
  %v3255 = vpop.f32.mrf.mxu0
  %v3256 = vadd.f32 %v1924, %v3255
  %v3257 = vpop.f32.mrf.mxu0
  %v3258 = vadd.f32 %v1928, %v3257
  %v3259 = vpop.f32.mrf.mxu0
  %v3260 = vadd.f32 %v1924, %v3259
  %v3261 = vpop.f32.mrf.mxu0
  %v3262 = vadd.f32 %v1928, %v3261
  %3263 = vmatprep.mubr.bf16.mxu0 %v1544
  %3264 = vmatmul.mubr.bf16.gmra.mxu0 %v1543
  %v3265 = vpop.f32.mrf.mxu0
  %v3266 = vadd.f32 %v1924, %v3265
  %v3267 = vpop.f32.mrf.mxu0
  %v3268 = vadd.f32 %v1928, %v3267
  %v3269 = vpop.f32.mrf.mxu0
  %v3270 = vadd.f32 %v1924, %v3269
  %v3271 = vpop.f32.mrf.mxu0
  %v3272 = vadd.f32 %v1928, %v3271
  %3273 = vmatprep.mubr.bf16.mxu0 %v1552
  %3274 = vmatmul.mubr.bf16.gmra.mxu0 %v1551
  %v3275 = vpop.f32.mrf.mxu0
  %v3276 = vadd.f32 %v1924, %v3275
  %v3277 = vpop.f32.mrf.mxu0
  %v3278 = vadd.f32 %v1928, %v3277
  %v3279 = vpop.f32.mrf.mxu0
  %v3280 = vadd.f32 %v1924, %v3279
  %v3281 = vpop.f32.mrf.mxu0
  %v3282 = vadd.f32 %v1928, %v3281
  %3283 = vmatprep.mubr.bf16.mxu0 %v1560
  %3284 = vmatmul.mubr.bf16.gmra.mxu0 %v1559
  %v3285 = vpop.f32.mrf.mxu0
  %v3286 = vadd.f32 %v1924, %v3285
  %v3287 = vpop.f32.mrf.mxu0
  %v3288 = vadd.f32 %v1928, %v3287
  %v3289 = vpop.f32.mrf.mxu0
  %v3290 = vadd.f32 %v1924, %v3289
  %v3291 = vpop.f32.mrf.mxu0
  %v3292 = vadd.f32 %v1928, %v3291
  %3293 = vmatprep.mubr.bf16.mxu0 %v1568
  %3294 = vmatmul.mubr.bf16.gmra.mxu0 %v1567
  %v3295 = vpop.f32.mrf.mxu0
  %v3296 = vadd.f32 %v1924, %v3295
  %v3297 = vpop.f32.mrf.mxu0
  %v3298 = vadd.f32 %v1928, %v3297
  %v3299 = vpop.f32.mrf.mxu0
  %v3300 = vadd.f32 %v1924, %v3299
  %v3301 = vpop.f32.mrf.mxu0
  %v3302 = vadd.f32 %v1928, %v3301
  %3303 = vmatprep.mubr.bf16.mxu0 %v1576
  %3304 = vmatmul.mubr.bf16.gmra.mxu0 %v1575
  %v3305 = vpop.f32.mrf.mxu0
  %v3306 = vadd.f32 %v1924, %v3305
  %v3307 = vpop.f32.mrf.mxu0
  %v3308 = vadd.f32 %v1928, %v3307
  %v3309 = vpop.f32.mrf.mxu0
  %v3310 = vadd.f32 %v1924, %v3309
  %v3311 = vpop.f32.mrf.mxu0
  %v3312 = vadd.f32 %v1928, %v3311
  %3313 = vmatprep.mubr.bf16.mxu0 %v1584
  %3314 = vmatmul.mubr.bf16.gmra.mxu0 %v1583
  %v3315 = vpop.f32.mrf.mxu0
  %v3316 = vadd.f32 %v1924, %v3315
  %v3317 = vpop.f32.mrf.mxu0
  %v3318 = vadd.f32 %v1928, %v3317
  %v3319 = vpop.f32.mrf.mxu0
  %v3320 = vadd.f32 %v1924, %v3319
  %v3321 = vpop.f32.mrf.mxu0
  %v3322 = vadd.f32 %v1928, %v3321
  %3323 = vmatprep.mubr.bf16.mxu0 %v1592
  %3324 = vmatmul.mubr.bf16.gmra.mxu0 %v1591
  %v3325 = vpop.f32.mrf.mxu0
  %v3326 = vadd.f32 %v1924, %v3325
  %v3327 = vpop.f32.mrf.mxu0
  %v3328 = vadd.f32 %v1928, %v3327
  %v3329 = vpop.f32.mrf.mxu0
  %v3330 = vadd.f32 %v1924, %v3329
  %v3331 = vpop.f32.mrf.mxu0
  %v3332 = vadd.f32 %v1928, %v3331
  %3333 = vmatprep.mubr.bf16.mxu0 %v1600
  %3334 = vmatmul.mubr.bf16.gmra.mxu0 %v1599
  %v3335 = vpop.f32.mrf.mxu0
  %v3336 = vadd.f32 %v1924, %v3335
  %v3337 = vpop.f32.mrf.mxu0
  %v3338 = vadd.f32 %v1928, %v3337
  %v3339 = vpop.f32.mrf.mxu0
  %v3340 = vadd.f32 %v1924, %v3339
  %v3341 = vpop.f32.mrf.mxu0
  %v3342 = vadd.f32 %v1928, %v3341
  %3343 = vmatprep.mubr.bf16.mxu0 %v1608
  %3344 = vmatmul.mubr.bf16.gmra.mxu0 %v1607
  %v3345 = vpop.f32.mrf.mxu0
  %v3346 = vadd.f32 %v1924, %v3345
  %v3347 = vpop.f32.mrf.mxu0
  %v3348 = vadd.f32 %v1928, %v3347
  %v3349 = vpop.f32.mrf.mxu0
  %v3350 = vadd.f32 %v1924, %v3349
  %v3351 = vpop.f32.mrf.mxu0
  %v3352 = vadd.f32 %v1928, %v3351
  %3353 = vmatprep.mubr.bf16.mxu0 %v1616
  %3354 = vmatmul.mubr.bf16.gmra.mxu0 %v1615
  %v3355 = vpop.f32.mrf.mxu0
  %v3356 = vadd.f32 %v1924, %v3355
  %v3357 = vpop.f32.mrf.mxu0
  %v3358 = vadd.f32 %v1928, %v3357
  %v3359 = vpop.f32.mrf.mxu0
  %v3360 = vadd.f32 %v1924, %v3359
  %v3361 = vpop.f32.mrf.mxu0
  %v3362 = vadd.f32 %v1928, %v3361
  %3363 = vmatprep.mubr.bf16.mxu0 %v1624
  %3364 = vmatmul.mubr.bf16.gmra.mxu0 %v1623
  %v3365 = vpop.f32.mrf.mxu0
  %v3366 = vadd.f32 %v1924, %v3365
  %v3367 = vpop.f32.mrf.mxu0
  %v3368 = vadd.f32 %v1928, %v3367
  %v3369 = vpop.f32.mrf.mxu0
  %v3370 = vadd.f32 %v1924, %v3369
  %v3371 = vpop.f32.mrf.mxu0
  %v3372 = vadd.f32 %v1928, %v3371
  %3373 = vmatprep.mubr.bf16.mxu0 %v1632
  %3374 = vmatmul.mubr.bf16.gmra.mxu0 %v1631
  %v3375 = vpop.f32.mrf.mxu0
  %v3376 = vadd.f32 %v1924, %v3375
  %v3377 = vpop.f32.mrf.mxu0
  %v3378 = vadd.f32 %v1928, %v3377
  %v3379 = vpop.f32.mrf.mxu0
  %v3380 = vadd.f32 %v1924, %v3379
  %v3381 = vpop.f32.mrf.mxu0
  %v3382 = vadd.f32 %v1928, %v3381
  %3383 = vmatprep.mubr.bf16.mxu0 %v1640
  %3384 = vmatmul.mubr.bf16.gmra.mxu0 %v1639
  %v3385 = vpop.f32.mrf.mxu0
  %v3386 = vadd.f32 %v1924, %v3385
  %v3387 = vpop.f32.mrf.mxu0
  %v3388 = vadd.f32 %v1928, %v3387
  %v3389 = vpop.f32.mrf.mxu0
  %v3390 = vadd.f32 %v1924, %v3389
  %v3391 = vpop.f32.mrf.mxu0
  %v3392 = vadd.f32 %v1928, %v3391
  %3393 = vmatprep.mubr.bf16.mxu0 %v1648
  %3394 = vmatmul.mubr.bf16.gmra.mxu0 %v1647
  %v3395 = vpop.f32.mrf.mxu0
  %v3396 = vadd.f32 %v1924, %v3395
  %v3397 = vpop.f32.mrf.mxu0
  %v3398 = vadd.f32 %v1928, %v3397
  %v3399 = vpop.f32.mrf.mxu0
  %v3400 = vadd.f32 %v1924, %v3399
  %v3401 = vpop.f32.mrf.mxu0
  %v3402 = vadd.f32 %v1928, %v3401
  %3403 = vmatprep.mubr.bf16.mxu0 %v1656
  %3404 = vmatmul.mubr.bf16.gmra.mxu0 %v1655
  %v3405 = vpop.f32.mrf.mxu0
  %v3406 = vadd.f32 %v1924, %v3405
  %v3407 = vpop.f32.mrf.mxu0
  %v3408 = vadd.f32 %v1928, %v3407
  %v3409 = vpop.f32.mrf.mxu0
  %v3410 = vadd.f32 %v1924, %v3409
  %v3411 = vpop.f32.mrf.mxu0
  %v3412 = vadd.f32 %v1928, %v3411
  %3413 = vdwg.mxu0
  %3414 = vmatprep.subr.bf16.mxu0 %v2802
  %3415 = vmatpush1.bf16.msra.mxu0 %v2801
  %3416 = vmatprep.subr.bf16.mxu0 %v2798
  %3417 = vmatpush1.bf16.msra.mxu0 %v2797
  %3418 = vmatprep.subr.bf16.mxu0 %v2794
  %3419 = vmatpush1.bf16.msra.mxu0 %v2793
  %3420 = vmatprep.subr.bf16.mxu0 %v2790
  %3421 = vmatpush1.bf16.msra.mxu0 %v2789
  %3422 = vmatprep.subr.bf16.mxu0 %v2786
  %3423 = vmatpush1.bf16.msra.mxu0 %v2785
  %3424 = vmatprep.subr.bf16.mxu0 %v2782
  %3425 = vmatpush1.bf16.msra.mxu0 %v2781
  %3426 = vmatprep.subr.bf16.mxu0 %v2778
  %3427 = vmatpush1.bf16.msra.mxu0 %v2777
  %3428 = vmatprep.subr.bf16.mxu0 %v2774
  %3429 = vmatpush1.bf16.msra.mxu0 %v2773
  %3430 = vmatprep.subr.bf16.mxu0 %v2834
  %3431 = vmatpush2.bf16.msra.mxu0 %v2833
  %3432 = vmatprep.subr.bf16.mxu0 %v2830
  %3433 = vmatpush2.bf16.msra.mxu0 %v2829
  %3434 = vmatprep.subr.bf16.mxu0 %v2826
  %3435 = vmatpush2.bf16.msra.mxu0 %v2825
  %3436 = vmatprep.subr.bf16.mxu0 %v2822
  %3437 = vmatpush2.bf16.msra.mxu0 %v2821
  %3438 = vmatprep.subr.bf16.mxu0 %v2818
  %3439 = vmatpush2.bf16.msra.mxu0 %v2817
  %3440 = vmatprep.subr.bf16.mxu0 %v2814
  %3441 = vmatpush2.bf16.msra.mxu0 %v2813
  %3442 = vmatprep.subr.bf16.mxu0 %v2810
  %3443 = vmatpush2.bf16.msra.mxu0 %v2809
  %3444 = vmatprep.subr.bf16.mxu0 %v2806
  %3445 = vmatpush2.bf16.msra.mxu0 %v2805
  %3446 = vmatprep.mubr.bf16.mxu0 %v1538
  %3447 = vmatmul.mubr.bf16.gmra.mxu0 %v1537
  %v3448 = vpop.f32.mrf.mxu0
  %v3449 = vadd.f32 %v3256, %v3448
  %v3450 = vpop.f32.mrf.mxu0
  %v3451 = vadd.f32 %v3258, %v3450
  %v3452 = vpop.f32.mrf.mxu0
  %v3453 = vadd.f32 %v3260, %v3452
  %v3454 = vpop.f32.mrf.mxu0
  %v3455 = vadd.f32 %v3262, %v3454
  %3456 = vmatprep.mubr.bf16.mxu0 %v1546
  %3457 = vmatmul.mubr.bf16.gmra.mxu0 %v1545
  %v3458 = vpop.f32.mrf.mxu0
  %v3459 = vadd.f32 %v3266, %v3458
  %v3460 = vpop.f32.mrf.mxu0
  %v3461 = vadd.f32 %v3268, %v3460
  %v3462 = vpop.f32.mrf.mxu0
  %v3463 = vadd.f32 %v3270, %v3462
  %v3464 = vpop.f32.mrf.mxu0
  %v3465 = vadd.f32 %v3272, %v3464
  %3466 = vmatprep.mubr.bf16.mxu0 %v1554
  %3467 = vmatmul.mubr.bf16.gmra.mxu0 %v1553
  %v3468 = vpop.f32.mrf.mxu0
  %v3469 = vadd.f32 %v3276, %v3468
  %v3470 = vpop.f32.mrf.mxu0
  %v3471 = vadd.f32 %v3278, %v3470
  %v3472 = vpop.f32.mrf.mxu0
  %v3473 = vadd.f32 %v3280, %v3472
  %v3474 = vpop.f32.mrf.mxu0
  %v3475 = vadd.f32 %v3282, %v3474
  %3476 = vmatprep.mubr.bf16.mxu0 %v1562
  %3477 = vmatmul.mubr.bf16.gmra.mxu0 %v1561
  %v3478 = vpop.f32.mrf.mxu0
  %v3479 = vadd.f32 %v3286, %v3478
  %v3480 = vpop.f32.mrf.mxu0
  %v3481 = vadd.f32 %v3288, %v3480
  %v3482 = vpop.f32.mrf.mxu0
  %v3483 = vadd.f32 %v3290, %v3482
  %v3484 = vpop.f32.mrf.mxu0
  %v3485 = vadd.f32 %v3292, %v3484
  %3486 = vmatprep.mubr.bf16.mxu0 %v1570
  %3487 = vmatmul.mubr.bf16.gmra.mxu0 %v1569
  %v3488 = vpop.f32.mrf.mxu0
  %v3489 = vadd.f32 %v3296, %v3488
  %v3490 = vpop.f32.mrf.mxu0
  %v3491 = vadd.f32 %v3298, %v3490
  %v3492 = vpop.f32.mrf.mxu0
  %v3493 = vadd.f32 %v3300, %v3492
  %v3494 = vpop.f32.mrf.mxu0
  %v3495 = vadd.f32 %v3302, %v3494
  %3496 = vmatprep.mubr.bf16.mxu0 %v1578
  %3497 = vmatmul.mubr.bf16.gmra.mxu0 %v1577
  %v3498 = vpop.f32.mrf.mxu0
  %v3499 = vadd.f32 %v3306, %v3498
  %v3500 = vpop.f32.mrf.mxu0
  %v3501 = vadd.f32 %v3308, %v3500
  %v3502 = vpop.f32.mrf.mxu0
  %v3503 = vadd.f32 %v3310, %v3502
  %v3504 = vpop.f32.mrf.mxu0
  %v3505 = vadd.f32 %v3312, %v3504
  %3506 = vmatprep.mubr.bf16.mxu0 %v1586
  %3507 = vmatmul.mubr.bf16.gmra.mxu0 %v1585
  %v3508 = vpop.f32.mrf.mxu0
  %v3509 = vadd.f32 %v3316, %v3508
  %v3510 = vpop.f32.mrf.mxu0
  %v3511 = vadd.f32 %v3318, %v3510
  %v3512 = vpop.f32.mrf.mxu0
  %v3513 = vadd.f32 %v3320, %v3512
  %v3514 = vpop.f32.mrf.mxu0
  %v3515 = vadd.f32 %v3322, %v3514
  %3516 = vmatprep.mubr.bf16.mxu0 %v1594
  %3517 = vmatmul.mubr.bf16.gmra.mxu0 %v1593
  %v3518 = vpop.f32.mrf.mxu0
  %v3519 = vadd.f32 %v3326, %v3518
  %v3520 = vpop.f32.mrf.mxu0
  %v3521 = vadd.f32 %v3328, %v3520
  %v3522 = vpop.f32.mrf.mxu0
  %v3523 = vadd.f32 %v3330, %v3522
  %v3524 = vpop.f32.mrf.mxu0
  %v3525 = vadd.f32 %v3332, %v3524
  %3526 = vmatprep.mubr.bf16.mxu0 %v1602
  %3527 = vmatmul.mubr.bf16.gmra.mxu0 %v1601
  %v3528 = vpop.f32.mrf.mxu0
  %v3529 = vadd.f32 %v3336, %v3528
  %v3530 = vpop.f32.mrf.mxu0
  %v3531 = vadd.f32 %v3338, %v3530
  %v3532 = vpop.f32.mrf.mxu0
  %v3533 = vadd.f32 %v3340, %v3532
  %v3534 = vpop.f32.mrf.mxu0
  %v3535 = vadd.f32 %v3342, %v3534
  %3536 = vmatprep.mubr.bf16.mxu0 %v1610
  %3537 = vmatmul.mubr.bf16.gmra.mxu0 %v1609
  %v3538 = vpop.f32.mrf.mxu0
  %v3539 = vadd.f32 %v3346, %v3538
  %v3540 = vpop.f32.mrf.mxu0
  %v3541 = vadd.f32 %v3348, %v3540
  %v3542 = vpop.f32.mrf.mxu0
  %v3543 = vadd.f32 %v3350, %v3542
  %v3544 = vpop.f32.mrf.mxu0
  %v3545 = vadd.f32 %v3352, %v3544
  %3546 = vmatprep.mubr.bf16.mxu0 %v1618
  %3547 = vmatmul.mubr.bf16.gmra.mxu0 %v1617
  %v3548 = vpop.f32.mrf.mxu0
  %v3549 = vadd.f32 %v3356, %v3548
  %v3550 = vpop.f32.mrf.mxu0
  %v3551 = vadd.f32 %v3358, %v3550
  %v3552 = vpop.f32.mrf.mxu0
  %v3553 = vadd.f32 %v3360, %v3552
  %v3554 = vpop.f32.mrf.mxu0
  %v3555 = vadd.f32 %v3362, %v3554
  %3556 = vmatprep.mubr.bf16.mxu0 %v1626
  %3557 = vmatmul.mubr.bf16.gmra.mxu0 %v1625
  %v3558 = vpop.f32.mrf.mxu0
  %v3559 = vadd.f32 %v3366, %v3558
  %v3560 = vpop.f32.mrf.mxu0
  %v3561 = vadd.f32 %v3368, %v3560
  %v3562 = vpop.f32.mrf.mxu0
  %v3563 = vadd.f32 %v3370, %v3562
  %v3564 = vpop.f32.mrf.mxu0
  %v3565 = vadd.f32 %v3372, %v3564
  %3566 = vmatprep.mubr.bf16.mxu0 %v1634
  %3567 = vmatmul.mubr.bf16.gmra.mxu0 %v1633
  %v3568 = vpop.f32.mrf.mxu0
  %v3569 = vadd.f32 %v3376, %v3568
  %v3570 = vpop.f32.mrf.mxu0
  %v3571 = vadd.f32 %v3378, %v3570
  %v3572 = vpop.f32.mrf.mxu0
  %v3573 = vadd.f32 %v3380, %v3572
  %v3574 = vpop.f32.mrf.mxu0
  %v3575 = vadd.f32 %v3382, %v3574
  %3576 = vmatprep.mubr.bf16.mxu0 %v1642
  %3577 = vmatmul.mubr.bf16.gmra.mxu0 %v1641
  %v3578 = vpop.f32.mrf.mxu0
  %v3579 = vadd.f32 %v3386, %v3578
  %v3580 = vpop.f32.mrf.mxu0
  %v3581 = vadd.f32 %v3388, %v3580
  %v3582 = vpop.f32.mrf.mxu0
  %v3583 = vadd.f32 %v3390, %v3582
  %v3584 = vpop.f32.mrf.mxu0
  %v3585 = vadd.f32 %v3392, %v3584
  %3586 = vmatprep.mubr.bf16.mxu0 %v1650
  %3587 = vmatmul.mubr.bf16.gmra.mxu0 %v1649
  %v3588 = vpop.f32.mrf.mxu0
  %v3589 = vadd.f32 %v3396, %v3588
  %v3590 = vpop.f32.mrf.mxu0
  %v3591 = vadd.f32 %v3398, %v3590
  %v3592 = vpop.f32.mrf.mxu0
  %v3593 = vadd.f32 %v3400, %v3592
  %v3594 = vpop.f32.mrf.mxu0
  %v3595 = vadd.f32 %v3402, %v3594
  %3596 = vmatprep.mubr.bf16.mxu0 %v1658
  %3597 = vmatmul.mubr.bf16.gmra.mxu0 %v1657
  %v3598 = vpop.f32.mrf.mxu0
  %v3599 = vadd.f32 %v3406, %v3598
  %v3600 = vpop.f32.mrf.mxu0
  %v3601 = vadd.f32 %v3408, %v3600
  %v3602 = vpop.f32.mrf.mxu0
  %v3603 = vadd.f32 %v3410, %v3602
  %v3604 = vpop.f32.mrf.mxu0
  %v3605 = vadd.f32 %v3412, %v3604
  %3606 = vdwg.mxu0
  %3607 = vmatprep.subr.bf16.mxu0 %v2866
  %3608 = vmatpush1.bf16.msra.mxu0 %v2865
  %3609 = vmatprep.subr.bf16.mxu0 %v2862
  %3610 = vmatpush1.bf16.msra.mxu0 %v2861
  %3611 = vmatprep.subr.bf16.mxu0 %v2858
  %3612 = vmatpush1.bf16.msra.mxu0 %v2857
  %3613 = vmatprep.subr.bf16.mxu0 %v2854
  %3614 = vmatpush1.bf16.msra.mxu0 %v2853
  %3615 = vmatprep.subr.bf16.mxu0 %v2850
  %3616 = vmatpush1.bf16.msra.mxu0 %v2849
  %3617 = vmatprep.subr.bf16.mxu0 %v2846
  %3618 = vmatpush1.bf16.msra.mxu0 %v2845
  %3619 = vmatprep.subr.bf16.mxu0 %v2842
  %3620 = vmatpush1.bf16.msra.mxu0 %v2841
  %3621 = vmatprep.subr.bf16.mxu0 %v2838
  %3622 = vmatpush1.bf16.msra.mxu0 %v2837
  %3623 = vmatprep.subr.bf16.mxu0 %v2898
  %3624 = vmatpush2.bf16.msra.mxu0 %v2897
  %3625 = vmatprep.subr.bf16.mxu0 %v2894
  %3626 = vmatpush2.bf16.msra.mxu0 %v2893
  %3627 = vmatprep.subr.bf16.mxu0 %v2890
  %3628 = vmatpush2.bf16.msra.mxu0 %v2889
  %3629 = vmatprep.subr.bf16.mxu0 %v2886
  %3630 = vmatpush2.bf16.msra.mxu0 %v2885
  %3631 = vmatprep.subr.bf16.mxu0 %v2882
  %3632 = vmatpush2.bf16.msra.mxu0 %v2881
  %3633 = vmatprep.subr.bf16.mxu0 %v2878
  %3634 = vmatpush2.bf16.msra.mxu0 %v2877
  %3635 = vmatprep.subr.bf16.mxu0 %v2874
  %3636 = vmatpush2.bf16.msra.mxu0 %v2873
  %3637 = vmatprep.subr.bf16.mxu0 %v2870
  %3638 = vmatpush2.bf16.msra.mxu0 %v2869
  %3639 = vmatprep.mubr.bf16.mxu0 %v1540
  %3640 = vmatmul.mubr.bf16.gmra.mxu0 %v1539
  %v3641 = vpop.f32.mrf.mxu0
  %v3642 = vadd.f32 %v3449, %v3641
  %v3643 = vpop.f32.mrf.mxu0
  %v3644 = vadd.f32 %v3451, %v3643
  %v3645 = vpop.f32.mrf.mxu0
  %v3646 = vadd.f32 %v3453, %v3645
  %v3647 = vpop.f32.mrf.mxu0
  %v3648 = vadd.f32 %v3455, %v3647
  %3649 = vmatprep.mubr.bf16.mxu0 %v1548
  %3650 = vmatmul.mubr.bf16.gmra.mxu0 %v1547
  %v3651 = vpop.f32.mrf.mxu0
  %v3652 = vadd.f32 %v3459, %v3651
  %v3653 = vpop.f32.mrf.mxu0
  %v3654 = vadd.f32 %v3461, %v3653
  %v3655 = vpop.f32.mrf.mxu0
  %v3656 = vadd.f32 %v3463, %v3655
  %v3657 = vpop.f32.mrf.mxu0
  %v3658 = vadd.f32 %v3465, %v3657
  %3659 = vmatprep.mubr.bf16.mxu0 %v1556
  %3660 = vmatmul.mubr.bf16.gmra.mxu0 %v1555
  %v3661 = vpop.f32.mrf.mxu0
  %v3662 = vadd.f32 %v3469, %v3661
  %v3663 = vpop.f32.mrf.mxu0
  %v3664 = vadd.f32 %v3471, %v3663
  %v3665 = vpop.f32.mrf.mxu0
  %v3666 = vadd.f32 %v3473, %v3665
  %v3667 = vpop.f32.mrf.mxu0
  %v3668 = vadd.f32 %v3475, %v3667
  %3669 = vmatprep.mubr.bf16.mxu0 %v1564
  %3670 = vmatmul.mubr.bf16.gmra.mxu0 %v1563
  %v3671 = vpop.f32.mrf.mxu0
  %v3672 = vadd.f32 %v3479, %v3671
  %v3673 = vpop.f32.mrf.mxu0
  %v3674 = vadd.f32 %v3481, %v3673
  %v3675 = vpop.f32.mrf.mxu0
  %v3676 = vadd.f32 %v3483, %v3675
  %v3677 = vpop.f32.mrf.mxu0
  %v3678 = vadd.f32 %v3485, %v3677
  %3679 = vmatprep.mubr.bf16.mxu0 %v1572
  %3680 = vmatmul.mubr.bf16.gmra.mxu0 %v1571
  %v3681 = vpop.f32.mrf.mxu0
  %v3682 = vadd.f32 %v3489, %v3681
  %v3683 = vpop.f32.mrf.mxu0
  %v3684 = vadd.f32 %v3491, %v3683
  %v3685 = vpop.f32.mrf.mxu0
  %v3686 = vadd.f32 %v3493, %v3685
  %v3687 = vpop.f32.mrf.mxu0
  %v3688 = vadd.f32 %v3495, %v3687
  %3689 = vmatprep.mubr.bf16.mxu0 %v1580
  %3690 = vmatmul.mubr.bf16.gmra.mxu0 %v1579
  %v3691 = vpop.f32.mrf.mxu0
  %v3692 = vadd.f32 %v3499, %v3691
  %v3693 = vpop.f32.mrf.mxu0
  %v3694 = vadd.f32 %v3501, %v3693
  %v3695 = vpop.f32.mrf.mxu0
  %v3696 = vadd.f32 %v3503, %v3695
  %v3697 = vpop.f32.mrf.mxu0
  %v3698 = vadd.f32 %v3505, %v3697
  %3699 = vmatprep.mubr.bf16.mxu0 %v1588
  %3700 = vmatmul.mubr.bf16.gmra.mxu0 %v1587
  %v3701 = vpop.f32.mrf.mxu0
  %v3702 = vadd.f32 %v3509, %v3701
  %v3703 = vpop.f32.mrf.mxu0
  %v3704 = vadd.f32 %v3511, %v3703
  %v3705 = vpop.f32.mrf.mxu0
  %v3706 = vadd.f32 %v3513, %v3705
  %v3707 = vpop.f32.mrf.mxu0
  %v3708 = vadd.f32 %v3515, %v3707
  %3709 = vmatprep.mubr.bf16.mxu0 %v1596
  %3710 = vmatmul.mubr.bf16.gmra.mxu0 %v1595
  %v3711 = vpop.f32.mrf.mxu0
  %v3712 = vadd.f32 %v3519, %v3711
  %v3713 = vpop.f32.mrf.mxu0
  %v3714 = vadd.f32 %v3521, %v3713
  %v3715 = vpop.f32.mrf.mxu0
  %v3716 = vadd.f32 %v3523, %v3715
  %v3717 = vpop.f32.mrf.mxu0
  %v3718 = vadd.f32 %v3525, %v3717
  %3719 = vmatprep.mubr.bf16.mxu0 %v1604
  %3720 = vmatmul.mubr.bf16.gmra.mxu0 %v1603
  %v3721 = vpop.f32.mrf.mxu0
  %v3722 = vadd.f32 %v3529, %v3721
  %v3723 = vpop.f32.mrf.mxu0
  %v3724 = vadd.f32 %v3531, %v3723
  %v3725 = vpop.f32.mrf.mxu0
  %v3726 = vadd.f32 %v3533, %v3725
  %v3727 = vpop.f32.mrf.mxu0
  %v3728 = vadd.f32 %v3535, %v3727
  %3729 = vmatprep.mubr.bf16.mxu0 %v1612
  %3730 = vmatmul.mubr.bf16.gmra.mxu0 %v1611
  %v3731 = vpop.f32.mrf.mxu0
  %v3732 = vadd.f32 %v3539, %v3731
  %v3733 = vpop.f32.mrf.mxu0
  %v3734 = vadd.f32 %v3541, %v3733
  %v3735 = vpop.f32.mrf.mxu0
  %v3736 = vadd.f32 %v3543, %v3735
  %v3737 = vpop.f32.mrf.mxu0
  %v3738 = vadd.f32 %v3545, %v3737
  %3739 = vmatprep.mubr.bf16.mxu0 %v1620
  %3740 = vmatmul.mubr.bf16.gmra.mxu0 %v1619
  %v3741 = vpop.f32.mrf.mxu0
  %v3742 = vadd.f32 %v3549, %v3741
  %v3743 = vpop.f32.mrf.mxu0
  %v3744 = vadd.f32 %v3551, %v3743
  %v3745 = vpop.f32.mrf.mxu0
  %v3746 = vadd.f32 %v3553, %v3745
  %v3747 = vpop.f32.mrf.mxu0
  %v3748 = vadd.f32 %v3555, %v3747
  %3749 = vmatprep.mubr.bf16.mxu0 %v1628
  %3750 = vmatmul.mubr.bf16.gmra.mxu0 %v1627
  %v3751 = vpop.f32.mrf.mxu0
  %v3752 = vadd.f32 %v3559, %v3751
  %v3753 = vpop.f32.mrf.mxu0
  %v3754 = vadd.f32 %v3561, %v3753
  %v3755 = vpop.f32.mrf.mxu0
  %v3756 = vadd.f32 %v3563, %v3755
  %v3757 = vpop.f32.mrf.mxu0
  %v3758 = vadd.f32 %v3565, %v3757
  %3759 = vmatprep.mubr.bf16.mxu0 %v1636
  %3760 = vmatmul.mubr.bf16.gmra.mxu0 %v1635
  %v3761 = vpop.f32.mrf.mxu0
  %v3762 = vadd.f32 %v3569, %v3761
  %v3763 = vpop.f32.mrf.mxu0
  %v3764 = vadd.f32 %v3571, %v3763
  %v3765 = vpop.f32.mrf.mxu0
  %v3766 = vadd.f32 %v3573, %v3765
  %v3767 = vpop.f32.mrf.mxu0
  %v3768 = vadd.f32 %v3575, %v3767
  %3769 = vmatprep.mubr.bf16.mxu0 %v1644
  %3770 = vmatmul.mubr.bf16.gmra.mxu0 %v1643
  %v3771 = vpop.f32.mrf.mxu0
  %v3772 = vadd.f32 %v3579, %v3771
  %v3773 = vpop.f32.mrf.mxu0
  %v3774 = vadd.f32 %v3581, %v3773
  %v3775 = vpop.f32.mrf.mxu0
  %v3776 = vadd.f32 %v3583, %v3775
  %v3777 = vpop.f32.mrf.mxu0
  %v3778 = vadd.f32 %v3585, %v3777
  %3779 = vmatprep.mubr.bf16.mxu0 %v1652
  %3780 = vmatmul.mubr.bf16.gmra.mxu0 %v1651
  %v3781 = vpop.f32.mrf.mxu0
  %v3782 = vadd.f32 %v3589, %v3781
  %v3783 = vpop.f32.mrf.mxu0
  %v3784 = vadd.f32 %v3591, %v3783
  %v3785 = vpop.f32.mrf.mxu0
  %v3786 = vadd.f32 %v3593, %v3785
  %v3787 = vpop.f32.mrf.mxu0
  %v3788 = vadd.f32 %v3595, %v3787
  %3789 = vmatprep.mubr.bf16.mxu0 %v1660
  %3790 = vmatmul.mubr.bf16.gmra.mxu0 %v1659
  %v3791 = vpop.f32.mrf.mxu0
  %v3792 = vadd.f32 %v3599, %v3791
  %v3793 = vpop.f32.mrf.mxu0
  %v3794 = vadd.f32 %v3601, %v3793
  %v3795 = vpop.f32.mrf.mxu0
  %v3796 = vadd.f32 %v3603, %v3795
  %v3797 = vpop.f32.mrf.mxu0
  %v3798 = vadd.f32 %v3605, %v3797
  %3799 = vdwg.mxu0
  %3800 = vmatprep.subr.bf16.mxu0 %v2930
  %3801 = vmatpush1.bf16.msra.mxu0 %v2929
  %3802 = vmatprep.subr.bf16.mxu0 %v2926
  %3803 = vmatpush1.bf16.msra.mxu0 %v2925
  %3804 = vmatprep.subr.bf16.mxu0 %v2922
  %3805 = vmatpush1.bf16.msra.mxu0 %v2921
  %3806 = vmatprep.subr.bf16.mxu0 %v2918
  %3807 = vmatpush1.bf16.msra.mxu0 %v2917
  %3808 = vmatprep.subr.bf16.mxu0 %v2914
  %3809 = vmatpush1.bf16.msra.mxu0 %v2913
  %3810 = vmatprep.subr.bf16.mxu0 %v2910
  %3811 = vmatpush1.bf16.msra.mxu0 %v2909
  %3812 = vmatprep.subr.bf16.mxu0 %v2906
  %3813 = vmatpush1.bf16.msra.mxu0 %v2905
  %3814 = vmatprep.subr.bf16.mxu0 %v2902
  %3815 = vmatpush1.bf16.msra.mxu0 %v2901
  %3816 = vmatprep.subr.bf16.mxu0 %v2962
  %3817 = vmatpush2.bf16.msra.mxu0 %v2961
  %3818 = vmatprep.subr.bf16.mxu0 %v2958
  %3819 = vmatpush2.bf16.msra.mxu0 %v2957
  %3820 = vmatprep.subr.bf16.mxu0 %v2954
  %3821 = vmatpush2.bf16.msra.mxu0 %v2953
  %3822 = vmatprep.subr.bf16.mxu0 %v2950
  %3823 = vmatpush2.bf16.msra.mxu0 %v2949
  %3824 = vmatprep.subr.bf16.mxu0 %v2946
  %3825 = vmatpush2.bf16.msra.mxu0 %v2945
  %3826 = vmatprep.subr.bf16.mxu0 %v2942
  %3827 = vmatpush2.bf16.msra.mxu0 %v2941
  %3828 = vmatprep.subr.bf16.mxu0 %v2938
  %3829 = vmatpush2.bf16.msra.mxu0 %v2937
  %3830 = vmatprep.subr.bf16.mxu0 %v2934
  %3831 = vmatpush2.bf16.msra.mxu0 %v2933
  %3832 = vmatprep.mubr.bf16.mxu0 %v1542
  %3833 = vmatmul.mubr.bf16.gmra.mxu0 %v1541
  %v3834 = vpop.f32.mrf.mxu0
  %v3835 = vadd.f32 %v3642, %v3834
  %v3836 = vpop.f32.mrf.mxu0
  %v3837 = vadd.f32 %v3644, %v3836
  %v3838 = vpop.f32.mrf.mxu0
  %v3839 = vadd.f32 %v3646, %v3838
  %v3840 = vpop.f32.mrf.mxu0
  %v3841 = vadd.f32 %v3648, %v3840
  %3842 = vmatprep.mubr.bf16.mxu0 %v1550
  %3843 = vmatmul.mubr.bf16.gmra.mxu0 %v1549
  %v3844 = vpop.f32.mrf.mxu0
  %v3845 = vadd.f32 %v3652, %v3844
  %v3846 = vpop.f32.mrf.mxu0
  %v3847 = vadd.f32 %v3654, %v3846
  %v3848 = vpop.f32.mrf.mxu0
  %v3849 = vadd.f32 %v3656, %v3848
  %v3850 = vpop.f32.mrf.mxu0
  %v3851 = vadd.f32 %v3658, %v3850
  %3852 = vmatprep.mubr.bf16.mxu0 %v1558
  %3853 = vmatmul.mubr.bf16.gmra.mxu0 %v1557
  %v3854 = vpop.f32.mrf.mxu0
  %v3855 = vadd.f32 %v3662, %v3854
  %v3856 = vpop.f32.mrf.mxu0
  %v3857 = vadd.f32 %v3664, %v3856
  %v3858 = vpop.f32.mrf.mxu0
  %v3859 = vadd.f32 %v3666, %v3858
  %v3860 = vpop.f32.mrf.mxu0
  %v3861 = vadd.f32 %v3668, %v3860
  %3862 = vmatprep.mubr.bf16.mxu0 %v1566
  %3863 = vmatmul.mubr.bf16.gmra.mxu0 %v1565
  %v3864 = vpop.f32.mrf.mxu0
  %v3865 = vadd.f32 %v3672, %v3864
  %v3866 = vpop.f32.mrf.mxu0
  %v3867 = vadd.f32 %v3674, %v3866
  %v3868 = vpop.f32.mrf.mxu0
  %v3869 = vadd.f32 %v3676, %v3868
  %v3870 = vpop.f32.mrf.mxu0
  %v3871 = vadd.f32 %v3678, %v3870
  %3872 = vmatprep.mubr.bf16.mxu0 %v1574
  %3873 = vmatmul.mubr.bf16.gmra.mxu0 %v1573
  %v3874 = vpop.f32.mrf.mxu0
  %v3875 = vadd.f32 %v3682, %v3874
  %v3876 = vpop.f32.mrf.mxu0
  %v3877 = vadd.f32 %v3684, %v3876
  %v3878 = vpop.f32.mrf.mxu0
  %v3879 = vadd.f32 %v3686, %v3878
  %v3880 = vpop.f32.mrf.mxu0
  %v3881 = vadd.f32 %v3688, %v3880
  %3882 = vmatprep.mubr.bf16.mxu0 %v1582
  %3883 = vmatmul.mubr.bf16.gmra.mxu0 %v1581
  %v3884 = vpop.f32.mrf.mxu0
  %v3885 = vadd.f32 %v3692, %v3884
  %v3886 = vpop.f32.mrf.mxu0
  %v3887 = vadd.f32 %v3694, %v3886
  %v3888 = vpop.f32.mrf.mxu0
  %v3889 = vadd.f32 %v3696, %v3888
  %v3890 = vpop.f32.mrf.mxu0
  %v3891 = vadd.f32 %v3698, %v3890
  %3892 = vmatprep.mubr.bf16.mxu0 %v1590
  %3893 = vmatmul.mubr.bf16.gmra.mxu0 %v1589
  %v3894 = vpop.f32.mrf.mxu0
  %v3895 = vadd.f32 %v3702, %v3894
  %v3896 = vpop.f32.mrf.mxu0
  %v3897 = vadd.f32 %v3704, %v3896
  %v3898 = vpop.f32.mrf.mxu0
  %v3899 = vadd.f32 %v3706, %v3898
  %v3900 = vpop.f32.mrf.mxu0
  %v3901 = vadd.f32 %v3708, %v3900
  %3902 = vmatprep.mubr.bf16.mxu0 %v1598
  %3903 = vmatmul.mubr.bf16.gmra.mxu0 %v1597
  %v3904 = vpop.f32.mrf.mxu0
  %v3905 = vadd.f32 %v3712, %v3904
  %v3906 = vpop.f32.mrf.mxu0
  %v3907 = vadd.f32 %v3714, %v3906
  %v3908 = vpop.f32.mrf.mxu0
  %v3909 = vadd.f32 %v3716, %v3908
  %v3910 = vpop.f32.mrf.mxu0
  %v3911 = vadd.f32 %v3718, %v3910
  %3912 = vmatprep.mubr.bf16.mxu0 %v1606
  %3913 = vmatmul.mubr.bf16.gmra.mxu0 %v1605
  %v3914 = vpop.f32.mrf.mxu0
  %v3915 = vadd.f32 %v3722, %v3914
  %v3916 = vpop.f32.mrf.mxu0
  %v3917 = vadd.f32 %v3724, %v3916
  %v3918 = vpop.f32.mrf.mxu0
  %v3919 = vadd.f32 %v3726, %v3918
  %v3920 = vpop.f32.mrf.mxu0
  %v3921 = vadd.f32 %v3728, %v3920
  %3922 = vmatprep.mubr.bf16.mxu0 %v1614
  %3923 = vmatmul.mubr.bf16.gmra.mxu0 %v1613
  %v3924 = vpop.f32.mrf.mxu0
  %v3925 = vadd.f32 %v3732, %v3924
  %v3926 = vpop.f32.mrf.mxu0
  %v3927 = vadd.f32 %v3734, %v3926
  %v3928 = vpop.f32.mrf.mxu0
  %v3929 = vadd.f32 %v3736, %v3928
  %v3930 = vpop.f32.mrf.mxu0
  %v3931 = vadd.f32 %v3738, %v3930
  %3932 = vmatprep.mubr.bf16.mxu0 %v1622
  %3933 = vmatmul.mubr.bf16.gmra.mxu0 %v1621
  %v3934 = vpop.f32.mrf.mxu0
  %v3935 = vadd.f32 %v3742, %v3934
  %v3936 = vpop.f32.mrf.mxu0
  %v3937 = vadd.f32 %v3744, %v3936
  %v3938 = vpop.f32.mrf.mxu0
  %v3939 = vadd.f32 %v3746, %v3938
  %v3940 = vpop.f32.mrf.mxu0
  %v3941 = vadd.f32 %v3748, %v3940
  %3942 = vmatprep.mubr.bf16.mxu0 %v1630
  %3943 = vmatmul.mubr.bf16.gmra.mxu0 %v1629
  %v3944 = vpop.f32.mrf.mxu0
  %v3945 = vadd.f32 %v3752, %v3944
  %v3946 = vpop.f32.mrf.mxu0
  %v3947 = vadd.f32 %v3754, %v3946
  %v3948 = vpop.f32.mrf.mxu0
  %v3949 = vadd.f32 %v3756, %v3948
  %v3950 = vpop.f32.mrf.mxu0
  %v3951 = vadd.f32 %v3758, %v3950
  %3952 = vmatprep.mubr.bf16.mxu0 %v1638
  %3953 = vmatmul.mubr.bf16.gmra.mxu0 %v1637
  %v3954 = vpop.f32.mrf.mxu0
  %v3955 = vadd.f32 %v3762, %v3954
  %v3956 = vpop.f32.mrf.mxu0
  %v3957 = vadd.f32 %v3764, %v3956
  %v3958 = vpop.f32.mrf.mxu0
  %v3959 = vadd.f32 %v3766, %v3958
  %v3960 = vpop.f32.mrf.mxu0
  %v3961 = vadd.f32 %v3768, %v3960
  %3962 = vmatprep.mubr.bf16.mxu0 %v1646
  %3963 = vmatmul.mubr.bf16.gmra.mxu0 %v1645
  %v3964 = vpop.f32.mrf.mxu0
  %v3965 = vadd.f32 %v3772, %v3964
  %v3966 = vpop.f32.mrf.mxu0
  %v3967 = vadd.f32 %v3774, %v3966
  %v3968 = vpop.f32.mrf.mxu0
  %v3969 = vadd.f32 %v3776, %v3968
  %v3970 = vpop.f32.mrf.mxu0
  %v3971 = vadd.f32 %v3778, %v3970
  %3972 = vmatprep.mubr.bf16.mxu0 %v1654
  %3973 = vmatmul.mubr.bf16.gmra.mxu0 %v1653
  %v3974 = vpop.f32.mrf.mxu0
  %v3975 = vadd.f32 %v3782, %v3974
  %v3976 = vpop.f32.mrf.mxu0
  %v3977 = vadd.f32 %v3784, %v3976
  %v3978 = vpop.f32.mrf.mxu0
  %v3979 = vadd.f32 %v3786, %v3978
  %v3980 = vpop.f32.mrf.mxu0
  %v3981 = vadd.f32 %v3788, %v3980
  %3982 = vmatprep.mubr.bf16.mxu0 %v1662
  %3983 = vmatmul.mubr.bf16.gmra.mxu0 %v1661
  %v3984 = vpop.f32.mrf.mxu0
  %v3985 = vadd.f32 %v3792, %v3984
  %v3986 = vpop.f32.mrf.mxu0
  %v3987 = vadd.f32 %v3794, %v3986
  %v3988 = vpop.f32.mrf.mxu0
  %v3989 = vadd.f32 %v3796, %v3988
  %v3990 = vpop.f32.mrf.mxu0
  %v3991 = vadd.f32 %v3798, %v3990
  %3992 = vdwg.mxu0
  %3993 = vmatprep.subr.bf16.mxu0 %v2740
  %3994 = vmatpush1.bf16.msra.mxu0 %v2739
  %3995 = vmatprep.subr.bf16.mxu0 %v2736
  %3996 = vmatpush1.bf16.msra.mxu0 %v2735
  %3997 = vmatprep.subr.bf16.mxu0 %v2732
  %3998 = vmatpush1.bf16.msra.mxu0 %v2731
  %3999 = vmatprep.subr.bf16.mxu0 %v2728
  %4000 = vmatpush1.bf16.msra.mxu0 %v2727
  %4001 = vmatprep.subr.bf16.mxu0 %v2724
  %4002 = vmatpush1.bf16.msra.mxu0 %v2723
  %4003 = vmatprep.subr.bf16.mxu0 %v2720
  %4004 = vmatpush1.bf16.msra.mxu0 %v2719
  %4005 = vmatprep.subr.bf16.mxu0 %v2716
  %4006 = vmatpush1.bf16.msra.mxu0 %v2715
  %4007 = vmatprep.subr.bf16.mxu0 %v2712
  %4008 = vmatpush1.bf16.msra.mxu0 %v2711
  %4009 = vmatprep.subr.bf16.mxu0 %v2772
  %4010 = vmatpush2.bf16.msra.mxu0 %v2771
  %4011 = vmatprep.subr.bf16.mxu0 %v2768
  %4012 = vmatpush2.bf16.msra.mxu0 %v2767
  %4013 = vmatprep.subr.bf16.mxu0 %v2764
  %4014 = vmatpush2.bf16.msra.mxu0 %v2763
  %4015 = vmatprep.subr.bf16.mxu0 %v2760
  %4016 = vmatpush2.bf16.msra.mxu0 %v2759
  %4017 = vmatprep.subr.bf16.mxu0 %v2756
  %4018 = vmatpush2.bf16.msra.mxu0 %v2755
  %4019 = vmatprep.subr.bf16.mxu0 %v2752
  %4020 = vmatpush2.bf16.msra.mxu0 %v2751
  %4021 = vmatprep.subr.bf16.mxu0 %v2748
  %4022 = vmatpush2.bf16.msra.mxu0 %v2747
  %4023 = vmatprep.subr.bf16.mxu0 %v2744
  %4024 = vmatpush2.bf16.msra.mxu0 %v2743
  %4025 = vmatprep.mubr.bf16.mxu0 %v1536
  %4026 = vmatmul.mubr.bf16.gmra.mxu0 %v1535
  %v4027 = vpop.f32.mrf.mxu0
  %v4028 = vadd.f32 %v1932, %v4027
  %v4029 = vpop.f32.mrf.mxu0
  %v4030 = vadd.f32 %v1936, %v4029
  %v4031 = vpop.f32.mrf.mxu0
  %v4032 = vadd.f32 %v1932, %v4031
  %v4033 = vpop.f32.mrf.mxu0
  %v4034 = vadd.f32 %v1936, %v4033
  %4035 = vmatprep.mubr.bf16.mxu0 %v1544
  %4036 = vmatmul.mubr.bf16.gmra.mxu0 %v1543
  %v4037 = vpop.f32.mrf.mxu0
  %v4038 = vadd.f32 %v1932, %v4037
  %v4039 = vpop.f32.mrf.mxu0
  %v4040 = vadd.f32 %v1936, %v4039
  %v4041 = vpop.f32.mrf.mxu0
  %v4042 = vadd.f32 %v1932, %v4041
  %v4043 = vpop.f32.mrf.mxu0
  %v4044 = vadd.f32 %v1936, %v4043
  %4045 = vmatprep.mubr.bf16.mxu0 %v1552
  %4046 = vmatmul.mubr.bf16.gmra.mxu0 %v1551
  %v4047 = vpop.f32.mrf.mxu0
  %v4048 = vadd.f32 %v1932, %v4047
  %v4049 = vpop.f32.mrf.mxu0
  %v4050 = vadd.f32 %v1936, %v4049
  %v4051 = vpop.f32.mrf.mxu0
  %v4052 = vadd.f32 %v1932, %v4051
  %v4053 = vpop.f32.mrf.mxu0
  %v4054 = vadd.f32 %v1936, %v4053
  %4055 = vmatprep.mubr.bf16.mxu0 %v1560
  %4056 = vmatmul.mubr.bf16.gmra.mxu0 %v1559
  %v4057 = vpop.f32.mrf.mxu0
  %v4058 = vadd.f32 %v1932, %v4057
  %v4059 = vpop.f32.mrf.mxu0
  %v4060 = vadd.f32 %v1936, %v4059
  %v4061 = vpop.f32.mrf.mxu0
  %v4062 = vadd.f32 %v1932, %v4061
  %v4063 = vpop.f32.mrf.mxu0
  %v4064 = vadd.f32 %v1936, %v4063
  %4065 = vmatprep.mubr.bf16.mxu0 %v1568
  %4066 = vmatmul.mubr.bf16.gmra.mxu0 %v1567
  %v4067 = vpop.f32.mrf.mxu0
  %v4068 = vadd.f32 %v1932, %v4067
  %v4069 = vpop.f32.mrf.mxu0
  %v4070 = vadd.f32 %v1936, %v4069
  %v4071 = vpop.f32.mrf.mxu0
  %v4072 = vadd.f32 %v1932, %v4071
  %v4073 = vpop.f32.mrf.mxu0
  %v4074 = vadd.f32 %v1936, %v4073
  %4075 = vmatprep.mubr.bf16.mxu0 %v1576
  %4076 = vmatmul.mubr.bf16.gmra.mxu0 %v1575
  %v4077 = vpop.f32.mrf.mxu0
  %v4078 = vadd.f32 %v1932, %v4077
  %v4079 = vpop.f32.mrf.mxu0
  %v4080 = vadd.f32 %v1936, %v4079
  %v4081 = vpop.f32.mrf.mxu0
  %v4082 = vadd.f32 %v1932, %v4081
  %v4083 = vpop.f32.mrf.mxu0
  %v4084 = vadd.f32 %v1936, %v4083
  %4085 = vmatprep.mubr.bf16.mxu0 %v1584
  %4086 = vmatmul.mubr.bf16.gmra.mxu0 %v1583
  %v4087 = vpop.f32.mrf.mxu0
  %v4088 = vadd.f32 %v1932, %v4087
  %v4089 = vpop.f32.mrf.mxu0
  %v4090 = vadd.f32 %v1936, %v4089
  %v4091 = vpop.f32.mrf.mxu0
  %v4092 = vadd.f32 %v1932, %v4091
  %v4093 = vpop.f32.mrf.mxu0
  %v4094 = vadd.f32 %v1936, %v4093
  %4095 = vmatprep.mubr.bf16.mxu0 %v1592
  %4096 = vmatmul.mubr.bf16.gmra.mxu0 %v1591
  %v4097 = vpop.f32.mrf.mxu0
  %v4098 = vadd.f32 %v1932, %v4097
  %v4099 = vpop.f32.mrf.mxu0
  %v4100 = vadd.f32 %v1936, %v4099
  %v4101 = vpop.f32.mrf.mxu0
  %v4102 = vadd.f32 %v1932, %v4101
  %v4103 = vpop.f32.mrf.mxu0
  %v4104 = vadd.f32 %v1936, %v4103
  %4105 = vmatprep.mubr.bf16.mxu0 %v1600
  %4106 = vmatmul.mubr.bf16.gmra.mxu0 %v1599
  %v4107 = vpop.f32.mrf.mxu0
  %v4108 = vadd.f32 %v1932, %v4107
  %v4109 = vpop.f32.mrf.mxu0
  %v4110 = vadd.f32 %v1936, %v4109
  %v4111 = vpop.f32.mrf.mxu0
  %v4112 = vadd.f32 %v1932, %v4111
  %v4113 = vpop.f32.mrf.mxu0
  %v4114 = vadd.f32 %v1936, %v4113
  %4115 = vmatprep.mubr.bf16.mxu0 %v1608
  %4116 = vmatmul.mubr.bf16.gmra.mxu0 %v1607
  %v4117 = vpop.f32.mrf.mxu0
  %v4118 = vadd.f32 %v1932, %v4117
  %v4119 = vpop.f32.mrf.mxu0
  %v4120 = vadd.f32 %v1936, %v4119
  %v4121 = vpop.f32.mrf.mxu0
  %v4122 = vadd.f32 %v1932, %v4121
  %v4123 = vpop.f32.mrf.mxu0
  %v4124 = vadd.f32 %v1936, %v4123
  %4125 = vmatprep.mubr.bf16.mxu0 %v1616
  %4126 = vmatmul.mubr.bf16.gmra.mxu0 %v1615
  %v4127 = vpop.f32.mrf.mxu0
  %v4128 = vadd.f32 %v1932, %v4127
  %v4129 = vpop.f32.mrf.mxu0
  %v4130 = vadd.f32 %v1936, %v4129
  %v4131 = vpop.f32.mrf.mxu0
  %v4132 = vadd.f32 %v1932, %v4131
  %v4133 = vpop.f32.mrf.mxu0
  %v4134 = vadd.f32 %v1936, %v4133
  %4135 = vmatprep.mubr.bf16.mxu0 %v1624
  %4136 = vmatmul.mubr.bf16.gmra.mxu0 %v1623
  %v4137 = vpop.f32.mrf.mxu0
  %v4138 = vadd.f32 %v1932, %v4137
  %v4139 = vpop.f32.mrf.mxu0
  %v4140 = vadd.f32 %v1936, %v4139
  %v4141 = vpop.f32.mrf.mxu0
  %v4142 = vadd.f32 %v1932, %v4141
  %v4143 = vpop.f32.mrf.mxu0
  %v4144 = vadd.f32 %v1936, %v4143
  %4145 = vmatprep.mubr.bf16.mxu0 %v1632
  %4146 = vmatmul.mubr.bf16.gmra.mxu0 %v1631
  %v4147 = vpop.f32.mrf.mxu0
  %v4148 = vadd.f32 %v1932, %v4147
  %v4149 = vpop.f32.mrf.mxu0
  %v4150 = vadd.f32 %v1936, %v4149
  %v4151 = vpop.f32.mrf.mxu0
  %v4152 = vadd.f32 %v1932, %v4151
  %v4153 = vpop.f32.mrf.mxu0
  %v4154 = vadd.f32 %v1936, %v4153
  %4155 = vmatprep.mubr.bf16.mxu0 %v1640
  %4156 = vmatmul.mubr.bf16.gmra.mxu0 %v1639
  %v4157 = vpop.f32.mrf.mxu0
  %v4158 = vadd.f32 %v1932, %v4157
  %v4159 = vpop.f32.mrf.mxu0
  %v4160 = vadd.f32 %v1936, %v4159
  %v4161 = vpop.f32.mrf.mxu0
  %v4162 = vadd.f32 %v1932, %v4161
  %v4163 = vpop.f32.mrf.mxu0
  %v4164 = vadd.f32 %v1936, %v4163
  %4165 = vmatprep.mubr.bf16.mxu0 %v1648
  %4166 = vmatmul.mubr.bf16.gmra.mxu0 %v1647
  %v4167 = vpop.f32.mrf.mxu0
  %v4168 = vadd.f32 %v1932, %v4167
  %v4169 = vpop.f32.mrf.mxu0
  %v4170 = vadd.f32 %v1936, %v4169
  %v4171 = vpop.f32.mrf.mxu0
  %v4172 = vadd.f32 %v1932, %v4171
  %v4173 = vpop.f32.mrf.mxu0
  %v4174 = vadd.f32 %v1936, %v4173
  %4175 = vmatprep.mubr.bf16.mxu0 %v1656
  %4176 = vmatmul.mubr.bf16.gmra.mxu0 %v1655
  %v4177 = vpop.f32.mrf.mxu0
  %v4178 = vadd.f32 %v1932, %v4177
  %v4179 = vpop.f32.mrf.mxu0
  %v4180 = vadd.f32 %v1936, %v4179
  %v4181 = vpop.f32.mrf.mxu0
  %v4182 = vadd.f32 %v1932, %v4181
  %v4183 = vpop.f32.mrf.mxu0
  %v4184 = vadd.f32 %v1936, %v4183
  %4185 = vdwg.mxu0
  %4186 = vmatprep.subr.bf16.mxu0 %v2804
  %4187 = vmatpush1.bf16.msra.mxu0 %v2803
  %4188 = vmatprep.subr.bf16.mxu0 %v2800
  %4189 = vmatpush1.bf16.msra.mxu0 %v2799
  %4190 = vmatprep.subr.bf16.mxu0 %v2796
  %4191 = vmatpush1.bf16.msra.mxu0 %v2795
  %4192 = vmatprep.subr.bf16.mxu0 %v2792
  %4193 = vmatpush1.bf16.msra.mxu0 %v2791
  %4194 = vmatprep.subr.bf16.mxu0 %v2788
  %4195 = vmatpush1.bf16.msra.mxu0 %v2787
  %4196 = vmatprep.subr.bf16.mxu0 %v2784
  %4197 = vmatpush1.bf16.msra.mxu0 %v2783
  %4198 = vmatprep.subr.bf16.mxu0 %v2780
  %4199 = vmatpush1.bf16.msra.mxu0 %v2779
  %4200 = vmatprep.subr.bf16.mxu0 %v2776
  %4201 = vmatpush1.bf16.msra.mxu0 %v2775
  %4202 = vmatprep.subr.bf16.mxu0 %v2836
  %4203 = vmatpush2.bf16.msra.mxu0 %v2835
  %4204 = vmatprep.subr.bf16.mxu0 %v2832
  %4205 = vmatpush2.bf16.msra.mxu0 %v2831
  %4206 = vmatprep.subr.bf16.mxu0 %v2828
  %4207 = vmatpush2.bf16.msra.mxu0 %v2827
  %4208 = vmatprep.subr.bf16.mxu0 %v2824
  %4209 = vmatpush2.bf16.msra.mxu0 %v2823
  %4210 = vmatprep.subr.bf16.mxu0 %v2820
  %4211 = vmatpush2.bf16.msra.mxu0 %v2819
  %4212 = vmatprep.subr.bf16.mxu0 %v2816
  %4213 = vmatpush2.bf16.msra.mxu0 %v2815
  %4214 = vmatprep.subr.bf16.mxu0 %v2812
  %4215 = vmatpush2.bf16.msra.mxu0 %v2811
  %4216 = vmatprep.subr.bf16.mxu0 %v2808
  %4217 = vmatpush2.bf16.msra.mxu0 %v2807
  %4218 = vmatprep.mubr.bf16.mxu0 %v1538
  %4219 = vmatmul.mubr.bf16.gmra.mxu0 %v1537
  %v4220 = vpop.f32.mrf.mxu0
  %v4221 = vadd.f32 %v4028, %v4220
  %v4222 = vpop.f32.mrf.mxu0
  %v4223 = vadd.f32 %v4030, %v4222
  %v4224 = vpop.f32.mrf.mxu0
  %v4225 = vadd.f32 %v4032, %v4224
  %v4226 = vpop.f32.mrf.mxu0
  %v4227 = vadd.f32 %v4034, %v4226
  %4228 = vmatprep.mubr.bf16.mxu0 %v1546
  %4229 = vmatmul.mubr.bf16.gmra.mxu0 %v1545
  %v4230 = vpop.f32.mrf.mxu0
  %v4231 = vadd.f32 %v4038, %v4230
  %v4232 = vpop.f32.mrf.mxu0
  %v4233 = vadd.f32 %v4040, %v4232
  %v4234 = vpop.f32.mrf.mxu0
  %v4235 = vadd.f32 %v4042, %v4234
  %v4236 = vpop.f32.mrf.mxu0
  %v4237 = vadd.f32 %v4044, %v4236
  %4238 = vmatprep.mubr.bf16.mxu0 %v1554
  %4239 = vmatmul.mubr.bf16.gmra.mxu0 %v1553
  %v4240 = vpop.f32.mrf.mxu0
  %v4241 = vadd.f32 %v4048, %v4240
  %v4242 = vpop.f32.mrf.mxu0
  %v4243 = vadd.f32 %v4050, %v4242
  %v4244 = vpop.f32.mrf.mxu0
  %v4245 = vadd.f32 %v4052, %v4244
  %v4246 = vpop.f32.mrf.mxu0
  %v4247 = vadd.f32 %v4054, %v4246
  %4248 = vmatprep.mubr.bf16.mxu0 %v1562
  %4249 = vmatmul.mubr.bf16.gmra.mxu0 %v1561
  %v4250 = vpop.f32.mrf.mxu0
  %v4251 = vadd.f32 %v4058, %v4250
  %v4252 = vpop.f32.mrf.mxu0
  %v4253 = vadd.f32 %v4060, %v4252
  %v4254 = vpop.f32.mrf.mxu0
  %v4255 = vadd.f32 %v4062, %v4254
  %v4256 = vpop.f32.mrf.mxu0
  %v4257 = vadd.f32 %v4064, %v4256
  %4258 = vmatprep.mubr.bf16.mxu0 %v1570
  %4259 = vmatmul.mubr.bf16.gmra.mxu0 %v1569
  %v4260 = vpop.f32.mrf.mxu0
  %v4261 = vadd.f32 %v4068, %v4260
  %v4262 = vpop.f32.mrf.mxu0
  %v4263 = vadd.f32 %v4070, %v4262
  %v4264 = vpop.f32.mrf.mxu0
  %v4265 = vadd.f32 %v4072, %v4264
  %v4266 = vpop.f32.mrf.mxu0
  %v4267 = vadd.f32 %v4074, %v4266
  %4268 = vmatprep.mubr.bf16.mxu0 %v1578
  %4269 = vmatmul.mubr.bf16.gmra.mxu0 %v1577
  %v4270 = vpop.f32.mrf.mxu0
  %v4271 = vadd.f32 %v4078, %v4270
  %v4272 = vpop.f32.mrf.mxu0
  %v4273 = vadd.f32 %v4080, %v4272
  %v4274 = vpop.f32.mrf.mxu0
  %v4275 = vadd.f32 %v4082, %v4274
  %v4276 = vpop.f32.mrf.mxu0
  %v4277 = vadd.f32 %v4084, %v4276
  %4278 = vmatprep.mubr.bf16.mxu0 %v1586
  %4279 = vmatmul.mubr.bf16.gmra.mxu0 %v1585
  %v4280 = vpop.f32.mrf.mxu0
  %v4281 = vadd.f32 %v4088, %v4280
  %v4282 = vpop.f32.mrf.mxu0
  %v4283 = vadd.f32 %v4090, %v4282
  %v4284 = vpop.f32.mrf.mxu0
  %v4285 = vadd.f32 %v4092, %v4284
  %v4286 = vpop.f32.mrf.mxu0
  %v4287 = vadd.f32 %v4094, %v4286
  %4288 = vmatprep.mubr.bf16.mxu0 %v1594
  %4289 = vmatmul.mubr.bf16.gmra.mxu0 %v1593
  %v4290 = vpop.f32.mrf.mxu0
  %v4291 = vadd.f32 %v4098, %v4290
  %v4292 = vpop.f32.mrf.mxu0
  %v4293 = vadd.f32 %v4100, %v4292
  %v4294 = vpop.f32.mrf.mxu0
  %v4295 = vadd.f32 %v4102, %v4294
  %v4296 = vpop.f32.mrf.mxu0
  %v4297 = vadd.f32 %v4104, %v4296
  %4298 = vmatprep.mubr.bf16.mxu0 %v1602
  %4299 = vmatmul.mubr.bf16.gmra.mxu0 %v1601
  %v4300 = vpop.f32.mrf.mxu0
  %v4301 = vadd.f32 %v4108, %v4300
  %v4302 = vpop.f32.mrf.mxu0
  %v4303 = vadd.f32 %v4110, %v4302
  %v4304 = vpop.f32.mrf.mxu0
  %v4305 = vadd.f32 %v4112, %v4304
  %v4306 = vpop.f32.mrf.mxu0
  %v4307 = vadd.f32 %v4114, %v4306
  %4308 = vmatprep.mubr.bf16.mxu0 %v1610
  %4309 = vmatmul.mubr.bf16.gmra.mxu0 %v1609
  %v4310 = vpop.f32.mrf.mxu0
  %v4311 = vadd.f32 %v4118, %v4310
  %v4312 = vpop.f32.mrf.mxu0
  %v4313 = vadd.f32 %v4120, %v4312
  %v4314 = vpop.f32.mrf.mxu0
  %v4315 = vadd.f32 %v4122, %v4314
  %v4316 = vpop.f32.mrf.mxu0
  %v4317 = vadd.f32 %v4124, %v4316
  %4318 = vmatprep.mubr.bf16.mxu0 %v1618
  %4319 = vmatmul.mubr.bf16.gmra.mxu0 %v1617
  %v4320 = vpop.f32.mrf.mxu0
  %v4321 = vadd.f32 %v4128, %v4320
  %v4322 = vpop.f32.mrf.mxu0
  %v4323 = vadd.f32 %v4130, %v4322
  %v4324 = vpop.f32.mrf.mxu0
  %v4325 = vadd.f32 %v4132, %v4324
  %v4326 = vpop.f32.mrf.mxu0
  %v4327 = vadd.f32 %v4134, %v4326
  %4328 = vmatprep.mubr.bf16.mxu0 %v1626
  %4329 = vmatmul.mubr.bf16.gmra.mxu0 %v1625
  %v4330 = vpop.f32.mrf.mxu0
  %v4331 = vadd.f32 %v4138, %v4330
  %v4332 = vpop.f32.mrf.mxu0
  %v4333 = vadd.f32 %v4140, %v4332
  %v4334 = vpop.f32.mrf.mxu0
  %v4335 = vadd.f32 %v4142, %v4334
  %v4336 = vpop.f32.mrf.mxu0
  %v4337 = vadd.f32 %v4144, %v4336
  %4338 = vmatprep.mubr.bf16.mxu0 %v1634
  %4339 = vmatmul.mubr.bf16.gmra.mxu0 %v1633
  %v4340 = vpop.f32.mrf.mxu0
  %v4341 = vadd.f32 %v4148, %v4340
  %v4342 = vpop.f32.mrf.mxu0
  %v4343 = vadd.f32 %v4150, %v4342
  %v4344 = vpop.f32.mrf.mxu0
  %v4345 = vadd.f32 %v4152, %v4344
  %v4346 = vpop.f32.mrf.mxu0
  %v4347 = vadd.f32 %v4154, %v4346
  %4348 = vmatprep.mubr.bf16.mxu0 %v1642
  %4349 = vmatmul.mubr.bf16.gmra.mxu0 %v1641
  %v4350 = vpop.f32.mrf.mxu0
  %v4351 = vadd.f32 %v4158, %v4350
  %v4352 = vpop.f32.mrf.mxu0
  %v4353 = vadd.f32 %v4160, %v4352
  %v4354 = vpop.f32.mrf.mxu0
  %v4355 = vadd.f32 %v4162, %v4354
  %v4356 = vpop.f32.mrf.mxu0
  %v4357 = vadd.f32 %v4164, %v4356
  %4358 = vmatprep.mubr.bf16.mxu0 %v1650
  %4359 = vmatmul.mubr.bf16.gmra.mxu0 %v1649
  %v4360 = vpop.f32.mrf.mxu0
  %v4361 = vadd.f32 %v4168, %v4360
  %v4362 = vpop.f32.mrf.mxu0
  %v4363 = vadd.f32 %v4170, %v4362
  %v4364 = vpop.f32.mrf.mxu0
  %v4365 = vadd.f32 %v4172, %v4364
  %v4366 = vpop.f32.mrf.mxu0
  %v4367 = vadd.f32 %v4174, %v4366
  %4368 = vmatprep.mubr.bf16.mxu0 %v1658
  %4369 = vmatmul.mubr.bf16.gmra.mxu0 %v1657
  %v4370 = vpop.f32.mrf.mxu0
  %v4371 = vadd.f32 %v4178, %v4370
  %v4372 = vpop.f32.mrf.mxu0
  %v4373 = vadd.f32 %v4180, %v4372
  %v4374 = vpop.f32.mrf.mxu0
  %v4375 = vadd.f32 %v4182, %v4374
  %v4376 = vpop.f32.mrf.mxu0
  %v4377 = vadd.f32 %v4184, %v4376
  %4378 = vdwg.mxu0
  %4379 = vmatprep.subr.bf16.mxu0 %v2868
  %4380 = vmatpush1.bf16.msra.mxu0 %v2867
  %4381 = vmatprep.subr.bf16.mxu0 %v2864
  %4382 = vmatpush1.bf16.msra.mxu0 %v2863
  %4383 = vmatprep.subr.bf16.mxu0 %v2860
  %4384 = vmatpush1.bf16.msra.mxu0 %v2859
  %4385 = vmatprep.subr.bf16.mxu0 %v2856
  %4386 = vmatpush1.bf16.msra.mxu0 %v2855
  %4387 = vmatprep.subr.bf16.mxu0 %v2852
  %4388 = vmatpush1.bf16.msra.mxu0 %v2851
  %4389 = vmatprep.subr.bf16.mxu0 %v2848
  %4390 = vmatpush1.bf16.msra.mxu0 %v2847
  %4391 = vmatprep.subr.bf16.mxu0 %v2844
  %4392 = vmatpush1.bf16.msra.mxu0 %v2843
  %4393 = vmatprep.subr.bf16.mxu0 %v2840
  %4394 = vmatpush1.bf16.msra.mxu0 %v2839
  %4395 = vmatprep.subr.bf16.mxu0 %v2900
  %4396 = vmatpush2.bf16.msra.mxu0 %v2899
  %4397 = vmatprep.subr.bf16.mxu0 %v2896
  %4398 = vmatpush2.bf16.msra.mxu0 %v2895
  %4399 = vmatprep.subr.bf16.mxu0 %v2892
  %4400 = vmatpush2.bf16.msra.mxu0 %v2891
  %4401 = vmatprep.subr.bf16.mxu0 %v2888
  %4402 = vmatpush2.bf16.msra.mxu0 %v2887
  %4403 = vmatprep.subr.bf16.mxu0 %v2884
  %4404 = vmatpush2.bf16.msra.mxu0 %v2883
  %4405 = vmatprep.subr.bf16.mxu0 %v2880
  %4406 = vmatpush2.bf16.msra.mxu0 %v2879
  %4407 = vmatprep.subr.bf16.mxu0 %v2876
  %4408 = vmatpush2.bf16.msra.mxu0 %v2875
  %4409 = vmatprep.subr.bf16.mxu0 %v2872
  %4410 = vmatpush2.bf16.msra.mxu0 %v2871
  %4411 = vmatprep.mubr.bf16.mxu0 %v1540
  %4412 = vmatmul.mubr.bf16.gmra.mxu0 %v1539
  %v4413 = vpop.f32.mrf.mxu0
  %v4414 = vadd.f32 %v4221, %v4413
  %v4415 = vpop.f32.mrf.mxu0
  %v4416 = vadd.f32 %v4223, %v4415
  %v4417 = vpop.f32.mrf.mxu0
  %v4418 = vadd.f32 %v4225, %v4417
  %v4419 = vpop.f32.mrf.mxu0
  %v4420 = vadd.f32 %v4227, %v4419
  %4421 = vmatprep.mubr.bf16.mxu0 %v1548
  %4422 = vmatmul.mubr.bf16.gmra.mxu0 %v1547
  %v4423 = vpop.f32.mrf.mxu0
  %v4424 = vadd.f32 %v4231, %v4423
  %v4425 = vpop.f32.mrf.mxu0
  %v4426 = vadd.f32 %v4233, %v4425
  %v4427 = vpop.f32.mrf.mxu0
  %v4428 = vadd.f32 %v4235, %v4427
  %v4429 = vpop.f32.mrf.mxu0
  %v4430 = vadd.f32 %v4237, %v4429
  %4431 = vmatprep.mubr.bf16.mxu0 %v1556
  %4432 = vmatmul.mubr.bf16.gmra.mxu0 %v1555
  %v4433 = vpop.f32.mrf.mxu0
  %v4434 = vadd.f32 %v4241, %v4433
  %v4435 = vpop.f32.mrf.mxu0
  %v4436 = vadd.f32 %v4243, %v4435
  %v4437 = vpop.f32.mrf.mxu0
  %v4438 = vadd.f32 %v4245, %v4437
  %v4439 = vpop.f32.mrf.mxu0
  %v4440 = vadd.f32 %v4247, %v4439
  %4441 = vmatprep.mubr.bf16.mxu0 %v1564
  %4442 = vmatmul.mubr.bf16.gmra.mxu0 %v1563
  %v4443 = vpop.f32.mrf.mxu0
  %v4444 = vadd.f32 %v4251, %v4443
  %v4445 = vpop.f32.mrf.mxu0
  %v4446 = vadd.f32 %v4253, %v4445
  %v4447 = vpop.f32.mrf.mxu0
  %v4448 = vadd.f32 %v4255, %v4447
  %v4449 = vpop.f32.mrf.mxu0
  %v4450 = vadd.f32 %v4257, %v4449
  %4451 = vmatprep.mubr.bf16.mxu0 %v1572
  %4452 = vmatmul.mubr.bf16.gmra.mxu0 %v1571
  %v4453 = vpop.f32.mrf.mxu0
  %v4454 = vadd.f32 %v4261, %v4453
  %v4455 = vpop.f32.mrf.mxu0
  %v4456 = vadd.f32 %v4263, %v4455
  %v4457 = vpop.f32.mrf.mxu0
  %v4458 = vadd.f32 %v4265, %v4457
  %v4459 = vpop.f32.mrf.mxu0
  %v4460 = vadd.f32 %v4267, %v4459
  %4461 = vmatprep.mubr.bf16.mxu0 %v1580
  %4462 = vmatmul.mubr.bf16.gmra.mxu0 %v1579
  %v4463 = vpop.f32.mrf.mxu0
  %v4464 = vadd.f32 %v4271, %v4463
  %v4465 = vpop.f32.mrf.mxu0
  %v4466 = vadd.f32 %v4273, %v4465
  %v4467 = vpop.f32.mrf.mxu0
  %v4468 = vadd.f32 %v4275, %v4467
  %v4469 = vpop.f32.mrf.mxu0
  %v4470 = vadd.f32 %v4277, %v4469
  %4471 = vmatprep.mubr.bf16.mxu0 %v1588
  %4472 = vmatmul.mubr.bf16.gmra.mxu0 %v1587
  %v4473 = vpop.f32.mrf.mxu0
  %v4474 = vadd.f32 %v4281, %v4473
  %v4475 = vpop.f32.mrf.mxu0
  %v4476 = vadd.f32 %v4283, %v4475
  %v4477 = vpop.f32.mrf.mxu0
  %v4478 = vadd.f32 %v4285, %v4477
  %v4479 = vpop.f32.mrf.mxu0
  %v4480 = vadd.f32 %v4287, %v4479
  %4481 = vmatprep.mubr.bf16.mxu0 %v1596
  %4482 = vmatmul.mubr.bf16.gmra.mxu0 %v1595
  %v4483 = vpop.f32.mrf.mxu0
  %v4484 = vadd.f32 %v4291, %v4483
  %v4485 = vpop.f32.mrf.mxu0
  %v4486 = vadd.f32 %v4293, %v4485
  %v4487 = vpop.f32.mrf.mxu0
  %v4488 = vadd.f32 %v4295, %v4487
  %v4489 = vpop.f32.mrf.mxu0
  %v4490 = vadd.f32 %v4297, %v4489
  %4491 = vmatprep.mubr.bf16.mxu0 %v1604
  %4492 = vmatmul.mubr.bf16.gmra.mxu0 %v1603
  %v4493 = vpop.f32.mrf.mxu0
  %v4494 = vadd.f32 %v4301, %v4493
  %v4495 = vpop.f32.mrf.mxu0
  %v4496 = vadd.f32 %v4303, %v4495
  %v4497 = vpop.f32.mrf.mxu0
  %v4498 = vadd.f32 %v4305, %v4497
  %v4499 = vpop.f32.mrf.mxu0
  %v4500 = vadd.f32 %v4307, %v4499
  %4501 = vmatprep.mubr.bf16.mxu0 %v1612
  %4502 = vmatmul.mubr.bf16.gmra.mxu0 %v1611
  %v4503 = vpop.f32.mrf.mxu0
  %v4504 = vadd.f32 %v4311, %v4503
  %v4505 = vpop.f32.mrf.mxu0
  %v4506 = vadd.f32 %v4313, %v4505
  %v4507 = vpop.f32.mrf.mxu0
  %v4508 = vadd.f32 %v4315, %v4507
  %v4509 = vpop.f32.mrf.mxu0
  %v4510 = vadd.f32 %v4317, %v4509
  %4511 = vmatprep.mubr.bf16.mxu0 %v1620
  %4512 = vmatmul.mubr.bf16.gmra.mxu0 %v1619
  %v4513 = vpop.f32.mrf.mxu0
  %v4514 = vadd.f32 %v4321, %v4513
  %v4515 = vpop.f32.mrf.mxu0
  %v4516 = vadd.f32 %v4323, %v4515
  %v4517 = vpop.f32.mrf.mxu0
  %v4518 = vadd.f32 %v4325, %v4517
  %v4519 = vpop.f32.mrf.mxu0
  %v4520 = vadd.f32 %v4327, %v4519
  %4521 = vmatprep.mubr.bf16.mxu0 %v1628
  %4522 = vmatmul.mubr.bf16.gmra.mxu0 %v1627
  %v4523 = vpop.f32.mrf.mxu0
  %v4524 = vadd.f32 %v4331, %v4523
  %v4525 = vpop.f32.mrf.mxu0
  %v4526 = vadd.f32 %v4333, %v4525
  %v4527 = vpop.f32.mrf.mxu0
  %v4528 = vadd.f32 %v4335, %v4527
  %v4529 = vpop.f32.mrf.mxu0
  %v4530 = vadd.f32 %v4337, %v4529
  %4531 = vmatprep.mubr.bf16.mxu0 %v1636
  %4532 = vmatmul.mubr.bf16.gmra.mxu0 %v1635
  %v4533 = vpop.f32.mrf.mxu0
  %v4534 = vadd.f32 %v4341, %v4533
  %v4535 = vpop.f32.mrf.mxu0
  %v4536 = vadd.f32 %v4343, %v4535
  %v4537 = vpop.f32.mrf.mxu0
  %v4538 = vadd.f32 %v4345, %v4537
  %v4539 = vpop.f32.mrf.mxu0
  %v4540 = vadd.f32 %v4347, %v4539
  %4541 = vmatprep.mubr.bf16.mxu0 %v1644
  %4542 = vmatmul.mubr.bf16.gmra.mxu0 %v1643
  %v4543 = vpop.f32.mrf.mxu0
  %v4544 = vadd.f32 %v4351, %v4543
  %v4545 = vpop.f32.mrf.mxu0
  %v4546 = vadd.f32 %v4353, %v4545
  %v4547 = vpop.f32.mrf.mxu0
  %v4548 = vadd.f32 %v4355, %v4547
  %v4549 = vpop.f32.mrf.mxu0
  %v4550 = vadd.f32 %v4357, %v4549
  %4551 = vmatprep.mubr.bf16.mxu0 %v1652
  %4552 = vmatmul.mubr.bf16.gmra.mxu0 %v1651
  %v4553 = vpop.f32.mrf.mxu0
  %v4554 = vadd.f32 %v4361, %v4553
  %v4555 = vpop.f32.mrf.mxu0
  %v4556 = vadd.f32 %v4363, %v4555
  %v4557 = vpop.f32.mrf.mxu0
  %v4558 = vadd.f32 %v4365, %v4557
  %v4559 = vpop.f32.mrf.mxu0
  %v4560 = vadd.f32 %v4367, %v4559
  %4561 = vmatprep.mubr.bf16.mxu0 %v1660
  %4562 = vmatmul.mubr.bf16.gmra.mxu0 %v1659
  %v4563 = vpop.f32.mrf.mxu0
  %v4564 = vadd.f32 %v4371, %v4563
  %v4565 = vpop.f32.mrf.mxu0
  %v4566 = vadd.f32 %v4373, %v4565
  %v4567 = vpop.f32.mrf.mxu0
  %v4568 = vadd.f32 %v4375, %v4567
  %v4569 = vpop.f32.mrf.mxu0
  %v4570 = vadd.f32 %v4377, %v4569
  %4571 = vdwg.mxu0
  %4572 = vmatprep.subr.bf16.mxu0 %v2932
  %4573 = vmatpush1.bf16.msra.mxu0 %v2931
  %4574 = vmatprep.subr.bf16.mxu0 %v2928
  %4575 = vmatpush1.bf16.msra.mxu0 %v2927
  %4576 = vmatprep.subr.bf16.mxu0 %v2924
  %4577 = vmatpush1.bf16.msra.mxu0 %v2923
  %4578 = vmatprep.subr.bf16.mxu0 %v2920
  %4579 = vmatpush1.bf16.msra.mxu0 %v2919
  %4580 = vmatprep.subr.bf16.mxu0 %v2916
  %4581 = vmatpush1.bf16.msra.mxu0 %v2915
  %4582 = vmatprep.subr.bf16.mxu0 %v2912
  %4583 = vmatpush1.bf16.msra.mxu0 %v2911
  %4584 = vmatprep.subr.bf16.mxu0 %v2908
  %4585 = vmatpush1.bf16.msra.mxu0 %v2907
  %4586 = vmatprep.subr.bf16.mxu0 %v2904
  %4587 = vmatpush1.bf16.msra.mxu0 %v2903
  %4588 = vmatprep.subr.bf16.mxu0 %v2964
  %4589 = vmatpush2.bf16.msra.mxu0 %v2963
  %4590 = vmatprep.subr.bf16.mxu0 %v2960
  %4591 = vmatpush2.bf16.msra.mxu0 %v2959
  %4592 = vmatprep.subr.bf16.mxu0 %v2956
  %4593 = vmatpush2.bf16.msra.mxu0 %v2955
  %4594 = vmatprep.subr.bf16.mxu0 %v2952
  %4595 = vmatpush2.bf16.msra.mxu0 %v2951
  %4596 = vmatprep.subr.bf16.mxu0 %v2948
  %4597 = vmatpush2.bf16.msra.mxu0 %v2947
  %4598 = vmatprep.subr.bf16.mxu0 %v2944
  %4599 = vmatpush2.bf16.msra.mxu0 %v2943
  %4600 = vmatprep.subr.bf16.mxu0 %v2940
  %4601 = vmatpush2.bf16.msra.mxu0 %v2939
  %4602 = vmatprep.subr.bf16.mxu0 %v2936
  %4603 = vmatpush2.bf16.msra.mxu0 %v2935
  %4604 = vmatprep.mubr.bf16.mxu0 %v1542
  %4605 = vmatmul.mubr.bf16.gmra.mxu0 %v1541
  %v4606 = vpop.f32.mrf.mxu0
  %v4607 = vadd.f32 %v4414, %v4606
  %v4608 = vpop.f32.mrf.mxu0
  %v4609 = vadd.f32 %v4416, %v4608
  %v4610 = vpop.f32.mrf.mxu0
  %v4611 = vadd.f32 %v4418, %v4610
  %v4612 = vpop.f32.mrf.mxu0
  %v4613 = vadd.f32 %v4420, %v4612
  %4614 = vmatprep.mubr.bf16.mxu0 %v1550
  %4615 = vmatmul.mubr.bf16.gmra.mxu0 %v1549
  %v4616 = vpop.f32.mrf.mxu0
  %v4617 = vadd.f32 %v4424, %v4616
  %v4618 = vpop.f32.mrf.mxu0
  %v4619 = vadd.f32 %v4426, %v4618
  %v4620 = vpop.f32.mrf.mxu0
  %v4621 = vadd.f32 %v4428, %v4620
  %v4622 = vpop.f32.mrf.mxu0
  %v4623 = vadd.f32 %v4430, %v4622
  %4624 = vmatprep.mubr.bf16.mxu0 %v1558
  %4625 = vmatmul.mubr.bf16.gmra.mxu0 %v1557
  %v4626 = vpop.f32.mrf.mxu0
  %v4627 = vadd.f32 %v4434, %v4626
  %v4628 = vpop.f32.mrf.mxu0
  %v4629 = vadd.f32 %v4436, %v4628
  %v4630 = vpop.f32.mrf.mxu0
  %v4631 = vadd.f32 %v4438, %v4630
  %v4632 = vpop.f32.mrf.mxu0
  %v4633 = vadd.f32 %v4440, %v4632
  %4634 = vmatprep.mubr.bf16.mxu0 %v1566
  %4635 = vmatmul.mubr.bf16.gmra.mxu0 %v1565
  %v4636 = vpop.f32.mrf.mxu0
  %v4637 = vadd.f32 %v4444, %v4636
  %v4638 = vpop.f32.mrf.mxu0
  %v4639 = vadd.f32 %v4446, %v4638
  %v4640 = vpop.f32.mrf.mxu0
  %v4641 = vadd.f32 %v4448, %v4640
  %v4642 = vpop.f32.mrf.mxu0
  %v4643 = vadd.f32 %v4450, %v4642
  %4644 = vmatprep.mubr.bf16.mxu0 %v1574
  %4645 = vmatmul.mubr.bf16.gmra.mxu0 %v1573
  %v4646 = vpop.f32.mrf.mxu0
  %v4647 = vadd.f32 %v4454, %v4646
  %v4648 = vpop.f32.mrf.mxu0
  %v4649 = vadd.f32 %v4456, %v4648
  %v4650 = vpop.f32.mrf.mxu0
  %v4651 = vadd.f32 %v4458, %v4650
  %v4652 = vpop.f32.mrf.mxu0
  %v4653 = vadd.f32 %v4460, %v4652
  %4654 = vmatprep.mubr.bf16.mxu0 %v1582
  %4655 = vmatmul.mubr.bf16.gmra.mxu0 %v1581
  %v4656 = vpop.f32.mrf.mxu0
  %v4657 = vadd.f32 %v4464, %v4656
  %v4658 = vpop.f32.mrf.mxu0
  %v4659 = vadd.f32 %v4466, %v4658
  %v4660 = vpop.f32.mrf.mxu0
  %v4661 = vadd.f32 %v4468, %v4660
  %v4662 = vpop.f32.mrf.mxu0
  %v4663 = vadd.f32 %v4470, %v4662
  %4664 = vmatprep.mubr.bf16.mxu0 %v1590
  %4665 = vmatmul.mubr.bf16.gmra.mxu0 %v1589
  %v4666 = vpop.f32.mrf.mxu0
  %v4667 = vadd.f32 %v4474, %v4666
  %v4668 = vpop.f32.mrf.mxu0
  %v4669 = vadd.f32 %v4476, %v4668
  %v4670 = vpop.f32.mrf.mxu0
  %v4671 = vadd.f32 %v4478, %v4670
  %v4672 = vpop.f32.mrf.mxu0
  %v4673 = vadd.f32 %v4480, %v4672
  %4674 = vmatprep.mubr.bf16.mxu0 %v1598
  %4675 = vmatmul.mubr.bf16.gmra.mxu0 %v1597
  %v4676 = vpop.f32.mrf.mxu0
  %v4677 = vadd.f32 %v4484, %v4676
  %v4678 = vpop.f32.mrf.mxu0
  %v4679 = vadd.f32 %v4486, %v4678
  %v4680 = vpop.f32.mrf.mxu0
  %v4681 = vadd.f32 %v4488, %v4680
  %v4682 = vpop.f32.mrf.mxu0
  %v4683 = vadd.f32 %v4490, %v4682
  %4684 = vmatprep.mubr.bf16.mxu0 %v1606
  %4685 = vmatmul.mubr.bf16.gmra.mxu0 %v1605
  %v4686 = vpop.f32.mrf.mxu0
  %v4687 = vadd.f32 %v4494, %v4686
  %v4688 = vpop.f32.mrf.mxu0
  %v4689 = vadd.f32 %v4496, %v4688
  %v4690 = vpop.f32.mrf.mxu0
  %v4691 = vadd.f32 %v4498, %v4690
  %v4692 = vpop.f32.mrf.mxu0
  %v4693 = vadd.f32 %v4500, %v4692
  %4694 = vmatprep.mubr.bf16.mxu0 %v1614
  %4695 = vmatmul.mubr.bf16.gmra.mxu0 %v1613
  %v4696 = vpop.f32.mrf.mxu0
  %v4697 = vadd.f32 %v4504, %v4696
  %v4698 = vpop.f32.mrf.mxu0
  %v4699 = vadd.f32 %v4506, %v4698
  %v4700 = vpop.f32.mrf.mxu0
  %v4701 = vadd.f32 %v4508, %v4700
  %v4702 = vpop.f32.mrf.mxu0
  %v4703 = vadd.f32 %v4510, %v4702
  %4704 = vmatprep.mubr.bf16.mxu0 %v1622
  %4705 = vmatmul.mubr.bf16.gmra.mxu0 %v1621
  %v4706 = vpop.f32.mrf.mxu0
  %v4707 = vadd.f32 %v4514, %v4706
  %v4708 = vpop.f32.mrf.mxu0
  %v4709 = vadd.f32 %v4516, %v4708
  %v4710 = vpop.f32.mrf.mxu0
  %v4711 = vadd.f32 %v4518, %v4710
  %v4712 = vpop.f32.mrf.mxu0
  %v4713 = vadd.f32 %v4520, %v4712
  %4714 = vmatprep.mubr.bf16.mxu0 %v1630
  %4715 = vmatmul.mubr.bf16.gmra.mxu0 %v1629
  %v4716 = vpop.f32.mrf.mxu0
  %v4717 = vadd.f32 %v4524, %v4716
  %v4718 = vpop.f32.mrf.mxu0
  %v4719 = vadd.f32 %v4526, %v4718
  %v4720 = vpop.f32.mrf.mxu0
  %v4721 = vadd.f32 %v4528, %v4720
  %v4722 = vpop.f32.mrf.mxu0
  %v4723 = vadd.f32 %v4530, %v4722
  %4724 = vmatprep.mubr.bf16.mxu0 %v1638
  %4725 = vmatmul.mubr.bf16.gmra.mxu0 %v1637
  %v4726 = vpop.f32.mrf.mxu0
  %v4727 = vadd.f32 %v4534, %v4726
  %v4728 = vpop.f32.mrf.mxu0
  %v4729 = vadd.f32 %v4536, %v4728
  %v4730 = vpop.f32.mrf.mxu0
  %v4731 = vadd.f32 %v4538, %v4730
  %v4732 = vpop.f32.mrf.mxu0
  %v4733 = vadd.f32 %v4540, %v4732
  %4734 = vmatprep.mubr.bf16.mxu0 %v1646
  %4735 = vmatmul.mubr.bf16.gmra.mxu0 %v1645
  %v4736 = vpop.f32.mrf.mxu0
  %v4737 = vadd.f32 %v4544, %v4736
  %v4738 = vpop.f32.mrf.mxu0
  %v4739 = vadd.f32 %v4546, %v4738
  %v4740 = vpop.f32.mrf.mxu0
  %v4741 = vadd.f32 %v4548, %v4740
  %v4742 = vpop.f32.mrf.mxu0
  %v4743 = vadd.f32 %v4550, %v4742
  %4744 = vmatprep.mubr.bf16.mxu0 %v1654
  %4745 = vmatmul.mubr.bf16.gmra.mxu0 %v1653
  %v4746 = vpop.f32.mrf.mxu0
  %v4747 = vadd.f32 %v4554, %v4746
  %v4748 = vpop.f32.mrf.mxu0
  %v4749 = vadd.f32 %v4556, %v4748
  %v4750 = vpop.f32.mrf.mxu0
  %v4751 = vadd.f32 %v4558, %v4750
  %v4752 = vpop.f32.mrf.mxu0
  %v4753 = vadd.f32 %v4560, %v4752
  %4754 = vmatprep.mubr.bf16.mxu0 %v1662
  %4755 = vmatmul.mubr.bf16.gmra.mxu0 %v1661
  %v4756 = vpop.f32.mrf.mxu0
  %v4757 = vadd.f32 %v4564, %v4756
  %v4758 = vpop.f32.mrf.mxu0
  %v4759 = vadd.f32 %v4566, %v4758
  %v4760 = vpop.f32.mrf.mxu0
  %v4761 = vadd.f32 %v4568, %v4760
  %v4762 = vpop.f32.mrf.mxu0
  %v4763 = vadd.f32 %v4570, %v4762
  %4764 = vdwg.mxu0
  %v4765 = vmax.f32 %v3835, 0.0
  %v4766 = vmax.f32 %v3837, 0.0
  %v4767 = vmax.f32 %v4607, 0.0
  %v4768 = vmax.f32 %v4609, 0.0
  %v4769 = vmax.f32 %v3839, 0.0
  %v4770 = vmax.f32 %v3841, 0.0
  %v4771 = vmax.f32 %v4611, 0.0
  %v4772 = vmax.f32 %v4613, 0.0
  %v4773 = vmax.f32 %v3845, 0.0
  %v4774 = vmax.f32 %v3847, 0.0
  %v4775 = vmax.f32 %v4617, 0.0
  %v4776 = vmax.f32 %v4619, 0.0
  %v4777 = vmax.f32 %v3849, 0.0
  %v4778 = vmax.f32 %v3851, 0.0
  %v4779 = vmax.f32 %v4621, 0.0
  %v4780 = vmax.f32 %v4623, 0.0
  %v4781 = vmax.f32 %v3855, 0.0
  %v4782 = vmax.f32 %v3857, 0.0
  %v4783 = vmax.f32 %v4627, 0.0
  %v4784 = vmax.f32 %v4629, 0.0
  %v4785 = vmax.f32 %v3859, 0.0
  %v4786 = vmax.f32 %v3861, 0.0
  %v4787 = vmax.f32 %v4631, 0.0
  %v4788 = vmax.f32 %v4633, 0.0
  %v4789 = vmax.f32 %v3865, 0.0
  %v4790 = vmax.f32 %v3867, 0.0
  %v4791 = vmax.f32 %v4637, 0.0
  %v4792 = vmax.f32 %v4639, 0.0
  %v4793 = vmax.f32 %v3869, 0.0
  %v4794 = vmax.f32 %v3871, 0.0
  %v4795 = vmax.f32 %v4641, 0.0
  %v4796 = vmax.f32 %v4643, 0.0
  %v4797 = vmax.f32 %v3875, 0.0
  %v4798 = vmax.f32 %v3877, 0.0
  %v4799 = vmax.f32 %v4647, 0.0
  %v4800 = vmax.f32 %v4649, 0.0
  %v4801 = vmax.f32 %v3879, 0.0
  %v4802 = vmax.f32 %v3881, 0.0
  %v4803 = vmax.f32 %v4651, 0.0
  %v4804 = vmax.f32 %v4653, 0.0
  %v4805 = vmax.f32 %v3885, 0.0
  %v4806 = vmax.f32 %v3887, 0.0
  %v4807 = vmax.f32 %v4657, 0.0
  %v4808 = vmax.f32 %v4659, 0.0
  %v4809 = vmax.f32 %v3889, 0.0
  %v4810 = vmax.f32 %v3891, 0.0
  %v4811 = vmax.f32 %v4661, 0.0
  %v4812 = vmax.f32 %v4663, 0.0
  %v4813 = vmax.f32 %v3895, 0.0
  %v4814 = vmax.f32 %v3897, 0.0
  %v4815 = vmax.f32 %v4667, 0.0
  %v4816 = vmax.f32 %v4669, 0.0
  %v4817 = vmax.f32 %v3899, 0.0
  %v4818 = vmax.f32 %v3901, 0.0
  %v4819 = vmax.f32 %v4671, 0.0
  %v4820 = vmax.f32 %v4673, 0.0
  %v4821 = vmax.f32 %v3905, 0.0
  %v4822 = vmax.f32 %v3907, 0.0
  %v4823 = vmax.f32 %v4677, 0.0
  %v4824 = vmax.f32 %v4679, 0.0
  %v4825 = vmax.f32 %v3909, 0.0
  %v4826 = vmax.f32 %v3911, 0.0
  %v4827 = vmax.f32 %v4681, 0.0
  %v4828 = vmax.f32 %v4683, 0.0
  %v4829 = vmax.f32 %v3915, 0.0
  %v4830 = vmax.f32 %v3917, 0.0
  %v4831 = vmax.f32 %v4687, 0.0
  %v4832 = vmax.f32 %v4689, 0.0
  %v4833 = vmax.f32 %v3919, 0.0
  %v4834 = vmax.f32 %v3921, 0.0
  %v4835 = vmax.f32 %v4691, 0.0
  %v4836 = vmax.f32 %v4693, 0.0
  %v4837 = vmax.f32 %v3925, 0.0
  %v4838 = vmax.f32 %v3927, 0.0
  %v4839 = vmax.f32 %v4697, 0.0
  %v4840 = vmax.f32 %v4699, 0.0
  %v4841 = vmax.f32 %v3929, 0.0
  %v4842 = vmax.f32 %v3931, 0.0
  %v4843 = vmax.f32 %v4701, 0.0
  %v4844 = vmax.f32 %v4703, 0.0
  %v4845 = vmax.f32 %v3935, 0.0
  %v4846 = vmax.f32 %v3937, 0.0
  %v4847 = vmax.f32 %v4707, 0.0
  %v4848 = vmax.f32 %v4709, 0.0
  %v4849 = vmax.f32 %v3939, 0.0
  %v4850 = vmax.f32 %v3941, 0.0
  %v4851 = vmax.f32 %v4711, 0.0
  %v4852 = vmax.f32 %v4713, 0.0
  %v4853 = vmax.f32 %v3945, 0.0
  %v4854 = vmax.f32 %v3947, 0.0
  %v4855 = vmax.f32 %v4717, 0.0
  %v4856 = vmax.f32 %v4719, 0.0
  %v4857 = vmax.f32 %v3949, 0.0
  %v4858 = vmax.f32 %v3951, 0.0
  %v4859 = vmax.f32 %v4721, 0.0
  %v4860 = vmax.f32 %v4723, 0.0
  %v4861 = vmax.f32 %v3955, 0.0
  %v4862 = vmax.f32 %v3957, 0.0
  %v4863 = vmax.f32 %v4727, 0.0
  %v4864 = vmax.f32 %v4729, 0.0
  %v4865 = vmax.f32 %v3959, 0.0
  %v4866 = vmax.f32 %v3961, 0.0
  %v4867 = vmax.f32 %v4731, 0.0
  %v4868 = vmax.f32 %v4733, 0.0
  %v4869 = vmax.f32 %v3965, 0.0
  %v4870 = vmax.f32 %v3967, 0.0
  %v4871 = vmax.f32 %v4737, 0.0
  %v4872 = vmax.f32 %v4739, 0.0
  %v4873 = vmax.f32 %v3969, 0.0
  %v4874 = vmax.f32 %v3971, 0.0
  %v4875 = vmax.f32 %v4741, 0.0
  %v4876 = vmax.f32 %v4743, 0.0
  %v4877 = vmax.f32 %v3975, 0.0
  %v4878 = vmax.f32 %v3977, 0.0
  %v4879 = vmax.f32 %v4747, 0.0
  %v4880 = vmax.f32 %v4749, 0.0
  %v4881 = vmax.f32 %v3979, 0.0
  %v4882 = vmax.f32 %v3981, 0.0
  %v4883 = vmax.f32 %v4751, 0.0
  %v4884 = vmax.f32 %v4753, 0.0
  %v4885 = vmax.f32 %v3985, 0.0
  %v4886 = vmax.f32 %v3987, 0.0
  %v4887 = vmax.f32 %v4757, 0.0
  %v4888 = vmax.f32 %v4759, 0.0
  %v4889 = vmax.f32 %v3989, 0.0
  %v4890 = vmax.f32 %v3991, 0.0
  %v4891 = vmax.f32 %v4761, 0.0
  %v4892 = vmax.f32 %v4763, 0.0
  %v4893 = vpack.c.bf16 %v4769, %v4765
  %v4894 = vpack.c.bf16 %v4770, %v4766
  %v4895 = vpack.c.bf16 %v4771, %v4767
  %v4896 = vpack.c.bf16 %v4772, %v4768
  %v4897 = vpack.c.bf16 %v4777, %v4773
  %v4898 = vpack.c.bf16 %v4778, %v4774
  %v4899 = vpack.c.bf16 %v4779, %v4775
  %v4900 = vpack.c.bf16 %v4780, %v4776
  %v4901 = vpack.c.bf16 %v4785, %v4781
  %v4902 = vpack.c.bf16 %v4786, %v4782
  %v4903 = vpack.c.bf16 %v4787, %v4783
  %v4904 = vpack.c.bf16 %v4788, %v4784
  %v4905 = vpack.c.bf16 %v4793, %v4789
  %v4906 = vpack.c.bf16 %v4794, %v4790
  %v4907 = vpack.c.bf16 %v4795, %v4791
  %v4908 = vpack.c.bf16 %v4796, %v4792
  %v4909 = vpack.c.bf16 %v4801, %v4797
  %v4910 = vpack.c.bf16 %v4802, %v4798
  %v4911 = vpack.c.bf16 %v4803, %v4799
  %v4912 = vpack.c.bf16 %v4804, %v4800
  %v4913 = vpack.c.bf16 %v4809, %v4805
  %v4914 = vpack.c.bf16 %v4810, %v4806
  %v4915 = vpack.c.bf16 %v4811, %v4807
  %v4916 = vpack.c.bf16 %v4812, %v4808
  %v4917 = vpack.c.bf16 %v4817, %v4813
  %v4918 = vpack.c.bf16 %v4818, %v4814
  %v4919 = vpack.c.bf16 %v4819, %v4815
  %v4920 = vpack.c.bf16 %v4820, %v4816
  %v4921 = vpack.c.bf16 %v4825, %v4821
  %v4922 = vpack.c.bf16 %v4826, %v4822
  %v4923 = vpack.c.bf16 %v4827, %v4823
  %v4924 = vpack.c.bf16 %v4828, %v4824
  %v4925 = vpack.c.bf16 %v4833, %v4829
  %v4926 = vpack.c.bf16 %v4834, %v4830
  %v4927 = vpack.c.bf16 %v4835, %v4831
  %v4928 = vpack.c.bf16 %v4836, %v4832
  %v4929 = vpack.c.bf16 %v4841, %v4837
  %v4930 = vpack.c.bf16 %v4842, %v4838
  %v4931 = vpack.c.bf16 %v4843, %v4839
  %v4932 = vpack.c.bf16 %v4844, %v4840
  %v4933 = vpack.c.bf16 %v4849, %v4845
  %v4934 = vpack.c.bf16 %v4850, %v4846
  %v4935 = vpack.c.bf16 %v4851, %v4847
  %v4936 = vpack.c.bf16 %v4852, %v4848
  %v4937 = vpack.c.bf16 %v4857, %v4853
  %v4938 = vpack.c.bf16 %v4858, %v4854
  %v4939 = vpack.c.bf16 %v4859, %v4855
  %v4940 = vpack.c.bf16 %v4860, %v4856
  %v4941 = vpack.c.bf16 %v4865, %v4861
  %v4942 = vpack.c.bf16 %v4866, %v4862
  %v4943 = vpack.c.bf16 %v4867, %v4863
  %v4944 = vpack.c.bf16 %v4868, %v4864
  %v4945 = vpack.c.bf16 %v4873, %v4869
  %v4946 = vpack.c.bf16 %v4874, %v4870
  %v4947 = vpack.c.bf16 %v4875, %v4871
  %v4948 = vpack.c.bf16 %v4876, %v4872
  %v4949 = vpack.c.bf16 %v4881, %v4877
  %v4950 = vpack.c.bf16 %v4882, %v4878
  %v4951 = vpack.c.bf16 %v4883, %v4879
  %v4952 = vpack.c.bf16 %v4884, %v4880
  %v4953 = vpack.c.bf16 %v4889, %v4885
  %v4954 = vpack.c.bf16 %v4890, %v4886
  %v4955 = vpack.c.bf16 %v4891, %v4887
  %v4956 = vpack.c.bf16 %v4892, %v4888
  %v4957 = vld [vmem:[%s5] sm:$0xf]
  %v4958 = vld [vmem:[%s5 + $0x4] sm:$0xf]
  %v4959 = vld [vmem:[%s5 + $0x8] sm:$0xf]
  %v4960 = vld [vmem:[%s5 + $0xc] sm:$0xf]
  %v4961 = vld [vmem:[%s5 + $0x10] sm:$0xf]
  %v4962 = vld [vmem:[%s5 + $0x14] sm:$0xf]
  %v4963 = vld [vmem:[%s5 + $0x18] sm:$0xf]
  %v4964 = vld [vmem:[%s5 + $0x1c] sm:$0xf]
  %v4965 = vld [vmem:[%s5 + $0x20] sm:$0xf]
  %v4966 = vld [vmem:[%s5 + $0x24] sm:$0xf]
  %v4967 = vld [vmem:[%s5 + $0x28] sm:$0xf]
  %v4968 = vld [vmem:[%s5 + $0x2c] sm:$0xf]
  %v4969 = vld [vmem:[%s5 + $0x30] sm:$0xf]
  %v4970 = vld [vmem:[%s5 + $0x34] sm:$0xf]
  %v4971 = vld [vmem:[%s5 + $0x38] sm:$0xf]
  %v4972 = vld [vmem:[%s5 + $0x3c] sm:$0xf]
  %v4973 = vld [vmem:[%s5 + $0x40] sm:$0xf]
  %v4974 = vld [vmem:[%s5 + $0x44] sm:$0xf]
  %v4975 = vld [vmem:[%s5 + $0x48] sm:$0xf]
  %v4976 = vld [vmem:[%s5 + $0x4c] sm:$0xf]
  %v4977 = vld [vmem:[%s5 + $0x50] sm:$0xf]
  %v4978 = vld [vmem:[%s5 + $0x54] sm:$0xf]
  %v4979 = vld [vmem:[%s5 + $0x58] sm:$0xf]
  %v4980 = vld [vmem:[%s5 + $0x5c] sm:$0xf]
  %v4981 = vld [vmem:[%s5 + $0x60] sm:$0xf]
  %v4982 = vld [vmem:[%s5 + $0x64] sm:$0xf]
  %v4983 = vld [vmem:[%s5 + $0x68] sm:$0xf]
  %v4984 = vld [vmem:[%s5 + $0x6c] sm:$0xf]
  %v4985 = vld [vmem:[%s5 + $0x70] sm:$0xf]
  %v4986 = vld [vmem:[%s5 + $0x74] sm:$0xf]
  %v4987 = vld [vmem:[%s5 + $0x78] sm:$0xf]
  %v4988 = vld [vmem:[%s5 + $0x7c] sm:$0xf]
  %v4989 = vld [vmem:[%s5 + $0x80] sm:$0xf]
  %v4990 = vld [vmem:[%s5 + $0x84] sm:$0xf]
  %v4991 = vld [vmem:[%s5 + $0x88] sm:$0xf]
  %v4992 = vld [vmem:[%s5 + $0x8c] sm:$0xf]
  %v4993 = vld [vmem:[%s5 + $0x90] sm:$0xf]
  %v4994 = vld [vmem:[%s5 + $0x94] sm:$0xf]
  %v4995 = vld [vmem:[%s5 + $0x98] sm:$0xf]
  %v4996 = vld [vmem:[%s5 + $0x9c] sm:$0xf]
  %v4997 = vld [vmem:[%s5 + $0xa0] sm:$0xf]
  %v4998 = vld [vmem:[%s5 + $0xa4] sm:$0xf]
  %v4999 = vld [vmem:[%s5 + $0xa8] sm:$0xf]
  %v5000 = vld [vmem:[%s5 + $0xac] sm:$0xf]
  %v5001 = vld [vmem:[%s5 + $0xb0] sm:$0xf]
  %v5002 = vld [vmem:[%s5 + $0xb4] sm:$0xf]
  %v5003 = vld [vmem:[%s5 + $0xb8] sm:$0xf]
  %v5004 = vld [vmem:[%s5 + $0xbc] sm:$0xf]
  %v5005 = vld [vmem:[%s5 + $0xc0] sm:$0xf]
  %v5006 = vld [vmem:[%s5 + $0xc4] sm:$0xf]
  %v5007 = vld [vmem:[%s5 + $0xc8] sm:$0xf]
  %v5008 = vld [vmem:[%s5 + $0xcc] sm:$0xf]
  %v5009 = vld [vmem:[%s5 + $0xd0] sm:$0xf]
  %v5010 = vld [vmem:[%s5 + $0xd4] sm:$0xf]
  %v5011 = vld [vmem:[%s5 + $0xd8] sm:$0xf]
  %v5012 = vld [vmem:[%s5 + $0xdc] sm:$0xf]
  %v5013 = vld [vmem:[%s5 + $0xe0] sm:$0xf]
  %v5014 = vld [vmem:[%s5 + $0xe4] sm:$0xf]
  %v5015 = vld [vmem:[%s5 + $0xe8] sm:$0xf]
  %v5016 = vld [vmem:[%s5 + $0xec] sm:$0xf]
  %v5017 = vld [vmem:[%s5 + $0xf0] sm:$0xf]
  %v5018 = vld [vmem:[%s5 + $0xf4] sm:$0xf]
  %v5019 = vld [vmem:[%s5 + $0xf8] sm:$0xf]
  %v5020 = vld [vmem:[%s5 + $0xfc] sm:$0xf]
  %v5021 = vld [vmem:[%s6] sm:$0x1]
  %v5023 = vlaneseq
  %v5024 = vshrl.u32 %v5023, 7
  %v5025 = vsub.s32 0, %v5024
  %v5026 = vrot.slane %v5021, %v5025
  %v5092 = vunpack.c.l.b16 %v4957
  %v5093 = vunpack.c.l.b16 %v4958
  %v5094 = vunpack.c.l.b16 %v4959
  %v5095 = vunpack.c.l.b16 %v4960
  %v5096 = vunpack.c.l.b16 %v4961
  %v5097 = vunpack.c.l.b16 %v4962
  %v5098 = vunpack.c.l.b16 %v4963
  %v5099 = vunpack.c.l.b16 %v4964
  %v5100 = vunpack.c.l.b16 %v4965
  %v5101 = vunpack.c.l.b16 %v4966
  %v5102 = vunpack.c.l.b16 %v4967
  %v5103 = vunpack.c.l.b16 %v4968
  %v5104 = vunpack.c.l.b16 %v4969
  %v5105 = vunpack.c.l.b16 %v4970
  %v5106 = vunpack.c.l.b16 %v4971
  %v5107 = vunpack.c.l.b16 %v4972
  %v5108 = vunpack.c.l.b16 %v4973
  %v5109 = vunpack.c.l.b16 %v4974
  %v5110 = vunpack.c.l.b16 %v4975
  %v5111 = vunpack.c.l.b16 %v4976
  %v5112 = vunpack.c.l.b16 %v4977
  %v5113 = vunpack.c.l.b16 %v4978
  %v5114 = vunpack.c.l.b16 %v4979
  %v5115 = vunpack.c.l.b16 %v4980
  %v5116 = vunpack.c.l.b16 %v4981
  %v5117 = vunpack.c.l.b16 %v4982
  %v5118 = vunpack.c.l.b16 %v4983
  %v5119 = vunpack.c.l.b16 %v4984
  %v5120 = vunpack.c.l.b16 %v4985
  %v5121 = vunpack.c.l.b16 %v4986
  %v5122 = vunpack.c.l.b16 %v4987
  %v5123 = vunpack.c.l.b16 %v4988
  %v5124 = vunpack.c.l.b16 %v4989
  %v5125 = vunpack.c.l.b16 %v4990
  %v5126 = vunpack.c.l.b16 %v4991
  %v5127 = vunpack.c.l.b16 %v4992
  %v5128 = vunpack.c.l.b16 %v4993
  %v5129 = vunpack.c.l.b16 %v4994
  %v5130 = vunpack.c.l.b16 %v4995
  %v5131 = vunpack.c.l.b16 %v4996
  %v5132 = vunpack.c.l.b16 %v4997
  %v5133 = vunpack.c.l.b16 %v4998
  %v5134 = vunpack.c.l.b16 %v4999
  %v5135 = vunpack.c.l.b16 %v5000
  %v5136 = vunpack.c.l.b16 %v5001
  %v5137 = vunpack.c.l.b16 %v5002
  %v5138 = vunpack.c.l.b16 %v5003
  %v5139 = vunpack.c.l.b16 %v5004
  %v5140 = vunpack.c.l.b16 %v5005
  %v5141 = vunpack.c.l.b16 %v5006
  %v5142 = vunpack.c.l.b16 %v5007
  %v5143 = vunpack.c.l.b16 %v5008
  %v5144 = vunpack.c.l.b16 %v5009
  %v5145 = vunpack.c.l.b16 %v5010
  %v5146 = vunpack.c.l.b16 %v5011
  %v5147 = vunpack.c.l.b16 %v5012
  %v5148 = vunpack.c.l.b16 %v5013
  %v5149 = vunpack.c.l.b16 %v5014
  %v5150 = vunpack.c.l.b16 %v5015
  %v5151 = vunpack.c.l.b16 %v5016
  %v5152 = vunpack.c.l.b16 %v5017
  %v5153 = vunpack.c.l.b16 %v5018
  %v5154 = vunpack.c.l.b16 %v5019
  %v5155 = vunpack.c.l.b16 %v5020
  %v5156 = vpack.c.b16 %v5093, %v5092
  %v5157 = vpack.c.b16 %v5095, %v5094
  %v5158 = vpack.c.b16 %v5097, %v5096
  %v5159 = vpack.c.b16 %v5099, %v5098
  %v5160 = vpack.c.b16 %v5101, %v5100
  %v5161 = vpack.c.b16 %v5103, %v5102
  %v5162 = vpack.c.b16 %v5105, %v5104
  %v5163 = vpack.c.b16 %v5107, %v5106
  %v5164 = vpack.c.b16 %v5109, %v5108
  %v5165 = vpack.c.b16 %v5111, %v5110
  %v5166 = vpack.c.b16 %v5113, %v5112
  %v5167 = vpack.c.b16 %v5115, %v5114
  %v5168 = vpack.c.b16 %v5117, %v5116
  %v5169 = vpack.c.b16 %v5119, %v5118
  %v5170 = vpack.c.b16 %v5121, %v5120
  %v5171 = vpack.c.b16 %v5123, %v5122
  %v5172 = vpack.c.b16 %v5125, %v5124
  %v5173 = vpack.c.b16 %v5127, %v5126
  %v5174 = vpack.c.b16 %v5129, %v5128
  %v5175 = vpack.c.b16 %v5131, %v5130
  %v5176 = vpack.c.b16 %v5133, %v5132
  %v5177 = vpack.c.b16 %v5135, %v5134
  %v5178 = vpack.c.b16 %v5137, %v5136
  %v5179 = vpack.c.b16 %v5139, %v5138
  %v5180 = vpack.c.b16 %v5141, %v5140
  %v5181 = vpack.c.b16 %v5143, %v5142
  %v5182 = vpack.c.b16 %v5145, %v5144
  %v5183 = vpack.c.b16 %v5147, %v5146
  %v5184 = vpack.c.b16 %v5149, %v5148
  %v5185 = vpack.c.b16 %v5151, %v5150
  %v5186 = vpack.c.b16 %v5153, %v5152
  %v5187 = vpack.c.b16 %v5155, %v5154
  %5220 = vmatprep.subr.bf16.mxu0 0
  %5221 = vmatpush1.bf16.msra.mxu0 %v5163
  %5222 = vmatprep.subr.bf16.mxu0 0
  %5223 = vmatpush1.bf16.msra.mxu0 %v5162
  %5224 = vmatprep.subr.bf16.mxu0 0
  %5225 = vmatpush1.bf16.msra.mxu0 %v5161
  %5226 = vmatprep.subr.bf16.mxu0 0
  %5227 = vmatpush1.bf16.msra.mxu0 %v5160
  %5228 = vmatprep.subr.bf16.mxu0 0
  %5229 = vmatpush1.bf16.msra.mxu0 %v5159
  %5230 = vmatprep.subr.bf16.mxu0 0
  %5231 = vmatpush1.bf16.msra.mxu0 %v5158
  %5232 = vmatprep.subr.bf16.mxu0 0
  %5233 = vmatpush1.bf16.msra.mxu0 %v5157
  %5234 = vmatprep.subr.bf16.mxu0 0
  %5235 = vmatpush1.bf16.msra.mxu0 %v5156
  %5236 = vmatprep.subr.bf16.mxu0 0
  %5237 = vmatpush2.bf16.msra.mxu0 %v5171
  %5238 = vmatprep.subr.bf16.mxu0 0
  %5239 = vmatpush2.bf16.msra.mxu0 %v5170
  %5240 = vmatprep.subr.bf16.mxu0 0
  %5241 = vmatpush2.bf16.msra.mxu0 %v5169
  %5242 = vmatprep.subr.bf16.mxu0 0
  %5243 = vmatpush2.bf16.msra.mxu0 %v5168
  %5244 = vmatprep.subr.bf16.mxu0 0
  %5245 = vmatpush2.bf16.msra.mxu0 %v5167
  %5246 = vmatprep.subr.bf16.mxu0 0
  %5247 = vmatpush2.bf16.msra.mxu0 %v5166
  %5248 = vmatprep.subr.bf16.mxu0 0
  %5249 = vmatpush2.bf16.msra.mxu0 %v5165
  %5250 = vmatprep.subr.bf16.mxu0 0
  %5251 = vmatpush2.bf16.msra.mxu0 %v5164
  %5252 = vmatprep.mubr.bf16.mxu0 %v4894
  %5253 = vmatmul.mubr.bf16.gmra.mxu0 %v4893
  %v5254 = vpop.f32.mrf.mxu0
  %v5255 = vadd.f32 %v5026, %v5254
  %v5256 = vpop.f32.mrf.mxu0
  %v5257 = vpop.f32.mrf.mxu0
  %v5258 = vadd.f32 %v5026, %v5257
  %v5259 = vpop.f32.mrf.mxu0
  %5260 = vmatprep.mubr.bf16.mxu0 %v4898
  %5261 = vmatmul.mubr.bf16.gmra.mxu0 %v4897
  %v5262 = vpop.f32.mrf.mxu0
  %v5263 = vadd.f32 %v5026, %v5262
  %v5264 = vpop.f32.mrf.mxu0
  %v5265 = vpop.f32.mrf.mxu0
  %v5266 = vadd.f32 %v5026, %v5265
  %v5267 = vpop.f32.mrf.mxu0
  %5268 = vmatprep.mubr.bf16.mxu0 %v4902
  %5269 = vmatmul.mubr.bf16.gmra.mxu0 %v4901
  %v5270 = vpop.f32.mrf.mxu0
  %v5271 = vadd.f32 %v5026, %v5270
  %v5272 = vpop.f32.mrf.mxu0
  %v5273 = vpop.f32.mrf.mxu0
  %v5274 = vadd.f32 %v5026, %v5273
  %v5275 = vpop.f32.mrf.mxu0
  %5276 = vmatprep.mubr.bf16.mxu0 %v4906
  %5277 = vmatmul.mubr.bf16.gmra.mxu0 %v4905
  %v5278 = vpop.f32.mrf.mxu0
  %v5279 = vadd.f32 %v5026, %v5278
  %v5280 = vpop.f32.mrf.mxu0
  %v5281 = vpop.f32.mrf.mxu0
  %v5282 = vadd.f32 %v5026, %v5281
  %v5283 = vpop.f32.mrf.mxu0
  %5284 = vmatprep.mubr.bf16.mxu0 %v4910
  %5285 = vmatmul.mubr.bf16.gmra.mxu0 %v4909
  %v5286 = vpop.f32.mrf.mxu0
  %v5287 = vadd.f32 %v5026, %v5286
  %v5288 = vpop.f32.mrf.mxu0
  %v5289 = vpop.f32.mrf.mxu0
  %v5290 = vadd.f32 %v5026, %v5289
  %v5291 = vpop.f32.mrf.mxu0
  %5292 = vmatprep.mubr.bf16.mxu0 %v4914
  %5293 = vmatmul.mubr.bf16.gmra.mxu0 %v4913
  %v5294 = vpop.f32.mrf.mxu0
  %v5295 = vadd.f32 %v5026, %v5294
  %v5296 = vpop.f32.mrf.mxu0
  %v5297 = vpop.f32.mrf.mxu0
  %v5298 = vadd.f32 %v5026, %v5297
  %v5299 = vpop.f32.mrf.mxu0
  %5300 = vmatprep.mubr.bf16.mxu0 %v4918
  %5301 = vmatmul.mubr.bf16.gmra.mxu0 %v4917
  %v5302 = vpop.f32.mrf.mxu0
  %v5303 = vadd.f32 %v5026, %v5302
  %v5304 = vpop.f32.mrf.mxu0
  %v5305 = vpop.f32.mrf.mxu0
  %v5306 = vadd.f32 %v5026, %v5305
  %v5307 = vpop.f32.mrf.mxu0
  %5308 = vmatprep.mubr.bf16.mxu0 %v4922
  %5309 = vmatmul.mubr.bf16.gmra.mxu0 %v4921
  %v5310 = vpop.f32.mrf.mxu0
  %v5311 = vadd.f32 %v5026, %v5310
  %v5312 = vpop.f32.mrf.mxu0
  %v5313 = vpop.f32.mrf.mxu0
  %v5314 = vadd.f32 %v5026, %v5313
  %v5315 = vpop.f32.mrf.mxu0
  %5316 = vmatprep.mubr.bf16.mxu0 %v4926
  %5317 = vmatmul.mubr.bf16.gmra.mxu0 %v4925
  %v5318 = vpop.f32.mrf.mxu0
  %v5319 = vadd.f32 %v5026, %v5318
  %v5320 = vpop.f32.mrf.mxu0
  %v5321 = vpop.f32.mrf.mxu0
  %v5322 = vadd.f32 %v5026, %v5321
  %v5323 = vpop.f32.mrf.mxu0
  %5324 = vmatprep.mubr.bf16.mxu0 %v4930
  %5325 = vmatmul.mubr.bf16.gmra.mxu0 %v4929
  %v5326 = vpop.f32.mrf.mxu0
  %v5327 = vadd.f32 %v5026, %v5326
  %v5328 = vpop.f32.mrf.mxu0
  %v5329 = vpop.f32.mrf.mxu0
  %v5330 = vadd.f32 %v5026, %v5329
  %v5331 = vpop.f32.mrf.mxu0
  %5332 = vmatprep.mubr.bf16.mxu0 %v4934
  %5333 = vmatmul.mubr.bf16.gmra.mxu0 %v4933
  %v5334 = vpop.f32.mrf.mxu0
  %v5335 = vadd.f32 %v5026, %v5334
  %v5336 = vpop.f32.mrf.mxu0
  %v5337 = vpop.f32.mrf.mxu0
  %v5338 = vadd.f32 %v5026, %v5337
  %v5339 = vpop.f32.mrf.mxu0
  %5340 = vmatprep.mubr.bf16.mxu0 %v4938
  %5341 = vmatmul.mubr.bf16.gmra.mxu0 %v4937
  %v5342 = vpop.f32.mrf.mxu0
  %v5343 = vadd.f32 %v5026, %v5342
  %v5344 = vpop.f32.mrf.mxu0
  %v5345 = vpop.f32.mrf.mxu0
  %v5346 = vadd.f32 %v5026, %v5345
  %v5347 = vpop.f32.mrf.mxu0
  %5348 = vmatprep.mubr.bf16.mxu0 %v4942
  %5349 = vmatmul.mubr.bf16.gmra.mxu0 %v4941
  %v5350 = vpop.f32.mrf.mxu0
  %v5351 = vadd.f32 %v5026, %v5350
  %v5352 = vpop.f32.mrf.mxu0
  %v5353 = vpop.f32.mrf.mxu0
  %v5354 = vadd.f32 %v5026, %v5353
  %v5355 = vpop.f32.mrf.mxu0
  %5356 = vmatprep.mubr.bf16.mxu0 %v4946
  %5357 = vmatmul.mubr.bf16.gmra.mxu0 %v4945
  %v5358 = vpop.f32.mrf.mxu0
  %v5359 = vadd.f32 %v5026, %v5358
  %v5360 = vpop.f32.mrf.mxu0
  %v5361 = vpop.f32.mrf.mxu0
  %v5362 = vadd.f32 %v5026, %v5361
  %v5363 = vpop.f32.mrf.mxu0
  %5364 = vmatprep.mubr.bf16.mxu0 %v4950
  %5365 = vmatmul.mubr.bf16.gmra.mxu0 %v4949
  %v5366 = vpop.f32.mrf.mxu0
  %v5367 = vadd.f32 %v5026, %v5366
  %v5368 = vpop.f32.mrf.mxu0
  %v5369 = vpop.f32.mrf.mxu0
  %v5370 = vadd.f32 %v5026, %v5369
  %v5371 = vpop.f32.mrf.mxu0
  %5372 = vmatprep.mubr.bf16.mxu0 %v4954
  %5373 = vmatmul.mubr.bf16.gmra.mxu0 %v4953
  %v5374 = vpop.f32.mrf.mxu0
  %v5375 = vadd.f32 %v5026, %v5374
  %v5376 = vpop.f32.mrf.mxu0
  %v5377 = vpop.f32.mrf.mxu0
  %v5378 = vadd.f32 %v5026, %v5377
  %v5379 = vpop.f32.mrf.mxu0
  %5380 = vdwg.mxu0
  %5381 = vmatprep.subr.bf16.mxu0 0
  %5382 = vmatpush1.bf16.msra.mxu0 %v5179
  %5383 = vmatprep.subr.bf16.mxu0 0
  %5384 = vmatpush1.bf16.msra.mxu0 %v5178
  %5385 = vmatprep.subr.bf16.mxu0 0
  %5386 = vmatpush1.bf16.msra.mxu0 %v5177
  %5387 = vmatprep.subr.bf16.mxu0 0
  %5388 = vmatpush1.bf16.msra.mxu0 %v5176
  %5389 = vmatprep.subr.bf16.mxu0 0
  %5390 = vmatpush1.bf16.msra.mxu0 %v5175
  %5391 = vmatprep.subr.bf16.mxu0 0
  %5392 = vmatpush1.bf16.msra.mxu0 %v5174
  %5393 = vmatprep.subr.bf16.mxu0 0
  %5394 = vmatpush1.bf16.msra.mxu0 %v5173
  %5395 = vmatprep.subr.bf16.mxu0 0
  %5396 = vmatpush1.bf16.msra.mxu0 %v5172
  %5397 = vmatprep.subr.bf16.mxu0 0
  %5398 = vmatpush2.bf16.msra.mxu0 %v5187
  %5399 = vmatprep.subr.bf16.mxu0 0
  %5400 = vmatpush2.bf16.msra.mxu0 %v5186
  %5401 = vmatprep.subr.bf16.mxu0 0
  %5402 = vmatpush2.bf16.msra.mxu0 %v5185
  %5403 = vmatprep.subr.bf16.mxu0 0
  %5404 = vmatpush2.bf16.msra.mxu0 %v5184
  %5405 = vmatprep.subr.bf16.mxu0 0
  %5406 = vmatpush2.bf16.msra.mxu0 %v5183
  %5407 = vmatprep.subr.bf16.mxu0 0
  %5408 = vmatpush2.bf16.msra.mxu0 %v5182
  %5409 = vmatprep.subr.bf16.mxu0 0
  %5410 = vmatpush2.bf16.msra.mxu0 %v5181
  %5411 = vmatprep.subr.bf16.mxu0 0
  %5412 = vmatpush2.bf16.msra.mxu0 %v5180
  %5413 = vmatprep.mubr.bf16.mxu0 %v4896
  %5414 = vmatmul.mubr.bf16.gmra.mxu0 %v4895
  %v5415 = vpop.f32.mrf.mxu0
  %v5416 = vadd.f32 %v5255, %v5415
  %v5417 = vpop.f32.mrf.mxu0
  %v5418 = vpop.f32.mrf.mxu0
  %v5419 = vadd.f32 %v5258, %v5418
  %v5420 = vpop.f32.mrf.mxu0
  %5421 = vmatprep.mubr.bf16.mxu0 %v4900
  %5422 = vmatmul.mubr.bf16.gmra.mxu0 %v4899
  %v5423 = vpop.f32.mrf.mxu0
  %v5424 = vadd.f32 %v5263, %v5423
  %v5425 = vpop.f32.mrf.mxu0
  %v5426 = vpop.f32.mrf.mxu0
  %v5427 = vadd.f32 %v5266, %v5426
  %v5428 = vpop.f32.mrf.mxu0
  %5429 = vmatprep.mubr.bf16.mxu0 %v4904
  %5430 = vmatmul.mubr.bf16.gmra.mxu0 %v4903
  %v5431 = vpop.f32.mrf.mxu0
  %v5432 = vadd.f32 %v5271, %v5431
  %v5433 = vpop.f32.mrf.mxu0
  %v5434 = vpop.f32.mrf.mxu0
  %v5435 = vadd.f32 %v5274, %v5434
  %v5436 = vpop.f32.mrf.mxu0
  %5437 = vmatprep.mubr.bf16.mxu0 %v4908
  %5438 = vmatmul.mubr.bf16.gmra.mxu0 %v4907
  %v5439 = vpop.f32.mrf.mxu0
  %v5440 = vadd.f32 %v5279, %v5439
  %v5441 = vpop.f32.mrf.mxu0
  %v5442 = vpop.f32.mrf.mxu0
  %v5443 = vadd.f32 %v5282, %v5442
  %v5444 = vpop.f32.mrf.mxu0
  %5445 = vmatprep.mubr.bf16.mxu0 %v4912
  %5446 = vmatmul.mubr.bf16.gmra.mxu0 %v4911
  %v5447 = vpop.f32.mrf.mxu0
  %v5448 = vadd.f32 %v5287, %v5447
  %v5449 = vpop.f32.mrf.mxu0
  %v5450 = vpop.f32.mrf.mxu0
  %v5451 = vadd.f32 %v5290, %v5450
  %v5452 = vpop.f32.mrf.mxu0
  %5453 = vmatprep.mubr.bf16.mxu0 %v4916
  %5454 = vmatmul.mubr.bf16.gmra.mxu0 %v4915
  %v5455 = vpop.f32.mrf.mxu0
  %v5456 = vadd.f32 %v5295, %v5455
  %v5457 = vpop.f32.mrf.mxu0
  %v5458 = vpop.f32.mrf.mxu0
  %v5459 = vadd.f32 %v5298, %v5458
  %v5460 = vpop.f32.mrf.mxu0
  %5461 = vmatprep.mubr.bf16.mxu0 %v4920
  %5462 = vmatmul.mubr.bf16.gmra.mxu0 %v4919
  %v5463 = vpop.f32.mrf.mxu0
  %v5464 = vadd.f32 %v5303, %v5463
  %v5465 = vpop.f32.mrf.mxu0
  %v5466 = vpop.f32.mrf.mxu0
  %v5467 = vadd.f32 %v5306, %v5466
  %v5468 = vpop.f32.mrf.mxu0
  %5469 = vmatprep.mubr.bf16.mxu0 %v4924
  %5470 = vmatmul.mubr.bf16.gmra.mxu0 %v4923
  %v5471 = vpop.f32.mrf.mxu0
  %v5472 = vadd.f32 %v5311, %v5471
  %v5473 = vpop.f32.mrf.mxu0
  %v5474 = vpop.f32.mrf.mxu0
  %v5475 = vadd.f32 %v5314, %v5474
  %v5476 = vpop.f32.mrf.mxu0
  %5477 = vmatprep.mubr.bf16.mxu0 %v4928
  %5478 = vmatmul.mubr.bf16.gmra.mxu0 %v4927
  %v5479 = vpop.f32.mrf.mxu0
  %v5480 = vadd.f32 %v5319, %v5479
  %v5481 = vpop.f32.mrf.mxu0
  %v5482 = vpop.f32.mrf.mxu0
  %v5483 = vadd.f32 %v5322, %v5482
  %v5484 = vpop.f32.mrf.mxu0
  %5485 = vmatprep.mubr.bf16.mxu0 %v4932
  %5486 = vmatmul.mubr.bf16.gmra.mxu0 %v4931
  %v5487 = vpop.f32.mrf.mxu0
  %v5488 = vadd.f32 %v5327, %v5487
  %v5489 = vpop.f32.mrf.mxu0
  %v5490 = vpop.f32.mrf.mxu0
  %v5491 = vadd.f32 %v5330, %v5490
  %v5492 = vpop.f32.mrf.mxu0
  %5493 = vmatprep.mubr.bf16.mxu0 %v4936
  %5494 = vmatmul.mubr.bf16.gmra.mxu0 %v4935
  %v5495 = vpop.f32.mrf.mxu0
  %v5496 = vadd.f32 %v5335, %v5495
  %v5497 = vpop.f32.mrf.mxu0
  %v5498 = vpop.f32.mrf.mxu0
  %v5499 = vadd.f32 %v5338, %v5498
  %v5500 = vpop.f32.mrf.mxu0
  %5501 = vmatprep.mubr.bf16.mxu0 %v4940
  %5502 = vmatmul.mubr.bf16.gmra.mxu0 %v4939
  %v5503 = vpop.f32.mrf.mxu0
  %v5504 = vadd.f32 %v5343, %v5503
  %v5505 = vpop.f32.mrf.mxu0
  %v5506 = vpop.f32.mrf.mxu0
  %v5507 = vadd.f32 %v5346, %v5506
  %v5508 = vpop.f32.mrf.mxu0
  %5509 = vmatprep.mubr.bf16.mxu0 %v4944
  %5510 = vmatmul.mubr.bf16.gmra.mxu0 %v4943
  %v5511 = vpop.f32.mrf.mxu0
  %v5512 = vadd.f32 %v5351, %v5511
  %v5513 = vpop.f32.mrf.mxu0
  %v5514 = vpop.f32.mrf.mxu0
  %v5515 = vadd.f32 %v5354, %v5514
  %v5516 = vpop.f32.mrf.mxu0
  %5517 = vmatprep.mubr.bf16.mxu0 %v4948
  %5518 = vmatmul.mubr.bf16.gmra.mxu0 %v4947
  %v5519 = vpop.f32.mrf.mxu0
  %v5520 = vadd.f32 %v5359, %v5519
  %v5521 = vpop.f32.mrf.mxu0
  %v5522 = vpop.f32.mrf.mxu0
  %v5523 = vadd.f32 %v5362, %v5522
  %v5524 = vpop.f32.mrf.mxu0
  %5525 = vmatprep.mubr.bf16.mxu0 %v4952
  %5526 = vmatmul.mubr.bf16.gmra.mxu0 %v4951
  %v5527 = vpop.f32.mrf.mxu0
  %v5528 = vadd.f32 %v5367, %v5527
  %v5529 = vpop.f32.mrf.mxu0
  %v5530 = vpop.f32.mrf.mxu0
  %v5531 = vadd.f32 %v5370, %v5530
  %v5532 = vpop.f32.mrf.mxu0
  %5533 = vmatprep.mubr.bf16.mxu0 %v4956
  %5534 = vmatmul.mubr.bf16.gmra.mxu0 %v4955
  %v5535 = vpop.f32.mrf.mxu0
  %v5536 = vadd.f32 %v5375, %v5535
  %v5537 = vpop.f32.mrf.mxu0
  %v5538 = vpop.f32.mrf.mxu0
  %v5539 = vadd.f32 %v5378, %v5538
  %v5540 = vpop.f32.mrf.mxu0
  %5541 = vdwg.mxu0
  %v5542 = vmax.f32 %v5416, 0.0
  %v5543 = vmax.f32 %v5419, 0.0
  %v5544 = vmax.f32 %v5424, 0.0
  %v5545 = vmax.f32 %v5427, 0.0
  %v5546 = vmax.f32 %v5432, 0.0
  %v5547 = vmax.f32 %v5435, 0.0
  %v5548 = vmax.f32 %v5440, 0.0
  %v5549 = vmax.f32 %v5443, 0.0
  %v5550 = vmax.f32 %v5448, 0.0
  %v5551 = vmax.f32 %v5451, 0.0
  %v5552 = vmax.f32 %v5456, 0.0
  %v5553 = vmax.f32 %v5459, 0.0
  %v5554 = vmax.f32 %v5464, 0.0
  %v5555 = vmax.f32 %v5467, 0.0
  %v5556 = vmax.f32 %v5472, 0.0
  %v5557 = vmax.f32 %v5475, 0.0
  %v5558 = vmax.f32 %v5480, 0.0
  %v5559 = vmax.f32 %v5483, 0.0
  %v5560 = vmax.f32 %v5488, 0.0
  %v5561 = vmax.f32 %v5491, 0.0
  %v5562 = vmax.f32 %v5496, 0.0
  %v5563 = vmax.f32 %v5499, 0.0
  %v5564 = vmax.f32 %v5504, 0.0
  %v5565 = vmax.f32 %v5507, 0.0
  %v5566 = vmax.f32 %v5512, 0.0
  %v5567 = vmax.f32 %v5515, 0.0
  %v5568 = vmax.f32 %v5520, 0.0
  %v5569 = vmax.f32 %v5523, 0.0
  %v5570 = vmax.f32 %v5528, 0.0
  %v5571 = vmax.f32 %v5531, 0.0
  %v5572 = vmax.f32 %v5536, 0.0
  %v5573 = vmax.f32 %v5539, 0.0
  %v5574 = vpack.c.bf16 %v5543, %v5542
  %v5575 = vpack.c.bf16 %v5545, %v5544
  %v5576 = vpack.c.bf16 %v5547, %v5546
  %v5577 = vpack.c.bf16 %v5549, %v5548
  %v5578 = vpack.c.bf16 %v5551, %v5550
  %v5579 = vpack.c.bf16 %v5553, %v5552
  %v5580 = vpack.c.bf16 %v5555, %v5554
  %v5581 = vpack.c.bf16 %v5557, %v5556
  %v5582 = vpack.c.bf16 %v5559, %v5558
  %v5583 = vpack.c.bf16 %v5561, %v5560
  %v5584 = vpack.c.bf16 %v5563, %v5562
  %v5585 = vpack.c.bf16 %v5565, %v5564
  %v5586 = vpack.c.bf16 %v5567, %v5566
  %v5587 = vpack.c.bf16 %v5569, %v5568
  %v5588 = vpack.c.bf16 %v5571, %v5570
  %v5589 = vpack.c.bf16 %v5573, %v5572
  %v5590 = vld [vmem:[%s7] sm:$0xf]
  %v5591 = vld [vmem:[%s7 + $0x4] sm:$0xf]
  %v5592 = vld [vmem:[%s7 + $0x8] sm:$0xf]
  %v5593 = vld [vmem:[%s7 + $0xc] sm:$0xf]
  %v5594 = vld [vmem:[%s7 + $0x10] sm:$0xf]
  %v5595 = vld [vmem:[%s7 + $0x14] sm:$0xf]
  %v5596 = vld [vmem:[%s7 + $0x18] sm:$0xf]
  %v5597 = vld [vmem:[%s7 + $0x1c] sm:$0xf]
  %v5598 = vld [vmem:[%s7 + $0x20] sm:$0xf]
  %v5599 = vld [vmem:[%s7 + $0x24] sm:$0xf]
  %v5600 = vld [vmem:[%s7 + $0x28] sm:$0xf]
  %v5601 = vld [vmem:[%s7 + $0x2c] sm:$0xf]
  %v5602 = vld [vmem:[%s7 + $0x30] sm:$0xf]
  %v5603 = vld [vmem:[%s7 + $0x34] sm:$0xf]
  %v5604 = vld [vmem:[%s7 + $0x38] sm:$0xf]
  %v5605 = vld [vmem:[%s7 + $0x3c] sm:$0xf]
  %v5606 = vld [vmem:[%s8] sm:$0x1]
  %v5608 = vlaneseq
  %v5609 = vshrl.u32 %v5608, 7
  %v5610 = vsub.s32 0, %v5609
  %v5611 = vrot.slane %v5606, %v5610
  %v5629 = vunpack.c.l.b16 %v5590
  %v5630 = vunpack.c.l.b16 %v5591
  %v5631 = vunpack.c.l.b16 %v5592
  %v5632 = vunpack.c.l.b16 %v5593
  %v5633 = vunpack.c.l.b16 %v5594
  %v5634 = vunpack.c.l.b16 %v5595
  %v5635 = vunpack.c.l.b16 %v5596
  %v5636 = vunpack.c.l.b16 %v5597
  %v5637 = vunpack.c.l.b16 %v5598
  %v5638 = vunpack.c.l.b16 %v5599
  %v5639 = vunpack.c.l.b16 %v5600
  %v5640 = vunpack.c.l.b16 %v5601
  %v5641 = vunpack.c.l.b16 %v5602
  %v5642 = vunpack.c.l.b16 %v5603
  %v5643 = vunpack.c.l.b16 %v5604
  %v5644 = vunpack.c.l.b16 %v5605
  %v5645 = vpack.c.b16 %v5630, %v5629
  %v5646 = vpack.c.b16 %v5632, %v5631
  %v5647 = vpack.c.b16 %v5634, %v5633
  %v5648 = vpack.c.b16 %v5636, %v5635
  %v5649 = vpack.c.b16 %v5638, %v5637
  %v5650 = vpack.c.b16 %v5640, %v5639
  %v5651 = vpack.c.b16 %v5642, %v5641
  %v5652 = vpack.c.b16 %v5644, %v5643
  %5661 = vmatprep.subr.bf16.mxu0 0
  %5662 = vmatpush1.bf16.msra.mxu0 %v5652
  %5663 = vmatprep.subr.bf16.mxu0 0
  %5664 = vmatpush1.bf16.msra.mxu0 %v5651
  %5665 = vmatprep.subr.bf16.mxu0 0
  %5666 = vmatpush1.bf16.msra.mxu0 %v5650
  %5667 = vmatprep.subr.bf16.mxu0 0
  %5668 = vmatpush1.bf16.msra.mxu0 %v5649
  %5669 = vmatprep.subr.bf16.mxu0 0
  %5670 = vmatpush1.bf16.msra.mxu0 %v5648
  %5671 = vmatprep.subr.bf16.mxu0 0
  %5672 = vmatpush1.bf16.msra.mxu0 %v5647
  %5673 = vmatprep.subr.bf16.mxu0 0
  %5674 = vmatpush1.bf16.msra.mxu0 %v5646
  %5675 = vmatprep.subr.bf16.mxu0 0
  %5676 = vmatpush1.bf16.msra.mxu0 %v5645
  %5677 = vmatprep.subr.bf16.mxu0 0
  %5678 = vmatpush2.bf16.msra.mxu0 0
  %5679 = vmatprep.subr.bf16.mxu0 0
  %5680 = vmatpush2.bf16.msra.mxu0 0
  %5681 = vmatprep.subr.bf16.mxu0 0
  %5682 = vmatpush2.bf16.msra.mxu0 0
  %5683 = vmatprep.subr.bf16.mxu0 0
  %5684 = vmatpush2.bf16.msra.mxu0 0
  %5685 = vmatprep.subr.bf16.mxu0 0
  %5686 = vmatpush2.bf16.msra.mxu0 0
  %5687 = vmatprep.subr.bf16.mxu0 0
  %5688 = vmatpush2.bf16.msra.mxu0 0
  %5689 = vmatprep.subr.bf16.mxu0 0
  %5690 = vmatpush2.bf16.msra.mxu0 0
  %5691 = vmatprep.subr.bf16.mxu0 0
  %5692 = vmatpush2.bf16.msra.mxu0 0
  %5693 = vmatprep.mubr.bf16.mxu0 0
  %5694 = vmatmul.mubr.bf16.gmra.mxu0 %v5574
  %v5695 = vpop.f32.mrf.mxu0
  %v5696 = vadd.f32 %v5611, %v5695
  %v5697 = vpop.f32.mrf.mxu0
  %v5698 = vpop.f32.mrf.mxu0
  %v5699 = vadd.f32 %v5611, %v5698
  %v5700 = vpop.f32.mrf.mxu0
  %5701 = vmatprep.mubr.bf16.mxu0 0
  %5702 = vmatmul.mubr.bf16.gmra.mxu0 %v5575
  %v5703 = vpop.f32.mrf.mxu0
  %v5704 = vadd.f32 %v5611, %v5703
  %v5705 = vpop.f32.mrf.mxu0
  %v5706 = vpop.f32.mrf.mxu0
  %v5707 = vadd.f32 %v5611, %v5706
  %v5708 = vpop.f32.mrf.mxu0
  %5709 = vmatprep.mubr.bf16.mxu0 0
  %5710 = vmatmul.mubr.bf16.gmra.mxu0 %v5576
  %v5711 = vpop.f32.mrf.mxu0
  %v5712 = vadd.f32 %v5611, %v5711
  %v5713 = vpop.f32.mrf.mxu0
  %v5714 = vpop.f32.mrf.mxu0
  %v5715 = vadd.f32 %v5611, %v5714
  %v5716 = vpop.f32.mrf.mxu0
  %5717 = vmatprep.mubr.bf16.mxu0 0
  %5718 = vmatmul.mubr.bf16.gmra.mxu0 %v5577
  %v5719 = vpop.f32.mrf.mxu0
  %v5720 = vadd.f32 %v5611, %v5719
  %v5721 = vpop.f32.mrf.mxu0
  %v5722 = vpop.f32.mrf.mxu0
  %v5723 = vadd.f32 %v5611, %v5722
  %v5724 = vpop.f32.mrf.mxu0
  %5725 = vmatprep.mubr.bf16.mxu0 0
  %5726 = vmatmul.mubr.bf16.gmra.mxu0 %v5578
  %v5727 = vpop.f32.mrf.mxu0
  %v5728 = vadd.f32 %v5611, %v5727
  %v5729 = vpop.f32.mrf.mxu0
  %v5730 = vpop.f32.mrf.mxu0
  %v5731 = vadd.f32 %v5611, %v5730
  %v5732 = vpop.f32.mrf.mxu0
  %5733 = vmatprep.mubr.bf16.mxu0 0
  %5734 = vmatmul.mubr.bf16.gmra.mxu0 %v5579
  %v5735 = vpop.f32.mrf.mxu0
  %v5736 = vadd.f32 %v5611, %v5735
  %v5737 = vpop.f32.mrf.mxu0
  %v5738 = vpop.f32.mrf.mxu0
  %v5739 = vadd.f32 %v5611, %v5738
  %v5740 = vpop.f32.mrf.mxu0
  %5741 = vmatprep.mubr.bf16.mxu0 0
  %5742 = vmatmul.mubr.bf16.gmra.mxu0 %v5580
  %v5743 = vpop.f32.mrf.mxu0
  %v5744 = vadd.f32 %v5611, %v5743
  %v5745 = vpop.f32.mrf.mxu0
  %v5746 = vpop.f32.mrf.mxu0
  %v5747 = vadd.f32 %v5611, %v5746
  %v5748 = vpop.f32.mrf.mxu0
  %5749 = vmatprep.mubr.bf16.mxu0 0
  %5750 = vmatmul.mubr.bf16.gmra.mxu0 %v5581
  %v5751 = vpop.f32.mrf.mxu0
  %v5752 = vadd.f32 %v5611, %v5751
  %v5753 = vpop.f32.mrf.mxu0
  %v5754 = vpop.f32.mrf.mxu0
  %v5755 = vadd.f32 %v5611, %v5754
  %v5756 = vpop.f32.mrf.mxu0
  %5757 = vmatprep.mubr.bf16.mxu0 0
  %5758 = vmatmul.mubr.bf16.gmra.mxu0 %v5582
  %v5759 = vpop.f32.mrf.mxu0
  %v5760 = vadd.f32 %v5611, %v5759
  %v5761 = vpop.f32.mrf.mxu0
  %v5762 = vpop.f32.mrf.mxu0
  %v5763 = vadd.f32 %v5611, %v5762
  %v5764 = vpop.f32.mrf.mxu0
  %5765 = vmatprep.mubr.bf16.mxu0 0
  %5766 = vmatmul.mubr.bf16.gmra.mxu0 %v5583
  %v5767 = vpop.f32.mrf.mxu0
  %v5768 = vadd.f32 %v5611, %v5767
  %v5769 = vpop.f32.mrf.mxu0
  %v5770 = vpop.f32.mrf.mxu0
  %v5771 = vadd.f32 %v5611, %v5770
  %v5772 = vpop.f32.mrf.mxu0
  %5773 = vmatprep.mubr.bf16.mxu0 0
  %5774 = vmatmul.mubr.bf16.gmra.mxu0 %v5584
  %v5775 = vpop.f32.mrf.mxu0
  %v5776 = vadd.f32 %v5611, %v5775
  %v5777 = vpop.f32.mrf.mxu0
  %v5778 = vpop.f32.mrf.mxu0
  %v5779 = vadd.f32 %v5611, %v5778
  %v5780 = vpop.f32.mrf.mxu0
  %5781 = vmatprep.mubr.bf16.mxu0 0
  %5782 = vmatmul.mubr.bf16.gmra.mxu0 %v5585
  %v5783 = vpop.f32.mrf.mxu0
  %v5784 = vadd.f32 %v5611, %v5783
  %v5785 = vpop.f32.mrf.mxu0
  %v5786 = vpop.f32.mrf.mxu0
  %v5787 = vadd.f32 %v5611, %v5786
  %v5788 = vpop.f32.mrf.mxu0
  %5789 = vmatprep.mubr.bf16.mxu0 0
  %5790 = vmatmul.mubr.bf16.gmra.mxu0 %v5586
  %v5791 = vpop.f32.mrf.mxu0
  %v5792 = vadd.f32 %v5611, %v5791
  %v5793 = vpop.f32.mrf.mxu0
  %v5794 = vpop.f32.mrf.mxu0
  %v5795 = vadd.f32 %v5611, %v5794
  %v5796 = vpop.f32.mrf.mxu0
  %5797 = vmatprep.mubr.bf16.mxu0 0
  %5798 = vmatmul.mubr.bf16.gmra.mxu0 %v5587
  %v5799 = vpop.f32.mrf.mxu0
  %v5800 = vadd.f32 %v5611, %v5799
  %v5801 = vpop.f32.mrf.mxu0
  %v5802 = vpop.f32.mrf.mxu0
  %v5803 = vadd.f32 %v5611, %v5802
  %v5804 = vpop.f32.mrf.mxu0
  %5805 = vmatprep.mubr.bf16.mxu0 0
  %5806 = vmatmul.mubr.bf16.gmra.mxu0 %v5588
  %v5807 = vpop.f32.mrf.mxu0
  %v5808 = vadd.f32 %v5611, %v5807
  %v5809 = vpop.f32.mrf.mxu0
  %v5810 = vpop.f32.mrf.mxu0
  %v5811 = vadd.f32 %v5611, %v5810
  %v5812 = vpop.f32.mrf.mxu0
  %5813 = vmatprep.mubr.bf16.mxu0 0
  %5814 = vmatmul.mubr.bf16.gmra.mxu0 %v5589
  %v5815 = vpop.f32.mrf.mxu0
  %v5816 = vadd.f32 %v5611, %v5815
  %v5817 = vpop.f32.mrf.mxu0
  %v5818 = vpop.f32.mrf.mxu0
  %v5819 = vadd.f32 %v5611, %v5818
  %v5820 = vpop.f32.mrf.mxu0
  %5821 = vdwg.mxu0
  %5822 = vst [vmem:[%s9] sm:$0xff] %v5696
  %5823 = vst [vmem:[%s9 + $0x8] sm:$0xff] %v5699
  %5824 = vst [vmem:[%s9 + $0x10] sm:$0xff] %v5704
  %5825 = vst [vmem:[%s9 + $0x18] sm:$0xff] %v5707
  %5826 = vst [vmem:[%s9 + $0x20] sm:$0xff] %v5712
  %5827 = vst [vmem:[%s9 + $0x28] sm:$0xff] %v5715
  %5828 = vst [vmem:[%s9 + $0x30] sm:$0xff] %v5720
  %5829 = vst [vmem:[%s9 + $0x38] sm:$0xff] %v5723
  %5830 = vst [vmem:[%s9 + $0x40] sm:$0xff] %v5728
  %5831 = vst [vmem:[%s9 + $0x48] sm:$0xff] %v5731
  %5832 = vst [vmem:[%s9 + $0x50] sm:$0xff] %v5736
  %5833 = vst [vmem:[%s9 + $0x58] sm:$0xff] %v5739
  %5834 = vst [vmem:[%s9 + $0x60] sm:$0xff] %v5744
  %5835 = vst [vmem:[%s9 + $0x68] sm:$0xff] %v5747
  %5836 = vst [vmem:[%s9 + $0x70] sm:$0xff] %v5752
  %5837 = vst [vmem:[%s9 + $0x78] sm:$0xff] %v5755
  %5838 = vst [vmem:[%s9 + $0x80] sm:$0xff] %v5760
  %5839 = vst [vmem:[%s9 + $0x88] sm:$0xff] %v5763
  %5840 = vst [vmem:[%s9 + $0x90] sm:$0xff] %v5768
  %5841 = vst [vmem:[%s9 + $0x98] sm:$0xff] %v5771
  %5842 = vst [vmem:[%s9 + $0xa0] sm:$0xff] %v5776
  %5843 = vst [vmem:[%s9 + $0xa8] sm:$0xff] %v5779
  %5844 = vst [vmem:[%s9 + $0xb0] sm:$0xff] %v5784
  %5845 = vst [vmem:[%s9 + $0xb8] sm:$0xff] %v5787
  %5846 = vst [vmem:[%s9 + $0xc0] sm:$0xff] %v5792
  %5847 = vst [vmem:[%s9 + $0xc8] sm:$0xff] %v5795
  %5848 = vst [vmem:[%s9 + $0xd0] sm:$0xff] %v5800
  %5849 = vst [vmem:[%s9 + $0xd8] sm:$0xff] %v5803
  %5850 = vst [vmem:[%s9 + $0xe0] sm:$0xff] %v5808
  %5851 = vst [vmem:[%s9 + $0xe8] sm:$0xff] %v5811
  %5852 = vst [vmem:[%s9 + $0xf0] sm:$0xff] %v5816
  %5853 = vst [vmem:[%s9 + $0xf8] sm:$0xff] %v5819
  // Predicated region
  $region38: #{encoder3_forward.1} parent=0 // pred_check
    _
  $region39: #{encoder3_forward.1} parent=0 // pred_check_branch
    %5855 = sbr.rel (0) target = $region41
  $region40: #{encoder3_forward.1} parent=0 // pred_region
    _
  $region41: #{encoder3_forward.1} parent=0 // pred_fallthru
    _
  // Predicated region
  $region42: #{encoder3_forward.1} parent=0 // pred_check
    _
  $region43: #{encoder3_forward.1} parent=0 // pred_check_branch
    %5857 = sbr.rel (0) target = $region45
  $region44: #{encoder3_forward.1} parent=0 // pred_region
    _
  $region45: #{encoder3_forward.1} parent=0 // pred_fallthru
    _

</llo_original>
